<compile_context>
chip_gen: v5e
topology: v5e:2x2
jax: 0.10.0
libtpu: 0.0.40
codegen_flags: <defaults>
</compile_context>

<pallas_src>
import jax
import jax.numpy as jnp
from jax.experimental import pallas as pl
from jax.experimental.pallas import tpu as pltpu


def _rup(x, m):
    return ((x + m - 1) // m) * m


# ---------------------------------------------------------------------------
# Kernel 1: sequential LSTM recurrence, time-chunked (Tc steps per grid step).
# ---------------------------------------------------------------------------
def lstm_chunk_kernel(x_ref, w_ref, b_ref, hs_ref, h_sc, c_sc, xh_sc):
    @pl.when(pl.program_id(0) == 0)
    def _():
        h_sc[...] = jnp.zeros_like(h_sc)
        c_sc[...] = jnp.zeros_like(c_sc)

    Tc = x_ref.shape[0]
    Ep = x_ref.shape[-1]
    Hp = h_sc.shape[-1]

    def step(s, carry):
        # Fused [x ; h] @ [W_ih ; W_hh]: a single serialized MXU pass per step.
        xh_sc[:, :Ep] = x_ref[s]
        xh_sc[:, Ep:] = h_sc[...]
        gates = (jnp.dot(xh_sc[...], w_ref[...],
                         preferred_element_type=jnp.float32)
                 + b_ref[...])                                # (Bp, 4*Hp)

        # Gate slices are 128-multiples -> lane-aligned, no XLU relayout.
        i_g = jax.nn.sigmoid(gates[:, 0 * Hp:1 * Hp])
        f_g = jax.nn.sigmoid(gates[:, 1 * Hp:2 * Hp])
        g_g = jnp.tanh(gates[:, 2 * Hp:3 * Hp])
        o_g = jax.nn.sigmoid(gates[:, 3 * Hp:4 * Hp])

        c_new = f_g * c_sc[...] + i_g * g_g
        h_new = o_g * jnp.tanh(c_new)
        c_sc[...] = c_new
        h_sc[...] = h_new
        hs_ref[s] = h_new                                     # (Bp, Hp) slab store
        return carry

    jax.lax.fori_loop(0, Tc, step, 0, unroll=True)


def lstm_hidden_pallas(x_tbe_p, w_fused, b_fused, *, time_chunk):
    """x_tbe_p: (T1p, Bp, Ep) padded time-major input.
    w_fused: (Ep+Hp, 4*Hp); b_fused: (1, 4*Hp). Returns hidden states (T1p, Bp, Hp)."""
    T1p, Bp, Ep = x_tbe_p.shape
    EHp, H4 = w_fused.shape
    Hp = EHp - Ep

    grid_spec = pltpu.PrefetchScalarGridSpec(
        num_scalar_prefetch=0,
        grid=(T1p // time_chunk,),
        in_specs=[
            # Time chunk of inputs: amortizes per-grid-step overhead Tc-fold and
            # overlaps the next chunk's DMA with the recurrence.
            pl.BlockSpec((time_chunk, Bp, Ep), lambda t: (t, 0, 0)),
            # Invariant weights / bias (resident across the whole sequence).
            # (pl.Buffered(1) single-buffering left out for portability; these
            #  blocks are small here.)
            pl.BlockSpec((EHp, H4), lambda t: (0, 0)),
            pl.BlockSpec((1, H4), lambda t: (0, 0)),
        ],
        out_specs=pl.BlockSpec((time_chunk, Bp, Hp), lambda t: (t, 0, 0)),
        scratch_shapes=[
            pltpu.VMEM((Bp, Hp), jnp.float32),    # h state
            pltpu.VMEM((Bp, Hp), jnp.float32),    # c state
            pltpu.VMEM((Bp, EHp), jnp.float32),   # [x ; h] staging buffer
        ],
    )

    return pl.pallas_call(
        lstm_chunk_kernel,
        out_shape=jax.ShapeDtypeStruct((T1p, Bp, Hp), jnp.float32),
        grid_spec=grid_spec,
        compiler_params=pltpu.CompilerParams(
            dimension_semantics=("arbitrary",),          # true recurrence
            vmem_limit_bytes=32 * 1024 * 1024),
    )(x_tbe_p, w_fused, b_fused)


# ---------------------------------------------------------------------------
# Kernel 2: fully parallel vocab projection (tiled matmul over rows x V tiles).
# ---------------------------------------------------------------------------
def proj_kernel(h_ref, w_ref, b_ref, o_ref):
    o_ref[...] = (jnp.dot(h_ref[...], w_ref[...],
                          preferred_element_type=jnp.float32)
                  + b_ref[...])


def projection_pallas(h_flat, w_out_p, b_out_p, *, tm=128, tn=None):
    """h_flat: (Mp, Hp) batch-first-flattened hidden states (rows padded to tm).
    Returns logits (Mp, Vp)."""
    Mp, Hp = h_flat.shape
    _, Vp = w_out_p.shape
    if tn is None:
        # Tile V so W_out is streamed in column tiles (never fully resident) —
        # required for realistic vocab sizes on v7x's 64 MiB VMEM.
        tn = 512 if Vp % 512 == 0 else (256 if Vp % 256 == 0 else 128)

    grid_spec = pltpu.PrefetchScalarGridSpec(
        num_scalar_prefetch=0,
        grid=(Mp // tm, Vp // tn),
        in_specs=[
            pl.BlockSpec((tm, Hp), lambda i, j: (i, 0)),
            pl.BlockSpec((Hp, tn), lambda i, j: (0, j)),
            pl.BlockSpec((1, tn), lambda i, j: (0, j)),
        ],
        out_specs=pl.BlockSpec((tm, tn), lambda i, j: (i, j)),
    )

    return pl.pallas_call(
        proj_kernel,
        out_shape=jax.ShapeDtypeStruct((Mp, Vp), jnp.float32),
        grid_spec=grid_spec,
        compiler_params=pltpu.CompilerParams(
            dimension_semantics=("parallel", "parallel"),  # megacore-shardable
            vmem_limit_bytes=32 * 1024 * 1024),
    )(h_flat, w_out_p, b_out_p)


# ---------------------------------------------------------------------------
# Wrapper: embedding gather (XLA glue) -> padding -> recurrence -> projection.
# ---------------------------------------------------------------------------
def decoder_forward(features, captions, params, *, time_chunk=8):
    """features: (B, E) image features; captions: (B, T) int32 token ids.
    Returns logits (B, T+1, V) matching PyTorch's batch_first convention."""
    emb_table, w_ih, w_hh, b, w_out, b_out = params
    B, E = features.shape
    T = captions.shape[1]
    T1 = T + 1
    H = w_hh.shape[0]
    V = w_out.shape[1]

    # Embedding lookup (gather) + prepend image features: glue, stays in JAX.
    emb = emb_table[captions]                                    # (B, T, E)
    seq = jnp.concatenate([features[:, None, :], emb], axis=1)   # (B, T1, E)
    x_tbe = jnp.transpose(seq, (1, 0, 2))                        # (T1, B, E)

    # ---- pad to hardware tiles ------------------------------------------
    Bp = _rup(B, 8)
    Ep = _rup(E, 128)
    Hp = _rup(H, 128)
    Vp = _rup(V, 128)
    T1p = _rup(T1, time_chunk)

    x_p = jnp.pad(x_tbe, ((0, T1p - T1), (0, Bp - B), (0, Ep - E)))

    # Pad each gate block (i,f,g,o) to Hp lanes, then fuse W_ih/W_hh along the
    # contraction dim so the kernel does one MXU pass per step.
    def pad_gates(w, rows, rows_p):
        w4 = w.reshape(rows, 4, H)
        w4 = jnp.pad(w4, ((0, rows_p - rows), (0, 0), (0, Hp - H)))
        return w4.reshape(rows_p, 4 * Hp)

    w_ih_p = pad_gates(w_ih, E, Ep)                              # (Ep, 4Hp)
    w_hh_p = pad_gates(w_hh, H, Hp)                              # (Hp, 4Hp)
    w_fused = jnp.concatenate([w_ih_p, w_hh_p], axis=0)          # (Ep+Hp, 4Hp)
    b_p = jnp.pad(b.reshape(1, 4, H),
                  ((0, 0), (0, 0), (0, Hp - H))).reshape(1, 4 * Hp)

    w_out_p = jnp.pad(w_out, ((0, Hp - H), (0, Vp - V)))
    b_out_p = jnp.pad(b_out, ((0, 0), (0, Vp - V)))

    # ---- 1) sequential recurrence: hidden states only --------------------
    hs = lstm_hidden_pallas(x_p, w_fused, b_p, time_chunk=time_chunk)  # (T1p,Bp,Hp)

    # ---- 2) fully parallel vocab projection, batch-first output ----------
    # (only the small H-sized hidden states get transposed; the large V-sized
    #  logits are produced directly in batch-first row order)
    tm = 128
    M = Bp * T1p
    Mp = _rup(M, tm)
    h_bf = jnp.transpose(hs, (1, 0, 2)).reshape(M, Hp)
    h_bf = jnp.pad(h_bf, ((0, Mp - M), (0, 0)))
    logits_flat = projection_pallas(h_bf, w_out_p, b_out_p, tm=tm)     # (Mp, Vp)
    logits = logits_flat[:M].reshape(Bp, T1p, Vp)
    return logits[:B, :T1, :V]


# ---------------------------------------------------------------------------
# Pure-JAX reference (lax.scan LSTM) for correctness checking.
# ---------------------------------------------------------------------------
def reference_forward(features, captions, params):
    emb_table, w_ih, w_hh, b, w_out, b_out = params
    emb = emb_table[captions]
    seq = jnp.concatenate([features[:, None, :], emb], axis=1)
    x_tbe = jnp.transpose(seq, (1, 0, 2))
    B = features.shape[0]
    H = w_hh.shape[0]

    def step(carry, x):
        h, c = carry
        gates = x @ w_ih + h @ w_hh + b
        i = jax.nn.sigmoid(gates[:, 0 * H:1 * H])
        f = jax.nn.sigmoid(gates[:, 1 * H:2 * H])
        g = jnp.tanh(gates[:, 2 * H:3 * H])
        o = jax.nn.sigmoid(gates[:, 3 * H:4 * H])
        c_new = f * c + i * g
        h_new = o * jnp.tanh(c_new)
        return (h_new, c_new), h_new @ w_out + b_out

    init = (jnp.zeros((B, H), jnp.float32), jnp.zeros((B, H), jnp.float32))
    _, out = jax.lax.scan(step, init, x_tbe)
    return jnp.transpose(out, (1, 0, 2))


if __name__ == "__main__":
    vocab_size, embed_size, hidden_size = 64, 32, 32
    batch, seq_len = 4, 8

    key = jax.random.PRNGKey(0)
    k_emb, k_wih, k_whh, k_bih, k_bhh, k_wo, k_bo, k_feat, k_cap = \
        jax.random.split(key, 9)

    # Deterministic parameter init (module's init_weights: embedding ~ normal).
    emb_table = 0.01 * jax.random.normal(k_emb, (vocab_size, embed_size), jnp.float32)
    w_ih = 0.1 * jax.random.normal(k_wih, (embed_size, 4 * hidden_size), jnp.float32)
    w_hh = 0.1 * jax.random.normal(k_whh, (hidden_size, 4 * hidden_size), jnp.float32)
    # PyTorch LSTM has b_ih and b_hh; they only ever appear summed.
    b = (0.1 * jax.random.normal(k_bih, (1, 4 * hidden_size), jnp.float32)
         + 0.1 * jax.random.normal(k_bhh, (1, 4 * hidden_size), jnp.float32))
    w_out = 0.1 * jax.random.normal(k_wo, (hidden_size, vocab_size), jnp.float32)
    b_out = 0.1 * jax.random.normal(k_bo, (1, vocab_size), jnp.float32)
    params = (emb_table, w_ih, w_hh, b, w_out, b_out)

    features = jax.random.normal(k_feat, (batch, embed_size), jnp.float32)
    captions = jax.random.randint(k_cap, (batch, seq_len), 0, vocab_size, jnp.int32)

    out = jax.block_until_ready(decoder_forward(features, captions, params))
    ref = jax.block_until_ready(reference_forward(features, captions, params))

    assert out.shape == (batch, seq_len + 1, vocab_size)
    assert jnp.allclose(out, ref, atol=1e-4, rtol=1e-4), \
        float(jnp.max(jnp.abs(out - ref)))
    print("KERNEL_OK")
</pallas_src>

<mosaic_0001>
module attributes {stable_mosaic.version = 11 : i64} {
  func.func @lstm_chunk_kernel(%arg0: i32, %arg1: memref<8x8x128xf32, #tpu.memory_space<vmem>>, %arg2: memref<256x512xf32, #tpu.memory_space<vmem>>, %arg3: memref<1x512xf32, #tpu.memory_space<vmem>>, %arg4: memref<8x8x128xf32, #tpu.memory_space<vmem>>, %arg5: memref<8x128xf32, #tpu.memory_space<vmem>>, %arg6: memref<8x128xf32, #tpu.memory_space<vmem>>, %arg7: memref<8x256xf32, #tpu.memory_space<vmem>>) attributes {dimension_semantics = [#tpu.dimension_semantics<arbitrary>], iteration_bounds = array<i64: 2>, scalar_prefetch = 0 : i64, scratch_operands = 3 : i64, tpu.core_type = #tpu.core_type<tc>, window_params = [{transform_indices = @transform_0, window_bounds = array<i64: 8, 8, 128>}, {pipeline_mode = #tpu.pipeline_mode<synchronous>, transform_indices = @transform_1, window_bounds = array<i64: 256, 512>}, {pipeline_mode = #tpu.pipeline_mode<synchronous>, transform_indices = @transform_2, window_bounds = array<i64: 1, 512>}, {transform_indices = @transform_3, window_bounds = array<i64: 8, 8, 128>}]} {
    %c0_i32 = arith.constant 0 : i32
    %0 = arith.cmpi eq, %arg0, %c0_i32 : i32
    %1 = arith.extui %0 : i1 to i32
    %c0_i32_0 = arith.constant 0 : i32
    %2 = arith.cmpi ne, %1, %c0_i32_0 : i32
    scf.if %2 {
      %cst_207 = arith.constant 0.000000e+00 : f32
      %355 = vector.broadcast %cst_207 : f32 to vector<8x128xf32>
      %c0_208 = arith.constant 0 : index
      %c0_209 = arith.constant 0 : index
      %356 = vector.load %arg5[%c0_208, %c0_209] : memref<8x128xf32, #tpu.memory_space<vmem>>, vector<8x128xf32>
      tpu.vector_store %arg5[%c0_208, %c0_209], %355 {strides = array<i32>} : memref<8x128xf32, #tpu.memory_space<vmem>>, vector<8x128xf32>,
      %cst_210 = arith.constant 0.000000e+00 : f32
      %357 = vector.broadcast %cst_210 : f32 to vector<8x128xf32>
      %c0_211 = arith.constant 0 : index
      %c0_212 = arith.constant 0 : index
      %358 = vector.load %arg6[%c0_211, %c0_212] : memref<8x128xf32, #tpu.memory_space<vmem>>, vector<8x128xf32>
      tpu.vector_store %arg6[%c0_211, %c0_212], %357 {strides = array<i32>} : memref<8x128xf32, #tpu.memory_space<vmem>>, vector<8x128xf32>,
    } else {
    }
    %c0_i32_1 = arith.constant 0 : i32
    %3 = arith.index_cast %c0_i32_1 : i32 to index
    %c0 = arith.constant 0 : index
    %c0_2 = arith.constant 0 : index
    %4 = vector.load %arg1[%3, %c0, %c0_2] : memref<8x8x128xf32, #tpu.memory_space<vmem>>, vector<1x8x128xf32>
    %5 = vector.shape_cast %4 : vector<1x8x128xf32> to vector<8x128xf32>
    %c0_3 = arith.constant 0 : index
    %c0_4 = arith.constant 0 : index
    %6 = vector.load %arg7[%c0_3, %c0_4] : memref<8x256xf32, #tpu.memory_space<vmem>>, vector<8x128xf32>
    tpu.vector_store %arg7[%c0_3, %c0_4], %5 {strides = array<i32>} : memref<8x256xf32, #tpu.memory_space<vmem>>, vector<8x128xf32>,
    %c0_5 = arith.constant 0 : index
    %c0_6 = arith.constant 0 : index
    %7 = vector.load %arg5[%c0_5, %c0_6] : memref<8x128xf32, #tpu.memory_space<vmem>>, vector<8x128xf32>
    %c0_7 = arith.constant 0 : index
    %c128 = arith.constant 128 : index
    %8 = vector.load %arg7[%c0_7, %c128] : memref<8x256xf32, #tpu.memory_space<vmem>>, vector<8x128xf32>
    tpu.vector_store %arg7[%c0_7, %c128], %7 {strides = array<i32>} : memref<8x256xf32, #tpu.memory_space<vmem>>, vector<8x128xf32>,
    %c0_8 = arith.constant 0 : index
    %c0_9 = arith.constant 0 : index
    %9 = vector.load %arg7[%c0_8, %c0_9] : memref<8x256xf32, #tpu.memory_space<vmem>>, vector<8x256xf32>
    %c0_10 = arith.constant 0 : index
    %c0_11 = arith.constant 0 : index
    %10 = vector.load %arg2[%c0_10, %c0_11] : memref<256x512xf32, #tpu.memory_space<vmem>>, vector<256x512xf32>
    %cst = arith.constant dense<0.000000e+00> : vector<8x512xf32>
    %11 = tpu.matmul %9, %10, %cst {dimension_numbers = #tpu.dot_dimension_numbers<[1], [0], [0], [1], [0, 0, 1, 1], [], []>} : vector<8x256xf32>, vector<256x512xf32>, vector<8x512xf32> -> vector<8x512xf32>
    %c0_12 = arith.constant 0 : index
    %c0_13 = arith.constant 0 : index
    %12 = vector.load %arg3[%c0_12, %c0_13] : memref<1x512xf32, #tpu.memory_space<vmem>>, vector<1x512xf32>
    %13 = vector.broadcast %12 : vector<1x512xf32> to vector<8x512xf32>
    %14 = arith.addf %11, %13 : vector<8x512xf32>
    %15 = vector.extract_strided_slice %14 {offsets = [0, 0], sizes = [8, 128], strides = [1, 1]} : vector<8x512xf32> to vector<8x128xf32>
    %16 = arith.negf %15 : vector<8x128xf32>
    %17 = math.exp %16 : vector<8x128xf32>
    %cst_14 = arith.constant 1.000000e+00 : f32
    %18 = vector.broadcast %cst_14 : f32 to vector<8x128xf32>
    %19 = arith.addf %18, %17 : vector<8x128xf32>
    %20 = arith.divf %18, %19 : vector<8x128xf32>
    %21 = vector.extract_strided_slice %14 {offsets = [0, 128], sizes = [8, 128], strides = [1, 1]} : vector<8x512xf32> to vector<8x128xf32>
    %22 = arith.negf %21 : vector<8x128xf32>
    %23 = math.exp %22 : vector<8x128xf32>
    %cst_15 = arith.constant 1.000000e+00 : f32
    %24 = vector.broadcast %cst_15 : f32 to vector<8x128xf32>
    %25 = arith.addf %24, %23 : vector<8x128xf32>
    %26 = arith.divf %24, %25 : vector<8x128xf32>
    %27 = vector.extract_strided_slice %14 {offsets = [0, 256], sizes = [8, 128], strides = [1, 1]} : vector<8x512xf32> to vector<8x128xf32>
    %28 = math.tanh %27 : vector<8x128xf32>
    %29 = vector.extract_strided_slice %14 {offsets = [0, 384], sizes = [8, 128], strides = [1, 1]} : vector<8x512xf32> to vector<8x128xf32>
    %30 = arith.negf %29 : vector<8x128xf32>
    %31 = math.exp %30 : vector<8x128xf32>
    %cst_16 = arith.constant 1.000000e+00 : f32
    %32 = vector.broadcast %cst_16 : f32 to vector<8x128xf32>
    %33 = arith.addf %32, %31 : vector<8x128xf32>
    %34 = arith.divf %32, %33 : vector<8x128xf32>
    %c0_17 = arith.constant 0 : index
    %c0_18 = arith.constant 0 : index
    %35 = vector.load %arg6[%c0_17, %c0_18] : memref<8x128xf32, #tpu.memory_space<vmem>>, vector<8x128xf32>
    %36 = arith.mulf %26, %35 : vector<8x128xf32>
    %37 = arith.mulf %20, %28 : vector<8x128xf32>
    %38 = arith.addf %36, %37 : vector<8x128xf32>
    %39 = math.tanh %38 : vector<8x128xf32>
    %40 = arith.mulf %34, %39 : vector<8x128xf32>
    %c0_19 = arith.constant 0 : index
    %c0_20 = arith.constant 0 : index
    %41 = vector.load %arg6[%c0_19, %c0_20] : memref<8x128xf32, #tpu.memory_space<vmem>>, vector<8x128xf32>
    tpu.vector_store %arg6[%c0_19, %c0_20], %38 {strides = array<i32>} : memref<8x128xf32, #tpu.memory_space<vmem>>, vector<8x128xf32>,
    %c0_21 = arith.constant 0 : index
    %c0_22 = arith.constant 0 : index
    %42 = vector.load %arg5[%c0_21, %c0_22] : memref<8x128xf32, #tpu.memory_space<vmem>>, vector<8x128xf32>
    tpu.vector_store %arg5[%c0_21, %c0_22], %40 {strides = array<i32>} : memref<8x128xf32, #tpu.memory_space<vmem>>, vector<8x128xf32>,
    %43 = arith.index_cast %c0_i32_1 : i32 to index
    %c0_23 = arith.constant 0 : index
    %c0_24 = arith.constant 0 : index
    %44 = vector.load %arg4[%43, %c0_23, %c0_24] : memref<8x8x128xf32, #tpu.memory_space<vmem>>, vector<1x8x128xf32>
    %45 = vector.shape_cast %44 : vector<1x8x128xf32> to vector<8x128xf32>
    %46 = vector.shape_cast %40 : vector<8x128xf32> to vector<1x8x128xf32>
    tpu.vector_store %arg4[%43, %c0_23, %c0_24], %46 {strides = array<i32>} : memref<8x8x128xf32, #tpu.memory_space<vmem>>, vector<1x8x128xf32>,
    %c1_i32 = arith.constant 1 : i32
    %47 = arith.index_cast %c1_i32 : i32 to index
    %c0_25 = arith.constant 0 : index
    %c0_26 = arith.constant 0 : index
    %48 = vector.load %arg1[%47, %c0_25, %c0_26] : memref<8x8x128xf32, #tpu.memory_space<vmem>>, vector<1x8x128xf32>
    %49 = vector.shape_cast %48 : vector<1x8x128xf32> to vector<8x128xf32>
    %c0_27 = arith.constant 0 : index
    %c0_28 = arith.constant 0 : index
    %50 = vector.load %arg7[%c0_27, %c0_28] : memref<8x256xf32, #tpu.memory_space<vmem>>, vector<8x128xf32>
    tpu.vector_store %arg7[%c0_27, %c0_28], %49 {strides = array<i32>} : memref<8x256xf32, #tpu.memory_space<vmem>>, vector<8x128xf32>,
    %c0_29 = arith.constant 0 : index
    %c0_30 = arith.constant 0 : index
    %51 = vector.load %arg5[%c0_29, %c0_30] : memref<8x128xf32, #tpu.memory_space<vmem>>, vector<8x128xf32>
    %c0_31 = arith.constant 0 : index
    %c128_32 = arith.constant 128 : index
    %52 = vector.load %arg7[%c0_31, %c128_32] : memref<8x256xf32, #tpu.memory_space<vmem>>, vector<8x128xf32>
    tpu.vector_store %arg7[%c0_31, %c128_32], %51 {strides = array<i32>} : memref<8x256xf32, #tpu.memory_space<vmem>>, vector<8x128xf32>,
    %c0_33 = arith.constant 0 : index
    %c0_34 = arith.constant 0 : index
    %53 = vector.load %arg7[%c0_33, %c0_34] : memref<8x256xf32, #tpu.memory_space<vmem>>, vector<8x256xf32>
    %c0_35 = arith.constant 0 : index
    %c0_36 = arith.constant 0 : index
    %54 = vector.load %arg2[%c0_35, %c0_36] : memref<256x512xf32, #tpu.memory_space<vmem>>, vector<256x512xf32>
    %cst_37 = arith.constant dense<0.000000e+00> : vector<8x512xf32>
    %55 = tpu.matmul %53, %54, %cst_37 {dimension_numbers = #tpu.dot_dimension_numbers<[1], [0], [0], [1], [0, 0, 1, 1], [], []>} : vector<8x256xf32>, vector<256x512xf32>, vector<8x512xf32> -> vector<8x512xf32>
    %c0_38 = arith.constant 0 : index
    %c0_39 = arith.constant 0 : index
    %56 = vector.load %arg3[%c0_38, %c0_39] : memref<1x512xf32, #tpu.memory_space<vmem>>, vector<1x512xf32>
    %57 = vector.broadcast %56 : vector<1x512xf32> to vector<8x512xf32>
    %58 = arith.addf %55, %57 : vector<8x512xf32>
    %59 = vector.extract_strided_slice %58 {offsets = [0, 0], sizes = [8, 128], strides = [1, 1]} : vector<8x512xf32> to vector<8x128xf32>
    %60 = arith.negf %59 : vector<8x128xf32>
    %61 = math.exp %60 : vector<8x128xf32>
    %cst_40 = arith.constant 1.000000e+00 : f32
    %62 = vector.broadcast %cst_40 : f32 to vector<8x128xf32>
    %63 = arith.addf %62, %61 : vector<8x128xf32>
    %64 = arith.divf %62, %63 : vector<8x128xf32>
    %65 = vector.extract_strided_slice %58 {offsets = [0, 128], sizes = [8, 128], strides = [1, 1]} : vector<8x512xf32> to vector<8x128xf32>
    %66 = arith.negf %65 : vector<8x128xf32>
    %67 = math.exp %66 : vector<8x128xf32>
    %cst_41 = arith.constant 1.000000e+00 : f32
    %68 = vector.broadcast %cst_41 : f32 to vector<8x128xf32>
    %69 = arith.addf %68, %67 : vector<8x128xf32>
    %70 = arith.divf %68, %69 : vector<8x128xf32>
    %71 = vector.extract_strided_slice %58 {offsets = [0, 256], sizes = [8, 128], strides = [1, 1]} : vector<8x512xf32> to vector<8x128xf32>
    %72 = math.tanh %71 : vector<8x128xf32>
    %73 = vector.extract_strided_slice %58 {offsets = [0, 384], sizes = [8, 128], strides = [1, 1]} : vector<8x512xf32> to vector<8x128xf32>
    %74 = arith.negf %73 : vector<8x128xf32>
    %75 = math.exp %74 : vector<8x128xf32>
    %cst_42 = arith.constant 1.000000e+00 : f32
    %76 = vector.broadcast %cst_42 : f32 to vector<8x128xf32>
    %77 = arith.addf %76, %75 : vector<8x128xf32>
    %78 = arith.divf %76, %77 : vector<8x128xf32>
    %c0_43 = arith.constant 0 : index
    %c0_44 = arith.constant 0 : index
    %79 = vector.load %arg6[%c0_43, %c0_44] : memref<8x128xf32, #tpu.memory_space<vmem>>, vector<8x128xf32>
    %80 = arith.mulf %70, %79 : vector<8x128xf32>
    %81 = arith.mulf %64, %72 : vector<8x128xf32>
    %82 = arith.addf %80, %81 : vector<8x128xf32>
    %83 = math.tanh %82 : vector<8x128xf32>
    %84 = arith.mulf %78, %83 : vector<8x128xf32>
    %c0_45 = arith.constant 0 : index
    %c0_46 = arith.constant 0 : index
    %85 = vector.load %arg6[%c0_45, %c0_46] : memref<8x128xf32, #tpu.memory_space<vmem>>, vector<8x128xf32>
    tpu.vector_store %arg6[%c0_45, %c0_46], %82 {strides = array<i32>} : memref<8x128xf32, #tpu.memory_space<vmem>>, vector<8x128xf32>,
    %c0_47 = arith.constant 0 : index
    %c0_48 = arith.constant 0 : index
    %86 = vector.load %arg5[%c0_47, %c0_48] : memref<8x128xf32, #tpu.memory_space<vmem>>, vector<8x128xf32>
    tpu.vector_store %arg5[%c0_47, %c0_48], %84 {strides = array<i32>} : memref<8x128xf32, #tpu.memory_space<vmem>>, vector<8x128xf32>,
    %87 = arith.index_cast %c1_i32 : i32 to index
    %c0_49 = arith.constant 0 : index
    %c0_50 = arith.constant 0 : index
    %88 = vector.load %arg4[%87, %c0_49, %c0_50] : memref<8x8x128xf32, #tpu.memory_space<vmem>>, vector<1x8x128xf32>
    %89 = vector.shape_cast %88 : vector<1x8x128xf32> to vector<8x128xf32>
    %90 = vector.shape_cast %84 : vector<8x128xf32> to vector<1x8x128xf32>
    tpu.vector_store %arg4[%87, %c0_49, %c0_50], %90 {strides = array<i32>} : memref<8x8x128xf32, #tpu.memory_space<vmem>>, vector<1x8x128xf32>,
    %c2_i32 = arith.constant 2 : i32
    %91 = arith.index_cast %c2_i32 : i32 to index
    %c0_51 = arith.constant 0 : index
    %c0_52 = arith.constant 0 : index
    %92 = vector.load %arg1[%91, %c0_51, %c0_52] : memref<8x8x128xf32, #tpu.memory_space<vmem>>, vector<1x8x128xf32>
    %93 = vector.shape_cast %92 : vector<1x8x128xf32> to vector<8x128xf32>
    %c0_53 = arith.constant 0 : index
    %c0_54 = arith.constant 0 : index
    %94 = vector.load %arg7[%c0_53, %c0_54] : memref<8x256xf32, #tpu.memory_space<vmem>>, vector<8x128xf32>
    tpu.vector_store %arg7[%c0_53, %c0_54], %93 {strides = array<i32>} : memref<8x256xf32, #tpu.memory_space<vmem>>, vector<8x128xf32>,
    %c0_55 = arith.constant 0 : index
    %c0_56 = arith.constant 0 : index
    %95 = vector.load %arg5[%c0_55, %c0_56] : memref<8x128xf32, #tpu.memory_space<vmem>>, vector<8x128xf32>
    %c0_57 = arith.constant 0 : index
    %c128_58 = arith.constant 128 : index
    %96 = vector.load %arg7[%c0_57, %c128_58] : memref<8x256xf32, #tpu.memory_space<vmem>>, vector<8x128xf32>
    tpu.vector_store %arg7[%c0_57, %c128_58], %95 {strides = array<i32>} : memref<8x256xf32, #tpu.memory_space<vmem>>, vector<8x128xf32>,
    %c0_59 = arith.constant 0 : index
    %c0_60 = arith.constant 0 : index
    %97 = vector.load %arg7[%c0_59, %c0_60] : memref<8x256xf32, #tpu.memory_space<vmem>>, vector<8x256xf32>
    %c0_61 = arith.constant 0 : index
    %c0_62 = arith.constant 0 : index
    %98 = vector.load %arg2[%c0_61, %c0_62] : memref<256x512xf32, #tpu.memory_space<vmem>>, vector<256x512xf32>
    %cst_63 = arith.constant dense<0.000000e+00> : vector<8x512xf32>
    %99 = tpu.matmul %97, %98, %cst_63 {dimension_numbers = #tpu.dot_dimension_numbers<[1], [0], [0], [1], [0, 0, 1, 1], [], []>} : vector<8x256xf32>, vector<256x512xf32>, vector<8x512xf32> -> vector<8x512xf32>
    %c0_64 = arith.constant 0 : index
    %c0_65 = arith.constant 0 : index
    %100 = vector.load %arg3[%c0_64, %c0_65] : memref<1x512xf32, #tpu.memory_space<vmem>>, vector<1x512xf32>
    %101 = vector.broadcast %100 : vector<1x512xf32> to vector<8x512xf32>
    %102 = arith.addf %99, %101 : vector<8x512xf32>
    %103 = vector.extract_strided_slice %102 {offsets = [0, 0], sizes = [8, 128], strides = [1, 1]} : vector<8x512xf32> to vector<8x128xf32>
    %104 = arith.negf %103 : vector<8x128xf32>
    %105 = math.exp %104 : vector<8x128xf32>
    %cst_66 = arith.constant 1.000000e+00 : f32
    %106 = vector.broadcast %cst_66 : f32 to vector<8x128xf32>
    %107 = arith.addf %106, %105 : vector<8x128xf32>
    %108 = arith.divf %106, %107 : vector<8x128xf32>
    %109 = vector.extract_strided_slice %102 {offsets = [0, 128], sizes = [8, 128], strides = [1, 1]} : vector<8x512xf32> to vector<8x128xf32>
    %110 = arith.negf %109 : vector<8x128xf32>
    %111 = math.exp %110 : vector<8x128xf32>
    %cst_67 = arith.constant 1.000000e+00 : f32
    %112 = vector.broadcast %cst_67 : f32 to vector<8x128xf32>
    %113 = arith.addf %112, %111 : vector<8x128xf32>
    %114 = arith.divf %112, %113 : vector<8x128xf32>
    %115 = vector.extract_strided_slice %102 {offsets = [0, 256], sizes = [8, 128], strides = [1, 1]} : vector<8x512xf32> to vector<8x128xf32>
    %116 = math.tanh %115 : vector<8x128xf32>
    %117 = vector.extract_strided_slice %102 {offsets = [0, 384], sizes = [8, 128], strides = [1, 1]} : vector<8x512xf32> to vector<8x128xf32>
    %118 = arith.negf %117 : vector<8x128xf32>
    %119 = math.exp %118 : vector<8x128xf32>
    %cst_68 = arith.constant 1.000000e+00 : f32
    %120 = vector.broadcast %cst_68 : f32 to vector<8x128xf32>
    %121 = arith.addf %120, %119 : vector<8x128xf32>
    %122 = arith.divf %120, %121 : vector<8x128xf32>
    %c0_69 = arith.constant 0 : index
    %c0_70 = arith.constant 0 : index
    %123 = vector.load %arg6[%c0_69, %c0_70] : memref<8x128xf32, #tpu.memory_space<vmem>>, vector<8x128xf32>
    %124 = arith.mulf %114, %123 : vector<8x128xf32>
    %125 = arith.mulf %108, %116 : vector<8x128xf32>
    %126 = arith.addf %124, %125 : vector<8x128xf32>
    %127 = math.tanh %126 : vector<8x128xf32>
    %128 = arith.mulf %122, %127 : vector<8x128xf32>
    %c0_71 = arith.constant 0 : index
    %c0_72 = arith.constant 0 : index
    %129 = vector.load %arg6[%c0_71, %c0_72] : memref<8x128xf32, #tpu.memory_space<vmem>>, vector<8x128xf32>
    tpu.vector_store %arg6[%c0_71, %c0_72], %126 {strides = array<i32>} : memref<8x128xf32, #tpu.memory_space<vmem>>, vector<8x128xf32>,
    %c0_73 = arith.constant 0 : index
    %c0_74 = arith.constant 0 : index
    %130 = vector.load %arg5[%c0_73, %c0_74] : memref<8x128xf32, #tpu.memory_space<vmem>>, vector<8x128xf32>
    tpu.vector_store %arg5[%c0_73, %c0_74], %128 {strides = array<i32>} : memref<8x128xf32, #tpu.memory_space<vmem>>, vector<8x128xf32>,
    %131 = arith.index_cast %c2_i32 : i32 to index
    %c0_75 = arith.constant 0 : index
    %c0_76 = arith.constant 0 : index
    %132 = vector.load %arg4[%131, %c0_75, %c0_76] : memref<8x8x128xf32, #tpu.memory_space<vmem>>, vector<1x8x128xf32>
    %133 = vector.shape_cast %132 : vector<1x8x128xf32> to vector<8x128xf32>
    %134 = vector.shape_cast %128 : vector<8x128xf32> to vector<1x8x128xf32>
    tpu.vector_store %arg4[%131, %c0_75, %c0_76], %134 {strides = array<i32>} : memref<8x8x128xf32, #tpu.memory_space<vmem>>, vector<1x8x128xf32>,
    %c3_i32 = arith.constant 3 : i32
    %135 = arith.index_cast %c3_i32 : i32 to index
    %c0_77 = arith.constant 0 : index
    %c0_78 = arith.constant 0 : index
    %136 = vector.load %arg1[%135, %c0_77, %c0_78] : memref<8x8x128xf32, #tpu.memory_space<vmem>>, vector<1x8x128xf32>
    %137 = vector.shape_cast %136 : vector<1x8x128xf32> to vector<8x128xf32>
    %c0_79 = arith.constant 0 : index
    %c0_80 = arith.constant 0 : index
    %138 = vector.load %arg7[%c0_79, %c0_80] : memref<8x256xf32, #tpu.memory_space<vmem>>, vector<8x128xf32>
    tpu.vector_store %arg7[%c0_79, %c0_80], %137 {strides = array<i32>} : memref<8x256xf32, #tpu.memory_space<vmem>>, vector<8x128xf32>,
    %c0_81 = arith.constant 0 : index
    %c0_82 = arith.constant 0 : index
    %139 = vector.load %arg5[%c0_81, %c0_82] : memref<8x128xf32, #tpu.memory_space<vmem>>, vector<8x128xf32>
    %c0_83 = arith.constant 0 : index
    %c128_84 = arith.constant 128 : index
    %140 = vector.load %arg7[%c0_83, %c128_84] : memref<8x256xf32, #tpu.memory_space<vmem>>, vector<8x128xf32>
    tpu.vector_store %arg7[%c0_83, %c128_84], %139 {strides = array<i32>} : memref<8x256xf32, #tpu.memory_space<vmem>>, vector<8x128xf32>,
    %c0_85 = arith.constant 0 : index
    %c0_86 = arith.constant 0 : index
    %141 = vector.load %arg7[%c0_85, %c0_86] : memref<8x256xf32, #tpu.memory_space<vmem>>, vector<8x256xf32>
    %c0_87 = arith.constant 0 : index
    %c0_88 = arith.constant 0 : index
    %142 = vector.load %arg2[%c0_87, %c0_88] : memref<256x512xf32, #tpu.memory_space<vmem>>, vector<256x512xf32>
    %cst_89 = arith.constant dense<0.000000e+00> : vector<8x512xf32>
    %143 = tpu.matmul %141, %142, %cst_89 {dimension_numbers = #tpu.dot_dimension_numbers<[1], [0], [0], [1], [0, 0, 1, 1], [], []>} : vector<8x256xf32>, vector<256x512xf32>, vector<8x512xf32> -> vector<8x512xf32>
    %c0_90 = arith.constant 0 : index
    %c0_91 = arith.constant 0 : index
    %144 = vector.load %arg3[%c0_90, %c0_91] : memref<1x512xf32, #tpu.memory_space<vmem>>, vector<1x512xf32>
    %145 = vector.broadcast %144 : vector<1x512xf32> to vector<8x512xf32>
    %146 = arith.addf %143, %145 : vector<8x512xf32>
    %147 = vector.extract_strided_slice %146 {offsets = [0, 0], sizes = [8, 128], strides = [1, 1]} : vector<8x512xf32> to vector<8x128xf32>
    %148 = arith.negf %147 : vector<8x128xf32>
    %149 = math.exp %148 : vector<8x128xf32>
    %cst_92 = arith.constant 1.000000e+00 : f32
    %150 = vector.broadcast %cst_92 : f32 to vector<8x128xf32>
    %151 = arith.addf %150, %149 : vector<8x128xf32>
    %152 = arith.divf %150, %151 : vector<8x128xf32>
    %153 = vector.extract_strided_slice %146 {offsets = [0, 128], sizes = [8, 128], strides = [1, 1]} : vector<8x512xf32> to vector<8x128xf32>
    %154 = arith.negf %153 : vector<8x128xf32>
    %155 = math.exp %154 : vector<8x128xf32>
    %cst_93 = arith.constant 1.000000e+00 : f32
    %156 = vector.broadcast %cst_93 : f32 to vector<8x128xf32>
    %157 = arith.addf %156, %155 : vector<8x128xf32>
    %158 = arith.divf %156, %157 : vector<8x128xf32>
    %159 = vector.extract_strided_slice %146 {offsets = [0, 256], sizes = [8, 128], strides = [1, 1]} : vector<8x512xf32> to vector<8x128xf32>
    %160 = math.tanh %159 : vector<8x128xf32>
    %161 = vector.extract_strided_slice %146 {offsets = [0, 384], sizes = [8, 128], strides = [1, 1]} : vector<8x512xf32> to vector<8x128xf32>
    %162 = arith.negf %161 : vector<8x128xf32>
    %163 = math.exp %162 : vector<8x128xf32>
    %cst_94 = arith.constant 1.000000e+00 : f32
    %164 = vector.broadcast %cst_94 : f32 to vector<8x128xf32>
    %165 = arith.addf %164, %163 : vector<8x128xf32>
    %166 = arith.divf %164, %165 : vector<8x128xf32>
    %c0_95 = arith.constant 0 : index
    %c0_96 = arith.constant 0 : index
    %167 = vector.load %arg6[%c0_95, %c0_96] : memref<8x128xf32, #tpu.memory_space<vmem>>, vector<8x128xf32>
    %168 = arith.mulf %158, %167 : vector<8x128xf32>
    %169 = arith.mulf %152, %160 : vector<8x128xf32>
    %170 = arith.addf %168, %169 : vector<8x128xf32>
    %171 = math.tanh %170 : vector<8x128xf32>
    %172 = arith.mulf %166, %171 : vector<8x128xf32>
    %c0_97 = arith.constant 0 : index
    %c0_98 = arith.constant 0 : index
    %173 = vector.load %arg6[%c0_97, %c0_98] : memref<8x128xf32, #tpu.memory_space<vmem>>, vector<8x128xf32>
    tpu.vector_store %arg6[%c0_97, %c0_98], %170 {strides = array<i32>} : memref<8x128xf32, #tpu.memory_space<vmem>>, vector<8x128xf32>,
    %c0_99 = arith.constant 0 : index
    %c0_100 = arith.constant 0 : index
    %174 = vector.load %arg5[%c0_99, %c0_100] : memref<8x128xf32, #tpu.memory_space<vmem>>, vector<8x128xf32>
    tpu.vector_store %arg5[%c0_99, %c0_100], %172 {strides = array<i32>} : memref<8x128xf32, #tpu.memory_space<vmem>>, vector<8x128xf32>,
    %175 = arith.index_cast %c3_i32 : i32 to index
    %c0_101 = arith.constant 0 : index
    %c0_102 = arith.constant 0 : index
    %176 = vector.load %arg4[%175, %c0_101, %c0_102] : memref<8x8x128xf32, #tpu.memory_space<vmem>>, vector<1x8x128xf32>
    %177 = vector.shape_cast %176 : vector<1x8x128xf32> to vector<8x128xf32>
    %178 = vector.shape_cast %172 : vector<8x128xf32> to vector<1x8x128xf32>
    tpu.vector_store %arg4[%175, %c0_101, %c0_102], %178 {strides = array<i32>} : memref<8x8x128xf32, #tpu.memory_space<vmem>>, vector<1x8x128xf32>,
    %c4_i32 = arith.constant 4 : i32
    %179 = arith.index_cast %c4_i32 : i32 to index
    %c0_103 = arith.constant 0 : index
    %c0_104 = arith.constant 0 : index
    %180 = vector.load %arg1[%179, %c0_103, %c0_104] : memref<8x8x128xf32, #tpu.memory_space<vmem>>, vector<1x8x128xf32>
    %181 = vector.shape_cast %180 : vector<1x8x128xf32> to vector<8x128xf32>
    %c0_105 = arith.constant 0 : index
    %c0_106 = arith.constant 0 : index
    %182 = vector.load %arg7[%c0_105, %c0_106] : memref<8x256xf32, #tpu.memory_space<vmem>>, vector<8x128xf32>
    tpu.vector_store %arg7[%c0_105, %c0_106], %181 {strides = array<i32>} : memref<8x256xf32, #tpu.memory_space<vmem>>, vector<8x128xf32>,
    %c0_107 = arith.constant 0 : index
    %c0_108 = arith.constant 0 : index
    %183 = vector.load %arg5[%c0_107, %c0_108] : memref<8x128xf32, #tpu.memory_space<vmem>>, vector<8x128xf32>
    %c0_109 = arith.constant 0 : index
    %c128_110 = arith.constant 128 : index
    %184 = vector.load %arg7[%c0_109, %c128_110] : memref<8x256xf32, #tpu.memory_space<vmem>>, vector<8x128xf32>
    tpu.vector_store %arg7[%c0_109, %c128_110], %183 {strides = array<i32>} : memref<8x256xf32, #tpu.memory_space<vmem>>, vector<8x128xf32>,
    %c0_111 = arith.constant 0 : index
    %c0_112 = arith.constant 0 : index
    %185 = vector.load %arg7[%c0_111, %c0_112] : memref<8x256xf32, #tpu.memory_space<vmem>>, vector<8x256xf32>
    %c0_113 = arith.constant 0 : index
    %c0_114 = arith.constant 0 : index
    %186 = vector.load %arg2[%c0_113, %c0_114] : memref<256x512xf32, #tpu.memory_space<vmem>>, vector<256x512xf32>
    %cst_115 = arith.constant dense<0.000000e+00> : vector<8x512xf32>
    %187 = tpu.matmul %185, %186, %cst_115 {dimension_numbers = #tpu.dot_dimension_numbers<[1], [0], [0], [1], [0, 0, 1, 1], [], []>} : vector<8x256xf32>, vector<256x512xf32>, vector<8x512xf32> -> vector<8x512xf32>
    %c0_116 = arith.constant 0 : index
    %c0_117 = arith.constant 0 : index
    %188 = vector.load %arg3[%c0_116, %c0_117] : memref<1x512xf32, #tpu.memory_space<vmem>>, vector<1x512xf32>
    %189 = vector.broadcast %188 : vector<1x512xf32> to vector<8x512xf32>
    %190 = arith.addf %187, %189 : vector<8x512xf32>
    %191 = vector.extract_strided_slice %190 {offsets = [0, 0], sizes = [8, 128], strides = [1, 1]} : vector<8x512xf32> to vector<8x128xf32>
    %192 = arith.negf %191 : vector<8x128xf32>
    %193 = math.exp %192 : vector<8x128xf32>
    %cst_118 = arith.constant 1.000000e+00 : f32
    %194 = vector.broadcast %cst_118 : f32 to vector<8x128xf32>
    %195 = arith.addf %194, %193 : vector<8x128xf32>
    %196 = arith.divf %194, %195 : vector<8x128xf32>
    %197 = vector.extract_strided_slice %190 {offsets = [0, 128], sizes = [8, 128], strides = [1, 1]} : vector<8x512xf32> to vector<8x128xf32>
    %198 = arith.negf %197 : vector<8x128xf32>
    %199 = math.exp %198 : vector<8x128xf32>
    %cst_119 = arith.constant 1.000000e+00 : f32
    %200 = vector.broadcast %cst_119 : f32 to vector<8x128xf32>
    %201 = arith.addf %200, %199 : vector<8x128xf32>
    %202 = arith.divf %200, %201 : vector<8x128xf32>
    %203 = vector.extract_strided_slice %190 {offsets = [0, 256], sizes = [8, 128], strides = [1, 1]} : vector<8x512xf32> to vector<8x128xf32>
    %204 = math.tanh %203 : vector<8x128xf32>
    %205 = vector.extract_strided_slice %190 {offsets = [0, 384], sizes = [8, 128], strides = [1, 1]} : vector<8x512xf32> to vector<8x128xf32>
    %206 = arith.negf %205 : vector<8x128xf32>
    %207 = math.exp %206 : vector<8x128xf32>
    %cst_120 = arith.constant 1.000000e+00 : f32
    %208 = vector.broadcast %cst_120 : f32 to vector<8x128xf32>
    %209 = arith.addf %208, %207 : vector<8x128xf32>
    %210 = arith.divf %208, %209 : vector<8x128xf32>
    %c0_121 = arith.constant 0 : index
    %c0_122 = arith.constant 0 : index
    %211 = vector.load %arg6[%c0_121, %c0_122] : memref<8x128xf32, #tpu.memory_space<vmem>>, vector<8x128xf32>
    %212 = arith.mulf %202, %211 : vector<8x128xf32>
    %213 = arith.mulf %196, %204 : vector<8x128xf32>
    %214 = arith.addf %212, %213 : vector<8x128xf32>
    %215 = math.tanh %214 : vector<8x128xf32>
    %216 = arith.mulf %210, %215 : vector<8x128xf32>
    %c0_123 = arith.constant 0 : index
    %c0_124 = arith.constant 0 : index
    %217 = vector.load %arg6[%c0_123, %c0_124] : memref<8x128xf32, #tpu.memory_space<vmem>>, vector<8x128xf32>
    tpu.vector_store %arg6[%c0_123, %c0_124], %214 {strides = array<i32>} : memref<8x128xf32, #tpu.memory_space<vmem>>, vector<8x128xf32>,
    %c0_125 = arith.constant 0 : index
    %c0_126 = arith.constant 0 : index
    %218 = vector.load %arg5[%c0_125, %c0_126] : memref<8x128xf32, #tpu.memory_space<vmem>>, vector<8x128xf32>
    tpu.vector_store %arg5[%c0_125, %c0_126], %216 {strides = array<i32>} : memref<8x128xf32, #tpu.memory_space<vmem>>, vector<8x128xf32>,
    %219 = arith.index_cast %c4_i32 : i32 to index
    %c0_127 = arith.constant 0 : index
    %c0_128 = arith.constant 0 : index
    %220 = vector.load %arg4[%219, %c0_127, %c0_128] : memref<8x8x128xf32, #tpu.memory_space<vmem>>, vector<1x8x128xf32>
    %221 = vector.shape_cast %220 : vector<1x8x128xf32> to vector<8x128xf32>
    %222 = vector.shape_cast %216 : vector<8x128xf32> to vector<1x8x128xf32>
    tpu.vector_store %arg4[%219, %c0_127, %c0_128], %222 {strides = array<i32>} : memref<8x8x128xf32, #tpu.memory_space<vmem>>, vector<1x8x128xf32>,
    %c5_i32 = arith.constant 5 : i32
    %223 = arith.index_cast %c5_i32 : i32 to index
    %c0_129 = arith.constant 0 : index
    %c0_130 = arith.constant 0 : index
    %224 = vector.load %arg1[%223, %c0_129, %c0_130] : memref<8x8x128xf32, #tpu.memory_space<vmem>>, vector<1x8x128xf32>
    %225 = vector.shape_cast %224 : vector<1x8x128xf32> to vector<8x128xf32>
    %c0_131 = arith.constant 0 : index
    %c0_132 = arith.constant 0 : index
    %226 = vector.load %arg7[%c0_131, %c0_132] : memref<8x256xf32, #tpu.memory_space<vmem>>, vector<8x128xf32>
    tpu.vector_store %arg7[%c0_131, %c0_132], %225 {strides = array<i32>} : memref<8x256xf32, #tpu.memory_space<vmem>>, vector<8x128xf32>,
    %c0_133 = arith.constant 0 : index
    %c0_134 = arith.constant 0 : index
    %227 = vector.load %arg5[%c0_133, %c0_134] : memref<8x128xf32, #tpu.memory_space<vmem>>, vector<8x128xf32>
    %c0_135 = arith.constant 0 : index
    %c128_136 = arith.constant 128 : index
    %228 = vector.load %arg7[%c0_135, %c128_136] : memref<8x256xf32, #tpu.memory_space<vmem>>, vector<8x128xf32>
    tpu.vector_store %arg7[%c0_135, %c128_136], %227 {strides = array<i32>} : memref<8x256xf32, #tpu.memory_space<vmem>>, vector<8x128xf32>,
    %c0_137 = arith.constant 0 : index
    %c0_138 = arith.constant 0 : index
    %229 = vector.load %arg7[%c0_137, %c0_138] : memref<8x256xf32, #tpu.memory_space<vmem>>, vector<8x256xf32>
    %c0_139 = arith.constant 0 : index
    %c0_140 = arith.constant 0 : index
    %230 = vector.load %arg2[%c0_139, %c0_140] : memref<256x512xf32, #tpu.memory_space<vmem>>, vector<256x512xf32>
    %cst_141 = arith.constant dense<0.000000e+00> : vector<8x512xf32>
    %231 = tpu.matmul %229, %230, %cst_141 {dimension_numbers = #tpu.dot_dimension_numbers<[1], [0], [0], [1], [0, 0, 1, 1], [], []>} : vector<8x256xf32>, vector<256x512xf32>, vector<8x512xf32> -> vector<8x512xf32>
    %c0_142 = arith.constant 0 : index
    %c0_143 = arith.constant 0 : index
    %232 = vector.load %arg3[%c0_142, %c0_143] : memref<1x512xf32, #tpu.memory_space<vmem>>, vector<1x512xf32>
    %233 = vector.broadcast %232 : vector<1x512xf32> to vector<8x512xf32>
    %234 = arith.addf %231, %233 : vector<8x512xf32>
    %235 = vector.extract_strided_slice %234 {offsets = [0, 0], sizes = [8, 128], strides = [1, 1]} : vector<8x512xf32> to vector<8x128xf32>
    %236 = arith.negf %235 : vector<8x128xf32>
    %237 = math.exp %236 : vector<8x128xf32>
    %cst_144 = arith.constant 1.000000e+00 : f32
    %238 = vector.broadcast %cst_144 : f32 to vector<8x128xf32>
    %239 = arith.addf %238, %237 : vector<8x128xf32>
    %240 = arith.divf %238, %239 : vector<8x128xf32>
    %241 = vector.extract_strided_slice %234 {offsets = [0, 128], sizes = [8, 128], strides = [1, 1]} : vector<8x512xf32> to vector<8x128xf32>
    %242 = arith.negf %241 : vector<8x128xf32>
    %243 = math.exp %242 : vector<8x128xf32>
    %cst_145 = arith.constant 1.000000e+00 : f32
    %244 = vector.broadcast %cst_145 : f32 to vector<8x128xf32>
    %245 = arith.addf %244, %243 : vector<8x128xf32>
    %246 = arith.divf %244, %245 : vector<8x128xf32>
    %247 = vector.extract_strided_slice %234 {offsets = [0, 256], sizes = [8, 128], strides = [1, 1]} : vector<8x512xf32> to vector<8x128xf32>
    %248 = math.tanh %247 : vector<8x128xf32>
    %249 = vector.extract_strided_slice %234 {offsets = [0, 384], sizes = [8, 128], strides = [1, 1]} : vector<8x512xf32> to vector<8x128xf32>
    %250 = arith.negf %249 : vector<8x128xf32>
    %251 = math.exp %250 : vector<8x128xf32>
    %cst_146 = arith.constant 1.000000e+00 : f32
    %252 = vector.broadcast %cst_146 : f32 to vector<8x128xf32>
    %253 = arith.addf %252, %251 : vector<8x128xf32>
    %254 = arith.divf %252, %253 : vector<8x128xf32>
    %c0_147 = arith.constant 0 : index
    %c0_148 = arith.constant 0 : index
    %255 = vector.load %arg6[%c0_147, %c0_148] : memref<8x128xf32, #tpu.memory_space<vmem>>, vector<8x128xf32>
    %256 = arith.mulf %246, %255 : vector<8x128xf32>
    %257 = arith.mulf %240, %248 : vector<8x128xf32>
    %258 = arith.addf %256, %257 : vector<8x128xf32>
    %259 = math.tanh %258 : vector<8x128xf32>
    %260 = arith.mulf %254, %259 : vector<8x128xf32>
    %c0_149 = arith.constant 0 : index
    %c0_150 = arith.constant 0 : index
    %261 = vector.load %arg6[%c0_149, %c0_150] : memref<8x128xf32, #tpu.memory_space<vmem>>, vector<8x128xf32>
    tpu.vector_store %arg6[%c0_149, %c0_150], %258 {strides = array<i32>} : memref<8x128xf32, #tpu.memory_space<vmem>>, vector<8x128xf32>,
    %c0_151 = arith.constant 0 : index
    %c0_152 = arith.constant 0 : index
    %262 = vector.load %arg5[%c0_151, %c0_152] : memref<8x128xf32, #tpu.memory_space<vmem>>, vector<8x128xf32>
    tpu.vector_store %arg5[%c0_151, %c0_152], %260 {strides = array<i32>} : memref<8x128xf32, #tpu.memory_space<vmem>>, vector<8x128xf32>,
    %263 = arith.index_cast %c5_i32 : i32 to index
    %c0_153 = arith.constant 0 : index
    %c0_154 = arith.constant 0 : index
    %264 = vector.load %arg4[%263, %c0_153, %c0_154] : memref<8x8x128xf32, #tpu.memory_space<vmem>>, vector<1x8x128xf32>
    %265 = vector.shape_cast %264 : vector<1x8x128xf32> to vector<8x128xf32>
    %266 = vector.shape_cast %260 : vector<8x128xf32> to vector<1x8x128xf32>
    tpu.vector_store %arg4[%263, %c0_153, %c0_154], %266 {strides = array<i32>} : memref<8x8x128xf32, #tpu.memory_space<vmem>>, vector<1x8x128xf32>,
    %c6_i32 = arith.constant 6 : i32
    %267 = arith.index_cast %c6_i32 : i32 to index
    %c0_155 = arith.constant 0 : index
    %c0_156 = arith.constant 0 : index
    %268 = vector.load %arg1[%267, %c0_155, %c0_156] : memref<8x8x128xf32, #tpu.memory_space<vmem>>, vector<1x8x128xf32>
    %269 = vector.shape_cast %268 : vector<1x8x128xf32> to vector<8x128xf32>
    %c0_157 = arith.constant 0 : index
    %c0_158 = arith.constant 0 : index
    %270 = vector.load %arg7[%c0_157, %c0_158] : memref<8x256xf32, #tpu.memory_space<vmem>>, vector<8x128xf32>
    tpu.vector_store %arg7[%c0_157, %c0_158], %269 {strides = array<i32>} : memref<8x256xf32, #tpu.memory_space<vmem>>, vector<8x128xf32>,
    %c0_159 = arith.constant 0 : index
    %c0_160 = arith.constant 0 : index
    %271 = vector.load %arg5[%c0_159, %c0_160] : memref<8x128xf32, #tpu.memory_space<vmem>>, vector<8x128xf32>
    %c0_161 = arith.constant 0 : index
    %c128_162 = arith.constant 128 : index
    %272 = vector.load %arg7[%c0_161, %c128_162] : memref<8x256xf32, #tpu.memory_space<vmem>>, vector<8x128xf32>
    tpu.vector_store %arg7[%c0_161, %c128_162], %271 {strides = array<i32>} : memref<8x256xf32, #tpu.memory_space<vmem>>, vector<8x128xf32>,
    %c0_163 = arith.constant 0 : index
    %c0_164 = arith.constant 0 : index
    %273 = vector.load %arg7[%c0_163, %c0_164] : memref<8x256xf32, #tpu.memory_space<vmem>>, vector<8x256xf32>
    %c0_165 = arith.constant 0 : index
    %c0_166 = arith.constant 0 : index
    %274 = vector.load %arg2[%c0_165, %c0_166] : memref<256x512xf32, #tpu.memory_space<vmem>>, vector<256x512xf32>
    %cst_167 = arith.constant dense<0.000000e+00> : vector<8x512xf32>
    %275 = tpu.matmul %273, %274, %cst_167 {dimension_numbers = #tpu.dot_dimension_numbers<[1], [0], [0], [1], [0, 0, 1, 1], [], []>} : vector<8x256xf32>, vector<256x512xf32>, vector<8x512xf32> -> vector<8x512xf32>
    %c0_168 = arith.constant 0 : index
    %c0_169 = arith.constant 0 : index
    %276 = vector.load %arg3[%c0_168, %c0_169] : memref<1x512xf32, #tpu.memory_space<vmem>>, vector<1x512xf32>
    %277 = vector.broadcast %276 : vector<1x512xf32> to vector<8x512xf32>
    %278 = arith.addf %275, %277 : vector<8x512xf32>
    %279 = vector.extract_strided_slice %278 {offsets = [0, 0], sizes = [8, 128], strides = [1, 1]} : vector<8x512xf32> to vector<8x128xf32>
    %280 = arith.negf %279 : vector<8x128xf32>
    %281 = math.exp %280 : vector<8x128xf32>
    %cst_170 = arith.constant 1.000000e+00 : f32
    %282 = vector.broadcast %cst_170 : f32 to vector<8x128xf32>
    %283 = arith.addf %282, %281 : vector<8x128xf32>
    %284 = arith.divf %282, %283 : vector<8x128xf32>
    %285 = vector.extract_strided_slice %278 {offsets = [0, 128], sizes = [8, 128], strides = [1, 1]} : vector<8x512xf32> to vector<8x128xf32>
    %286 = arith.negf %285 : vector<8x128xf32>
    %287 = math.exp %286 : vector<8x128xf32>
    %cst_171 = arith.constant 1.000000e+00 : f32
    %288 = vector.broadcast %cst_171 : f32 to vector<8x128xf32>
    %289 = arith.addf %288, %287 : vector<8x128xf32>
    %290 = arith.divf %288, %289 : vector<8x128xf32>
    %291 = vector.extract_strided_slice %278 {offsets = [0, 256], sizes = [8, 128], strides = [1, 1]} : vector<8x512xf32> to vector<8x128xf32>
    %292 = math.tanh %291 : vector<8x128xf32>
    %293 = vector.extract_strided_slice %278 {offsets = [0, 384], sizes = [8, 128], strides = [1, 1]} : vector<8x512xf32> to vector<8x128xf32>
    %294 = arith.negf %293 : vector<8x128xf32>
    %295 = math.exp %294 : vector<8x128xf32>
    %cst_172 = arith.constant 1.000000e+00 : f32
    %296 = vector.broadcast %cst_172 : f32 to vector<8x128xf32>
    %297 = arith.addf %296, %295 : vector<8x128xf32>
    %298 = arith.divf %296, %297 : vector<8x128xf32>
    %c0_173 = arith.constant 0 : index
    %c0_174 = arith.constant 0 : index
    %299 = vector.load %arg6[%c0_173, %c0_174] : memref<8x128xf32, #tpu.memory_space<vmem>>, vector<8x128xf32>
    %300 = arith.mulf %290, %299 : vector<8x128xf32>
    %301 = arith.mulf %284, %292 : vector<8x128xf32>
    %302 = arith.addf %300, %301 : vector<8x128xf32>
    %303 = math.tanh %302 : vector<8x128xf32>
    %304 = arith.mulf %298, %303 : vector<8x128xf32>
    %c0_175 = arith.constant 0 : index
    %c0_176 = arith.constant 0 : index
    %305 = vector.load %arg6[%c0_175, %c0_176] : memref<8x128xf32, #tpu.memory_space<vmem>>, vector<8x128xf32>
    tpu.vector_store %arg6[%c0_175, %c0_176], %302 {strides = array<i32>} : memref<8x128xf32, #tpu.memory_space<vmem>>, vector<8x128xf32>,
    %c0_177 = arith.constant 0 : index
    %c0_178 = arith.constant 0 : index
    %306 = vector.load %arg5[%c0_177, %c0_178] : memref<8x128xf32, #tpu.memory_space<vmem>>, vector<8x128xf32>
    tpu.vector_store %arg5[%c0_177, %c0_178], %304 {strides = array<i32>} : memref<8x128xf32, #tpu.memory_space<vmem>>, vector<8x128xf32>,
    %307 = arith.index_cast %c6_i32 : i32 to index
    %c0_179 = arith.constant 0 : index
    %c0_180 = arith.constant 0 : index
    %308 = vector.load %arg4[%307, %c0_179, %c0_180] : memref<8x8x128xf32, #tpu.memory_space<vmem>>, vector<1x8x128xf32>
    %309 = vector.shape_cast %308 : vector<1x8x128xf32> to vector<8x128xf32>
    %310 = vector.shape_cast %304 : vector<8x128xf32> to vector<1x8x128xf32>
    tpu.vector_store %arg4[%307, %c0_179, %c0_180], %310 {strides = array<i32>} : memref<8x8x128xf32, #tpu.memory_space<vmem>>, vector<1x8x128xf32>,
    %c7_i32 = arith.constant 7 : i32
    %311 = arith.index_cast %c7_i32 : i32 to index
    %c0_181 = arith.constant 0 : index
    %c0_182 = arith.constant 0 : index
    %312 = vector.load %arg1[%311, %c0_181, %c0_182] : memref<8x8x128xf32, #tpu.memory_space<vmem>>, vector<1x8x128xf32>
    %313 = vector.shape_cast %312 : vector<1x8x128xf32> to vector<8x128xf32>
    %c0_183 = arith.constant 0 : index
    %c0_184 = arith.constant 0 : index
    %314 = vector.load %arg7[%c0_183, %c0_184] : memref<8x256xf32, #tpu.memory_space<vmem>>, vector<8x128xf32>
    tpu.vector_store %arg7[%c0_183, %c0_184], %313 {strides = array<i32>} : memref<8x256xf32, #tpu.memory_space<vmem>>, vector<8x128xf32>,
    %c0_185 = arith.constant 0 : index
    %c0_186 = arith.constant 0 : index
    %315 = vector.load %arg5[%c0_185, %c0_186] : memref<8x128xf32, #tpu.memory_space<vmem>>, vector<8x128xf32>
    %c0_187 = arith.constant 0 : index
    %c128_188 = arith.constant 128 : index
    %316 = vector.load %arg7[%c0_187, %c128_188] : memref<8x256xf32, #tpu.memory_space<vmem>>, vector<8x128xf32>
    tpu.vector_store %arg7[%c0_187, %c128_188], %315 {strides = array<i32>} : memref<8x256xf32, #tpu.memory_space<vmem>>, vector<8x128xf32>,
    %c0_189 = arith.constant 0 : index
    %c0_190 = arith.constant 0 : index
    %317 = vector.load %arg7[%c0_189, %c0_190] : memref<8x256xf32, #tpu.memory_space<vmem>>, vector<8x256xf32>
    %c0_191 = arith.constant 0 : index
    %c0_192 = arith.constant 0 : index
    %318 = vector.load %arg2[%c0_191, %c0_192] : memref<256x512xf32, #tpu.memory_space<vmem>>, vector<256x512xf32>
    %cst_193 = arith.constant dense<0.000000e+00> : vector<8x512xf32>
    %319 = tpu.matmul %317, %318, %cst_193 {dimension_numbers = #tpu.dot_dimension_numbers<[1], [0], [0], [1], [0, 0, 1, 1], [], []>} : vector<8x256xf32>, vector<256x512xf32>, vector<8x512xf32> -> vector<8x512xf32>
    %c0_194 = arith.constant 0 : index
    %c0_195 = arith.constant 0 : index
    %320 = vector.load %arg3[%c0_194, %c0_195] : memref<1x512xf32, #tpu.memory_space<vmem>>, vector<1x512xf32>
    %321 = vector.broadcast %320 : vector<1x512xf32> to vector<8x512xf32>
    %322 = arith.addf %319, %321 : vector<8x512xf32>
    %323 = vector.extract_strided_slice %322 {offsets = [0, 0], sizes = [8, 128], strides = [1, 1]} : vector<8x512xf32> to vector<8x128xf32>
    %324 = arith.negf %323 : vector<8x128xf32>
    %325 = math.exp %324 : vector<8x128xf32>
    %cst_196 = arith.constant 1.000000e+00 : f32
    %326 = vector.broadcast %cst_196 : f32 to vector<8x128xf32>
    %327 = arith.addf %326, %325 : vector<8x128xf32>
    %328 = arith.divf %326, %327 : vector<8x128xf32>
    %329 = vector.extract_strided_slice %322 {offsets = [0, 128], sizes = [8, 128], strides = [1, 1]} : vector<8x512xf32> to vector<8x128xf32>
    %330 = arith.negf %329 : vector<8x128xf32>
    %331 = math.exp %330 : vector<8x128xf32>
    %cst_197 = arith.constant 1.000000e+00 : f32
    %332 = vector.broadcast %cst_197 : f32 to vector<8x128xf32>
    %333 = arith.addf %332, %331 : vector<8x128xf32>
    %334 = arith.divf %332, %333 : vector<8x128xf32>
    %335 = vector.extract_strided_slice %322 {offsets = [0, 256], sizes = [8, 128], strides = [1, 1]} : vector<8x512xf32> to vector<8x128xf32>
    %336 = math.tanh %335 : vector<8x128xf32>
    %337 = vector.extract_strided_slice %322 {offsets = [0, 384], sizes = [8, 128], strides = [1, 1]} : vector<8x512xf32> to vector<8x128xf32>
    %338 = arith.negf %337 : vector<8x128xf32>
    %339 = math.exp %338 : vector<8x128xf32>
    %cst_198 = arith.constant 1.000000e+00 : f32
    %340 = vector.broadcast %cst_198 : f32 to vector<8x128xf32>
    %341 = arith.addf %340, %339 : vector<8x128xf32>
    %342 = arith.divf %340, %341 : vector<8x128xf32>
    %c0_199 = arith.constant 0 : index
    %c0_200 = arith.constant 0 : index
    %343 = vector.load %arg6[%c0_199, %c0_200] : memref<8x128xf32, #tpu.memory_space<vmem>>, vector<8x128xf32>
    %344 = arith.mulf %334, %343 : vector<8x128xf32>
    %345 = arith.mulf %328, %336 : vector<8x128xf32>
    %346 = arith.addf %344, %345 : vector<8x128xf32>
    %347 = math.tanh %346 : vector<8x128xf32>
    %348 = arith.mulf %342, %347 : vector<8x128xf32>
    %c0_201 = arith.constant 0 : index
    %c0_202 = arith.constant 0 : index
    %349 = vector.load %arg6[%c0_201, %c0_202] : memref<8x128xf32, #tpu.memory_space<vmem>>, vector<8x128xf32>
    tpu.vector_store %arg6[%c0_201, %c0_202], %346 {strides = array<i32>} : memref<8x128xf32, #tpu.memory_space<vmem>>, vector<8x128xf32>,
    %c0_203 = arith.constant 0 : index
    %c0_204 = arith.constant 0 : index
    %350 = vector.load %arg5[%c0_203, %c0_204] : memref<8x128xf32, #tpu.memory_space<vmem>>, vector<8x128xf32>
    tpu.vector_store %arg5[%c0_203, %c0_204], %348 {strides = array<i32>} : memref<8x128xf32, #tpu.memory_space<vmem>>, vector<8x128xf32>,
    %351 = arith.index_cast %c7_i32 : i32 to index
    %c0_205 = arith.constant 0 : index
    %c0_206 = arith.constant 0 : index
    %352 = vector.load %arg4[%351, %c0_205, %c0_206] : memref<8x8x128xf32, #tpu.memory_space<vmem>>, vector<1x8x128xf32>
    %353 = vector.shape_cast %352 : vector<1x8x128xf32> to vector<8x128xf32>
    %354 = vector.shape_cast %348 : vector<8x128xf32> to vector<1x8x128xf32>
    tpu.vector_store %arg4[%351, %c0_205, %c0_206], %354 {strides = array<i32>} : memref<8x8x128xf32, #tpu.memory_space<vmem>>, vector<1x8x128xf32>,
    %c8_i32 = arith.constant 8 : i32
    return
  }
  func.func @transform_0(%arg0: i32) -> (i32, i32, i32) {
    %c0_i32 = arith.constant 0 : i32
    %c0_i32_0 = arith.constant 0 : i32
    %c0_i32_1 = arith.constant 0 : i32
    return %arg0, %c0_i32, %c0_i32_0 : i32, i32, i32
  }
  func.func @transform_1(%arg0: i32) -> (i32, i32) {
    %c0_i32 = arith.constant 0 : i32
    %c0_i32_0 = arith.constant 0 : i32
    %c0_i32_1 = arith.constant 0 : i32
    return %c0_i32, %c0_i32_0 : i32, i32
  }
  func.func @transform_2(%arg0: i32) -> (i32, i32) {
    %c0_i32 = arith.constant 0 : i32
    %c0_i32_0 = arith.constant 0 : i32
    %c0_i32_1 = arith.constant 0 : i32
    return %c0_i32, %c0_i32_0 : i32, i32
  }
  func.func @transform_3(%arg0: i32) -> (i32, i32, i32) {
    %c0_i32 = arith.constant 0 : i32
    %c0_i32_0 = arith.constant 0 : i32
    %c0_i32_1 = arith.constant 0 : i32
    return %arg0, %c0_i32, %c0_i32_0 : i32, i32, i32
  }
}

</mosaic_0001>

<llo_original>
// kernel: tpu_custom_call.1
$region0: #{tpu_custom_call.1}
  #allocation0 [shape = 'u32[]', space=smem, size = 0x4, offset = 0x4, fixed_abs, tag = 'smem constant byte address 0x4 - core index']
  #allocation1 [shape = 'u32[72,128]{1,0:T(1,128)}', space=vmem, size = 0x9000, scoped, tag = 'internal scratch']
  #allocation2 [shape = 'f32[8,128]{1,0:T(8,128)}', space=vmem, size = 0x1000, scoped, tag = 'scratch operand']
  #allocation3 [shape = 'f32[8,128]{1,0:T(8,128)}', space=vmem, size = 0x1000, scoped, tag = 'scratch operand']
  #allocation4 [shape = 'f32[8,256]{1,0:T(8,128)}', space=vmem, size = 0x2000, scoped, tag = 'scratch operand']
  %s0 = inlined_call_operand.hbm [shape: f32[16,8,128], index: 0, kind: input, shape index: {}]
  %s1 = inlined_call_operand.hbm [shape: f32[256,512], index: 1, kind: input, shape index: {}]
  %s2 = inlined_call_operand.hbm [shape: f32[1,512], index: 2, kind: input, shape index: {}]
  %s3 = inlined_call_operand.hbm [shape: f32[16,8,128], index: 3, kind: output, shape index: {}]
  %s4 = sld [smem:[#allocation0]]
  $region61: #{tpu_custom_call.1} parent=0
    _
  %s6 = ssub.s32 1, %s4
  %s7 = scalar_select 0, %s6, %s4
  $region1: #{tpu_custom_call.1} parent=0
    #allocation5 [shape = 'u8[65536]{0}', space=vmem, size = 0x10000, scoped, tag = 'input window, operand 0']
    #allocation6 [shape = 's32[2]{0}', space=sflag, size = 0x8, scoped, tag = 'scoped memory for tpu_custom_call.1']
    #allocation7 [shape = 's32[2]{0}', space=sflag, size = 0x8, scoped, tag = 'scoped memory for tpu_custom_call.1']
    #allocation8 [shape = 'u8[524288]{0}', space=vmem, size = 0x80000, scoped, tag = 'input window, operand 1, single buffered']
    #allocation9 [shape = 's32[1]{0}', space=sflag, size = 0x4, scoped, tag = 'scoped memory for tpu_custom_call.1']
    #allocation10 [shape = 'u8[2048]{0}', space=vmem, size = 0x800, scoped, tag = 'input window, operand 2, single buffered']
    #allocation11 [shape = 'u8[65536]{0}', space=vmem, size = 0x10000, scoped, tag = 'output window, operand 0']
    %8 = vsyncpa [#allocation6], 0
    %s9 = scalar_lea.sflag [#allocation6], 1
    %10 = vsyncpa %s9, 0
    %11 = vsyncpa [#allocation9], 0
    %12 = vsyncpa [#allocation7], 0
    %s13 = scalar_lea.sflag [#allocation7], 1
    %14 = vsyncpa %s13, 0
    loop: start=0, step=1, limit=4
    $region2: #{tpu_custom_call.1} parent=1 // loop_pre_header
      _
    $region3: #{tpu_custom_call.1} parent=1 // loop_header
      %s16 = sphi 0, %s20
      %p17 = scmp.ge.s32.totalorder %s16, 4
      %s26 = sphi 0, %s28
      %s29 = sphi 0, %s26
      %s30 = sphi 0, %s29
      %s46 = sphi 0, %s30
      %s50 = sphi 0, %s50
      %s52 = sphi 0, %s50
      %s53 = sphi 0, %s52
      %s67 = sphi 0, %s53
      %s71 = sphi 0, %s71
      %s73 = sphi 0, %s71
      %s74 = sphi 0, %s73
      %s88 = sphi 0, %s74
      %s94 = sphi 0, %s96
      %s97 = sphi 0, %s94
      %s98 = sphi 0, %s97
      %s114 = sphi 0, %s98
    $region4: #{tpu_custom_call.1} parent=1 // loop_header_branch
      %19 = sbr.rel (%p17) target = $region8
    $region5: #{tpu_custom_call.1} parent=1 // loop_body
      %s21 = ssub.s32 %s16, 1
      %s22 = ssub.s32 %s16, 2
      %s23 = sadd.s32 %s16, 1
      %s24 = ssub.s32 %s16, %s23
      %p25 = scmp.eq.s32.totalorder %s24, 0
      %s27 = sadd.s32 %s26, 1
      %s28 = scalar_select %p25, %s26, %s27
      %p31 = pneg %p25
      %p32 = scmp.eq.s32.totalorder %s16, 1
      %p33 = por %p31, %p32
      %p34 = scmp.ne.s32.totalorder %s26, %s29
      %p35 = scmp.eq.s32.totalorder %s16, 0
      %p36 = por %p34, %p35
      %p37 = scmp.ne.s32.totalorder %s26, %s29
      %p38 = scmp.eq.s32.totalorder %s21, 1
      %p39 = por %p37, %p38
      %p40 = scmp.ne.s32.totalorder %s29, %s30
      %p41 = scmp.eq.s32.totalorder %s21, 0
      %p42 = por %p40, %p41
      %p43 = scmp.ne.s32.totalorder %s29, %s30
      %p44 = scmp.eq.s32.totalorder %s22, 1
      %p45 = por %p43, %p44
      %p47 = scmp.ne.s32.totalorder %s30, %s46
      %p48 = scmp.eq.s32.totalorder %s22, 0
      %p49 = por %p47, %p48
      %s51 = sadd.s32 %s50, 1
      %p54 = scmp.eq.s32.totalorder %s16, 1
      %p55 = scmp.ne.s32.totalorder %s50, %s52
      %p56 = scmp.eq.s32.totalorder %s16, 0
      %p57 = por %p55, %p56
      %p58 = scmp.ne.s32.totalorder %s50, %s52
      %p59 = scmp.eq.s32.totalorder %s21, 1
      %p60 = por %p58, %p59
      %p61 = scmp.ne.s32.totalorder %s52, %s53
      %p62 = scmp.eq.s32.totalorder %s21, 0
      %p63 = por %p61, %p62
      %p64 = scmp.ne.s32.totalorder %s52, %s53
      %p65 = scmp.eq.s32.totalorder %s22, 1
      %p66 = por %p64, %p65
      %p68 = scmp.ne.s32.totalorder %s53, %s67
      %p69 = scmp.eq.s32.totalorder %s22, 0
      %p70 = por %p68, %p69
      %s72 = sadd.s32 %s71, 1
      %p75 = scmp.eq.s32.totalorder %s16, 1
      %p76 = scmp.ne.s32.totalorder %s71, %s73
      %p77 = scmp.eq.s32.totalorder %s16, 0
      %p78 = por %p76, %p77
      %p79 = scmp.ne.s32.totalorder %s71, %s73
      %p80 = scmp.eq.s32.totalorder %s21, 1
      %p81 = por %p79, %p80
      %p82 = scmp.ne.s32.totalorder %s73, %s74
      %p83 = scmp.eq.s32.totalorder %s21, 0
      %p84 = por %p82, %p83
      %p85 = scmp.ne.s32.totalorder %s73, %s74
      %p86 = scmp.eq.s32.totalorder %s22, 1
      %p87 = por %p85, %p86
      %p89 = scmp.ne.s32.totalorder %s74, %s88
      %p90 = scmp.eq.s32.totalorder %s22, 0
      %p91 = por %p89, %p90
      %s92 = ssub.s32 %s16, %s23
      %p93 = scmp.eq.s32.totalorder %s92, 0
      %s95 = sadd.s32 %s94, 1
      %s96 = scalar_select %p93, %s94, %s95
      %p99 = pneg %p93
      %p100 = scmp.eq.s32.totalorder %s16, 1
      %p101 = por %p99, %p100
      %p102 = scmp.ne.s32.totalorder %s94, %s97
      %p103 = scmp.eq.s32.totalorder %s16, 0
      %p104 = por %p102, %p103
      %p105 = scmp.ne.s32.totalorder %s94, %s97
      %p106 = scmp.eq.s32.totalorder %s21, 1
      %p107 = por %p105, %p106
      %p108 = scmp.ne.s32.totalorder %s97, %s98
      %p109 = scmp.eq.s32.totalorder %s21, 0
      %p110 = por %p108, %p109
      %p111 = scmp.ne.s32.totalorder %s97, %s98
      %p112 = scmp.eq.s32.totalorder %s22, 1
      %p113 = por %p111, %p112
      %p115 = scmp.ne.s32.totalorder %s98, %s114
      %p116 = scmp.eq.s32.totalorder %s22, 0
      %p117 = por %p115, %p116
      %p118 = scmp.le.s32.totalorder 1, %s16
      %p119 = scmp.lt.s32.totalorder %s16, 3
      %p120 = pnand %p118, %p119
      %p121 = pneg %p120
      // Predicated region
      $region9: #{tpu_custom_call.1} parent=5 // pred_check
        _
      $region10: #{tpu_custom_call.1} parent=5 // pred_check_branch
        %123 = sbr.rel (%p120) target = $region12
      $region11: #{tpu_custom_call.1} parent=5 // pred_region
        %s124 = ssub.s32 %s16, 1
        // Predicated region
        $region13: #{tpu_custom_call.1} parent=11 // pred_check
          %p125 = pneg %p63
        $region14: #{tpu_custom_call.1} parent=11 // pred_check_branch
          %127 = sbr.rel (%p125) target = $region16
        $region15: #{tpu_custom_call.1} parent=11 // pred_region
          %129 = vsyncadd [#allocation9], 0
          %s130 = sshll.u32 %s1, 4
          %s131 = int_to_ptr.hbm [resolvable:$true] %s130
          %s132 = sshll.u32 [#allocation8], 4
          %s133 = int_to_ptr.vmem [resolvable:$true] %s132
          %138 = dma.hbm_to_vmem [thread:$0]  %s131, 16384, %s133, [#allocation9], 512, 512, 32
        $region16: #{tpu_custom_call.1} parent=11 // pred_fallthru
          _
        // Predicated region
        $region17: #{tpu_custom_call.1} parent=11 // pred_check
          %p139 = pneg %p84
        $region18: #{tpu_custom_call.1} parent=11 // pred_check_branch
          %141 = sbr.rel (%p139) target = $region20
        $region19: #{tpu_custom_call.1} parent=11 // pred_region
          %143 = vsyncadd [#allocation9], 0
          %s145 = sshll.u32 %s2, 4
          %s146 = int_to_ptr.hbm [resolvable:$true] %s145
          %s147 = sshll.u32 [#allocation10], 4
          %s148 = int_to_ptr.vmem [resolvable:$true] %s147
          %150 = dma.hbm_to_vmem [thread:$0]  %s146, 64, %s148, [#allocation9]
        $region20: #{tpu_custom_call.1} parent=11 // pred_fallthru
          _
      $region12: #{tpu_custom_call.1} parent=5 // pred_fallthru
        _
      %p151 = scmp.lt.s32.totalorder %s16, 2
      // Predicated region
      $region21: #{tpu_custom_call.1} parent=5 // pred_check
        %p152 = pneg %p151
      $region22: #{tpu_custom_call.1} parent=5 // pred_check_branch
        %154 = sbr.rel (%p152) target = $region24
      $region23: #{tpu_custom_call.1} parent=5 // pred_region
        // Predicated region
        $region25: #{tpu_custom_call.1} parent=23 // pred_check
          %p155 = pneg %p36
        $region26: #{tpu_custom_call.1} parent=23 // pred_check_branch
          %157 = sbr.rel (%p155) target = $region28
        $region27: #{tpu_custom_call.1} parent=23 // pred_region
          %s158 = sand.u32 %s26, 1
          %s159 = scalar_lea.sflag [#allocation6], %s158
          %s160 = sand.u32 %s26, 1
          %s161 = smul.addr %s160, 64
          %s162 = scalar_lea.vmem [#allocation5], %s161
          %s163 = smul.u32 8, %s16
          %165 = vsyncadd %s159, 0
          %s166 = smul.addr %s163, 8
          %s167 = scalar_lea.hbm %s0, %s166
          %s168 = sshll.u32 %s167, 4
          %s169 = int_to_ptr.hbm [resolvable:$true] %s168
          %s170 = sshll.u32 %s162, 4
          %s171 = int_to_ptr.vmem [resolvable:$true] %s170
          %176 = dma.hbm_to_vmem [thread:$0]  %s169, 1024, %s171, %s159, 128, 128, 8
        $region28: #{tpu_custom_call.1} parent=23 // pred_fallthru
          _
      $region24: #{tpu_custom_call.1} parent=5 // pred_fallthru
        _
      %p177 = scmp.le.s32.totalorder 1, %s16
      %p178 = scmp.lt.s32.totalorder %s16, 3
      %p179 = pnand %p177, %p178
      %p180 = pneg %p179
      // Predicated region
      $region29: #{tpu_custom_call.1} parent=5 // pred_check
        _
      $region30: #{tpu_custom_call.1} parent=5 // pred_check_branch
        %182 = sbr.rel (%p179) target = $region32
      $region31: #{tpu_custom_call.1} parent=5 // pred_region
        %s183 = ssub.s32 %s16, 1
        %s184 = sand.u32 %s29, 1
        %s185 = scalar_lea.sflag [#allocation6], %s184
        %s186 = sand.u32 %s29, 1
        %s187 = smul.addr %s186, 64
        %s188 = scalar_lea.vmem [#allocation5], %s187
        // Predicated region
        $region33: #{tpu_custom_call.1} parent=31 // pred_check
          %p189 = pneg %p42
        $region34: #{tpu_custom_call.1} parent=31 // pred_check_branch
          %191 = sbr.rel (%p189) target = $region36
        $region35: #{tpu_custom_call.1} parent=31 // pred_region
          %193 = dma.done %s185, 1024
        $region36: #{tpu_custom_call.1} parent=31 // pred_fallthru
          _
        // Predicated region
        $region37: #{tpu_custom_call.1} parent=31 // pred_check
          %p194 = pneg %p63
        $region38: #{tpu_custom_call.1} parent=31 // pred_check_branch
          %196 = sbr.rel (%p194) target = $region40
        $region39: #{tpu_custom_call.1} parent=31 // pred_region
          %198 = dma.done [#allocation9], 16384
        $region40: #{tpu_custom_call.1} parent=31 // pred_fallthru
          _
        // Predicated region
        $region41: #{tpu_custom_call.1} parent=31 // pred_check
          %p199 = pneg %p84
        $region42: #{tpu_custom_call.1} parent=31 // pred_check_branch
          %201 = sbr.rel (%p199) target = $region44
        $region43: #{tpu_custom_call.1} parent=31 // pred_region
          %203 = dma.done [#allocation9], 64
        $region44: #{tpu_custom_call.1} parent=31 // pred_fallthru
          _
        %s204 = sand.u32 %s29, 1
        %s205 = scalar_lea.sflag [#allocation6], %s204
        %s206 = sand.u32 %s29, 1
        %s207 = smul.addr %s206, 64
        %s208 = scalar_lea.vmem [#allocation5], %s207
        %p209 = pneg %p42
        %p210 = pneg %p39
        %p211 = pneg %p63
        %p212 = pneg %p60
        %p213 = pneg %p84
        %p214 = pneg %p81
        %p215 = pneg %p110
        %p216 = pneg %p107
        %s217 = sand.u32 %s97, 1
        %s218 = scalar_lea.sflag [#allocation7], %s217
        %s219 = sand.u32 %s97, 1
        %s220 = smul.addr %s219, 64
        %s221 = scalar_lea.vmem [#allocation11], %s220
        %s222 = smul.u32 8, %s21
        %s223 = smul.u32 8, %s21
        %p224 = scmp.eq.s32.totalorder %s21, 0
        // Predicated region
        $region45: #{tpu_custom_call.1} parent=31 // pred_check
          %p225 = pneg %p224
        $region46: #{tpu_custom_call.1} parent=31 // pred_check_branch
          %227 = sbr.rel (%p225) target = $region48
        $region47: #{tpu_custom_call.1} parent=31 // pred_region
          %228 = vst [vmem:[#allocation2] sm:$0xff] 0.0
          %229 = vst [vmem:[#allocation3] sm:$0xff] 0.0
        $region48: #{tpu_custom_call.1} parent=31 // pred_fallthru
          _
        %v230 = vld [vmem:[%s188] sm:$0xff]
        %231 = vst [vmem:[#allocation4] sm:$0xff] %v230
        %v232 = vld [vmem:[#allocation2] sm:$0xff]
        %233 = vst [vmem:[#allocation4 + $0x8] sm:$0xff] %v232
        %v234 = vld [vmem:[#allocation4] sm:$0xff]
        %v235 = vld [vmem:[#allocation4 + $0x8] sm:$0xff]
        %v236 = vld [vmem:[#allocation8] sm:$0xff]
        %v237 = vld [vmem:[#allocation8 + $0x8] sm:$0xff]
        %v238 = vld [vmem:[#allocation8 + $0x10] sm:$0xff]
        %v239 = vld [vmem:[#allocation8 + $0x18] sm:$0xff]
        %v240 = vld [vmem:[#allocation8 + $0x20] sm:$0xff]
        %v241 = vld [vmem:[#allocation8 + $0x28] sm:$0xff]
        %v242 = vld [vmem:[#allocation8 + $0x30] sm:$0xff]
        %v243 = vld [vmem:[#allocation8 + $0x38] sm:$0xff]
        %v244 = vld [vmem:[#allocation8 + $0x40] sm:$0xff]
        %v245 = vld [vmem:[#allocation8 + $0x48] sm:$0xff]
        %v246 = vld [vmem:[#allocation8 + $0x50] sm:$0xff]
        %v247 = vld [vmem:[#allocation8 + $0x58] sm:$0xff]
        %v248 = vld [vmem:[#allocation8 + $0x60] sm:$0xff]
        %v249 = vld [vmem:[#allocation8 + $0x68] sm:$0xff]
        %v250 = vld [vmem:[#allocation8 + $0x70] sm:$0xff]
        %v251 = vld [vmem:[#allocation8 + $0x78] sm:$0xff]
        %v252 = vld [vmem:[#allocation8 + $0x80] sm:$0xff]
        %v253 = vld [vmem:[#allocation8 + $0x88] sm:$0xff]
        %v254 = vld [vmem:[#allocation8 + $0x90] sm:$0xff]
        %v255 = vld [vmem:[#allocation8 + $0x98] sm:$0xff]
        %v256 = vld [vmem:[#allocation8 + $0xa0] sm:$0xff]
        %v257 = vld [vmem:[#allocation8 + $0xa8] sm:$0xff]
        %v258 = vld [vmem:[#allocation8 + $0xb0] sm:$0xff]
        %v259 = vld [vmem:[#allocation8 + $0xb8] sm:$0xff]
        %v260 = vld [vmem:[#allocation8 + $0xc0] sm:$0xff]
        %v261 = vld [vmem:[#allocation8 + $0xc8] sm:$0xff]
        %v262 = vld [vmem:[#allocation8 + $0xd0] sm:$0xff]
        %v263 = vld [vmem:[#allocation8 + $0xd8] sm:$0xff]
        %v264 = vld [vmem:[#allocation8 + $0xe0] sm:$0xff]
        %v265 = vld [vmem:[#allocation8 + $0xe8] sm:$0xff]
        %v266 = vld [vmem:[#allocation8 + $0xf0] sm:$0xff]
        %v267 = vld [vmem:[#allocation8 + $0xf8] sm:$0xff]
        %v268 = vld [vmem:[#allocation8 + $0x100] sm:$0xff]
        %v269 = vld [vmem:[#allocation8 + $0x108] sm:$0xff]
        %v270 = vld [vmem:[#allocation8 + $0x110] sm:$0xff]
        %v271 = vld [vmem:[#allocation8 + $0x118] sm:$0xff]
        %v272 = vld [vmem:[#allocation8 + $0x120] sm:$0xff]
        %v273 = vld [vmem:[#allocation8 + $0x128] sm:$0xff]
        %v274 = vld [vmem:[#allocation8 + $0x130] sm:$0xff]
        %v275 = vld [vmem:[#allocation8 + $0x138] sm:$0xff]
        %v276 = vld [vmem:[#allocation8 + $0x140] sm:$0xff]
        %v277 = vld [vmem:[#allocation8 + $0x148] sm:$0xff]
        %v278 = vld [vmem:[#allocation8 + $0x150] sm:$0xff]
        %v279 = vld [vmem:[#allocation8 + $0x158] sm:$0xff]
        %v280 = vld [vmem:[#allocation8 + $0x160] sm:$0xff]
        %v281 = vld [vmem:[#allocation8 + $0x168] sm:$0xff]
        %v282 = vld [vmem:[#allocation8 + $0x170] sm:$0xff]
        %v283 = vld [vmem:[#allocation8 + $0x178] sm:$0xff]
        %v284 = vld [vmem:[#allocation8 + $0x180] sm:$0xff]
        %v285 = vld [vmem:[#allocation8 + $0x188] sm:$0xff]
        %v286 = vld [vmem:[#allocation8 + $0x190] sm:$0xff]
        %v287 = vld [vmem:[#allocation8 + $0x198] sm:$0xff]
        %v288 = vld [vmem:[#allocation8 + $0x1a0] sm:$0xff]
        %v289 = vld [vmem:[#allocation8 + $0x1a8] sm:$0xff]
        %v290 = vld [vmem:[#allocation8 + $0x1b0] sm:$0xff]
        %v291 = vld [vmem:[#allocation8 + $0x1b8] sm:$0xff]
        %v292 = vld [vmem:[#allocation8 + $0x1c0] sm:$0xff]
        %v293 = vld [vmem:[#allocation8 + $0x1c8] sm:$0xff]
        %v294 = vld [vmem:[#allocation8 + $0x1d0] sm:$0xff]
        %v295 = vld [vmem:[#allocation8 + $0x1d8] sm:$0xff]
        %v296 = vld [vmem:[#allocation8 + $0x1e0] sm:$0xff]
        %v297 = vld [vmem:[#allocation8 + $0x1e8] sm:$0xff]
        %v298 = vld [vmem:[#allocation8 + $0x1f0] sm:$0xff]
        %v299 = vld [vmem:[#allocation8 + $0x1f8] sm:$0xff]
        %v300 = vld [vmem:[#allocation8 + $0x200] sm:$0xff]
        %v301 = vld [vmem:[#allocation8 + $0x208] sm:$0xff]
        %v302 = vld [vmem:[#allocation8 + $0x210] sm:$0xff]
        %v303 = vld [vmem:[#allocation8 + $0x218] sm:$0xff]
        %v304 = vld [vmem:[#allocation8 + $0x220] sm:$0xff]
        %v305 = vld [vmem:[#allocation8 + $0x228] sm:$0xff]
        %v306 = vld [vmem:[#allocation8 + $0x230] sm:$0xff]
        %v307 = vld [vmem:[#allocation8 + $0x238] sm:$0xff]
        %v308 = vld [vmem:[#allocation8 + $0x240] sm:$0xff]
        %v309 = vld [vmem:[#allocation8 + $0x248] sm:$0xff]
        %v310 = vld [vmem:[#allocation8 + $0x250] sm:$0xff]
        %v311 = vld [vmem:[#allocation8 + $0x258] sm:$0xff]
        %v312 = vld [vmem:[#allocation8 + $0x260] sm:$0xff]
        %v313 = vld [vmem:[#allocation8 + $0x268] sm:$0xff]
        %v314 = vld [vmem:[#allocation8 + $0x270] sm:$0xff]
        %v315 = vld [vmem:[#allocation8 + $0x278] sm:$0xff]
        %v316 = vld [vmem:[#allocation8 + $0x280] sm:$0xff]
        %v317 = vld [vmem:[#allocation8 + $0x288] sm:$0xff]
        %v318 = vld [vmem:[#allocation8 + $0x290] sm:$0xff]
        %v319 = vld [vmem:[#allocation8 + $0x298] sm:$0xff]
        %v320 = vld [vmem:[#allocation8 + $0x2a0] sm:$0xff]
        %v321 = vld [vmem:[#allocation8 + $0x2a8] sm:$0xff]
        %v322 = vld [vmem:[#allocation8 + $0x2b0] sm:$0xff]
        %v323 = vld [vmem:[#allocation8 + $0x2b8] sm:$0xff]
        %v324 = vld [vmem:[#allocation8 + $0x2c0] sm:$0xff]
        %v325 = vld [vmem:[#allocation8 + $0x2c8] sm:$0xff]
        %v326 = vld [vmem:[#allocation8 + $0x2d0] sm:$0xff]
        %v327 = vld [vmem:[#allocation8 + $0x2d8] sm:$0xff]
        %v328 = vld [vmem:[#allocation8 + $0x2e0] sm:$0xff]
        %v329 = vld [vmem:[#allocation8 + $0x2e8] sm:$0xff]
        %v330 = vld [vmem:[#allocation8 + $0x2f0] sm:$0xff]
        %v331 = vld [vmem:[#allocation8 + $0x2f8] sm:$0xff]
        %v332 = vld [vmem:[#allocation8 + $0x300] sm:$0xff]
        %v333 = vld [vmem:[#allocation8 + $0x308] sm:$0xff]
        %v334 = vld [vmem:[#allocation8 + $0x310] sm:$0xff]
        %v335 = vld [vmem:[#allocation8 + $0x318] sm:$0xff]
        %v336 = vld [vmem:[#allocation8 + $0x320] sm:$0xff]
        %v337 = vld [vmem:[#allocation8 + $0x328] sm:$0xff]
        %v338 = vld [vmem:[#allocation8 + $0x330] sm:$0xff]
        %v339 = vld [vmem:[#allocation8 + $0x338] sm:$0xff]
        %v340 = vld [vmem:[#allocation8 + $0x340] sm:$0xff]
        %v341 = vld [vmem:[#allocation8 + $0x348] sm:$0xff]
        %v342 = vld [vmem:[#allocation8 + $0x350] sm:$0xff]
        %v343 = vld [vmem:[#allocation8 + $0x358] sm:$0xff]
        %v344 = vld [vmem:[#allocation8 + $0x360] sm:$0xff]
        %v345 = vld [vmem:[#allocation8 + $0x368] sm:$0xff]
        %v346 = vld [vmem:[#allocation8 + $0x370] sm:$0xff]
        %v347 = vld [vmem:[#allocation8 + $0x378] sm:$0xff]
        %v348 = vld [vmem:[#allocation8 + $0x380] sm:$0xff]
        %v349 = vld [vmem:[#allocation8 + $0x388] sm:$0xff]
        %v350 = vld [vmem:[#allocation8 + $0x390] sm:$0xff]
        %v351 = vld [vmem:[#allocation8 + $0x398] sm:$0xff]
        %v352 = vld [vmem:[#allocation8 + $0x3a0] sm:$0xff]
        %v353 = vld [vmem:[#allocation8 + $0x3a8] sm:$0xff]
        %v354 = vld [vmem:[#allocation8 + $0x3b0] sm:$0xff]
        %v355 = vld [vmem:[#allocation8 + $0x3b8] sm:$0xff]
        %v356 = vld [vmem:[#allocation8 + $0x3c0] sm:$0xff]
        %v357 = vld [vmem:[#allocation8 + $0x3c8] sm:$0xff]
        %v358 = vld [vmem:[#allocation8 + $0x3d0] sm:$0xff]
        %v359 = vld [vmem:[#allocation8 + $0x3d8] sm:$0xff]
        %v360 = vld [vmem:[#allocation8 + $0x3e0] sm:$0xff]
        %v361 = vld [vmem:[#allocation8 + $0x3e8] sm:$0xff]
        %v362 = vld [vmem:[#allocation8 + $0x3f0] sm:$0xff]
        %v363 = vld [vmem:[#allocation8 + $0x3f8] sm:$0xff]
        %v364 = vld [vmem:[#allocation10] sm:$0xf]
        %v366 = vperm.slane %v364, 0
        %v367 = vperm.slane %v364, 1
        %v368 = vperm.slane %v364, 2
        %v369 = vperm.slane %v364, 3
        %374 = vmatpush.msra.mxu0 %v296
        %375 = vmatpush.msra.mxu0 %v292
        %376 = vmatpush.msra.mxu0 %v288
        %377 = vmatpush.msra.mxu0 %v284
        %378 = vmatpush.msra.mxu0 %v280
        %379 = vmatpush.msra.mxu0 %v276
        %380 = vmatpush.msra.mxu0 %v272
        %381 = vmatpush.msra.mxu0 %v268
        %382 = vmatpush.msra.mxu0 %v264
        %383 = vmatpush.msra.mxu0 %v260
        %384 = vmatpush.msra.mxu0 %v256
        %385 = vmatpush.msra.mxu0 %v252
        %386 = vmatpush.msra.mxu0 %v248
        %387 = vmatpush.msra.mxu0 %v244
        %388 = vmatpush.msra.mxu0 %v240
        %389 = vmatpush.msra.mxu0 %v236
        %390 = vmatmul.f32.gmra.mxu0 %v234
        %v391 = vpop.f32.mrf.mxu0
        %v392 = vadd.f32 %v366, %v391
        %393 = vdwg.mxu0
        %394 = vmatpush.msra.mxu0 %v360
        %395 = vmatpush.msra.mxu0 %v356
        %396 = vmatpush.msra.mxu0 %v352
        %397 = vmatpush.msra.mxu0 %v348
        %398 = vmatpush.msra.mxu0 %v344
        %399 = vmatpush.msra.mxu0 %v340
        %400 = vmatpush.msra.mxu0 %v336
        %401 = vmatpush.msra.mxu0 %v332
        %402 = vmatpush.msra.mxu0 %v328
        %403 = vmatpush.msra.mxu0 %v324
        %404 = vmatpush.msra.mxu0 %v320
        %405 = vmatpush.msra.mxu0 %v316
        %406 = vmatpush.msra.mxu0 %v312
        %407 = vmatpush.msra.mxu0 %v308
        %408 = vmatpush.msra.mxu0 %v304
        %409 = vmatpush.msra.mxu0 %v300
        %410 = vmatmul.f32.gmra.mxu0 %v235
        %v411 = vpop.f32.mrf.mxu0
        %v412 = vadd.f32 %v392, %v411
        %413 = vdwg.mxu0
        %414 = vmatpush.msra.mxu0 %v297
        %415 = vmatpush.msra.mxu0 %v293
        %416 = vmatpush.msra.mxu0 %v289
        %417 = vmatpush.msra.mxu0 %v285
        %418 = vmatpush.msra.mxu0 %v281
        %419 = vmatpush.msra.mxu0 %v277
        %420 = vmatpush.msra.mxu0 %v273
        %421 = vmatpush.msra.mxu0 %v269
        %422 = vmatpush.msra.mxu0 %v265
        %423 = vmatpush.msra.mxu0 %v261
        %424 = vmatpush.msra.mxu0 %v257
        %425 = vmatpush.msra.mxu0 %v253
        %426 = vmatpush.msra.mxu0 %v249
        %427 = vmatpush.msra.mxu0 %v245
        %428 = vmatpush.msra.mxu0 %v241
        %429 = vmatpush.msra.mxu0 %v237
        %430 = vmatmul.f32.gmra.mxu0 %v234
        %v431 = vpop.f32.mrf.mxu0
        %v432 = vadd.f32 %v367, %v431
        %433 = vdwg.mxu0
        %434 = vmatpush.msra.mxu0 %v361
        %435 = vmatpush.msra.mxu0 %v357
        %436 = vmatpush.msra.mxu0 %v353
        %437 = vmatpush.msra.mxu0 %v349
        %438 = vmatpush.msra.mxu0 %v345
        %439 = vmatpush.msra.mxu0 %v341
        %440 = vmatpush.msra.mxu0 %v337
        %441 = vmatpush.msra.mxu0 %v333
        %442 = vmatpush.msra.mxu0 %v329
        %443 = vmatpush.msra.mxu0 %v325
        %444 = vmatpush.msra.mxu0 %v321
        %445 = vmatpush.msra.mxu0 %v317
        %446 = vmatpush.msra.mxu0 %v313
        %447 = vmatpush.msra.mxu0 %v309
        %448 = vmatpush.msra.mxu0 %v305
        %449 = vmatpush.msra.mxu0 %v301
        %450 = vmatmul.f32.gmra.mxu0 %v235
        %v451 = vpop.f32.mrf.mxu0
        %v452 = vadd.f32 %v432, %v451
        %453 = vdwg.mxu0
        %454 = vmatpush.msra.mxu0 %v298
        %455 = vmatpush.msra.mxu0 %v294
        %456 = vmatpush.msra.mxu0 %v290
        %457 = vmatpush.msra.mxu0 %v286
        %458 = vmatpush.msra.mxu0 %v282
        %459 = vmatpush.msra.mxu0 %v278
        %460 = vmatpush.msra.mxu0 %v274
        %461 = vmatpush.msra.mxu0 %v270
        %462 = vmatpush.msra.mxu0 %v266
        %463 = vmatpush.msra.mxu0 %v262
        %464 = vmatpush.msra.mxu0 %v258
        %465 = vmatpush.msra.mxu0 %v254
        %466 = vmatpush.msra.mxu0 %v250
        %467 = vmatpush.msra.mxu0 %v246
        %468 = vmatpush.msra.mxu0 %v242
        %469 = vmatpush.msra.mxu0 %v238
        %470 = vmatmul.f32.gmra.mxu0 %v234
        %v471 = vpop.f32.mrf.mxu0
        %v472 = vadd.f32 %v368, %v471
        %473 = vdwg.mxu0
        %474 = vmatpush.msra.mxu0 %v362
        %475 = vmatpush.msra.mxu0 %v358
        %476 = vmatpush.msra.mxu0 %v354
        %477 = vmatpush.msra.mxu0 %v350
        %478 = vmatpush.msra.mxu0 %v346
        %479 = vmatpush.msra.mxu0 %v342
        %480 = vmatpush.msra.mxu0 %v338
        %481 = vmatpush.msra.mxu0 %v334
        %482 = vmatpush.msra.mxu0 %v330
        %483 = vmatpush.msra.mxu0 %v326
        %484 = vmatpush.msra.mxu0 %v322
        %485 = vmatpush.msra.mxu0 %v318
        %486 = vmatpush.msra.mxu0 %v314
        %487 = vmatpush.msra.mxu0 %v310
        %488 = vmatpush.msra.mxu0 %v306
        %489 = vmatpush.msra.mxu0 %v302
        %490 = vmatmul.f32.gmra.mxu0 %v235
        %v491 = vpop.f32.mrf.mxu0
        %v492 = vadd.f32 %v472, %v491
        %493 = vdwg.mxu0
        %494 = vmatpush.msra.mxu0 %v299
        %495 = vmatpush.msra.mxu0 %v295
        %496 = vmatpush.msra.mxu0 %v291
        %497 = vmatpush.msra.mxu0 %v287
        %498 = vmatpush.msra.mxu0 %v283
        %499 = vmatpush.msra.mxu0 %v279
        %500 = vmatpush.msra.mxu0 %v275
        %501 = vmatpush.msra.mxu0 %v271
        %502 = vmatpush.msra.mxu0 %v267
        %503 = vmatpush.msra.mxu0 %v263
        %504 = vmatpush.msra.mxu0 %v259
        %505 = vmatpush.msra.mxu0 %v255
        %506 = vmatpush.msra.mxu0 %v251
        %507 = vmatpush.msra.mxu0 %v247
        %508 = vmatpush.msra.mxu0 %v243
        %509 = vmatpush.msra.mxu0 %v239
        %510 = vmatmul.f32.gmra.mxu0 %v234
        %v511 = vpop.f32.mrf.mxu0
        %v512 = vadd.f32 %v369, %v511
        %513 = vdwg.mxu0
        %514 = vmatpush.msra.mxu0 %v363
        %515 = vmatpush.msra.mxu0 %v359
        %516 = vmatpush.msra.mxu0 %v355
        %517 = vmatpush.msra.mxu0 %v351
        %518 = vmatpush.msra.mxu0 %v347
        %519 = vmatpush.msra.mxu0 %v343
        %520 = vmatpush.msra.mxu0 %v339
        %521 = vmatpush.msra.mxu0 %v335
        %522 = vmatpush.msra.mxu0 %v331
        %523 = vmatpush.msra.mxu0 %v327
        %524 = vmatpush.msra.mxu0 %v323
        %525 = vmatpush.msra.mxu0 %v319
        %526 = vmatpush.msra.mxu0 %v315
        %527 = vmatpush.msra.mxu0 %v311
        %528 = vmatpush.msra.mxu0 %v307
        %529 = vmatpush.msra.mxu0 %v303
        %530 = vmatmul.f32.gmra.mxu0 %v235
        %v531 = vpop.f32.mrf.mxu0
        %v532 = vadd.f32 %v512, %v531
        %533 = vdwg.mxu0
        %v534 = vxor.u32 %v412, 2147483648
        %v535 = vmul.f32 %v534, 1.442695
        %v536 = vpow.pop %v535
        %v537 = vadd.f32 %v536, 1.0
        %v538 = vrcp.pop %v537
        %v539 = vmul.f32 %v537, %v538
        %v540 = vsub.f32 1.0, %v539
        %v541 = vmul.f32 %v538, %v540
        %v542 = vadd.f32 %v538, %v541
        %vm543 = vweird.f32 %v537
        %vm544 = vweird.f32 %v538
        %vm545 = vmor %vm543, %vm544
        %v546 = vsel %vm545, %v538, %v542
        %v547 = vand.u32 2147483647, %v537
        %vm548 = vcmp.eq.f32.partialorder %v547, 8.507059e+37
        %v549 = vand.u32 %v537, 2147483648
        %v550 = vor.u32 1.1754944e-38, %v549
        %v551 = vsel %vm548, %v550, %v546
        %v552 = vmul.f32 1.0, %v551
        %v553 = vxor.u32 %v452, 2147483648
        %v554 = vmul.f32 %v553, 1.442695
        %v555 = vpow.pop %v554
        %v556 = vadd.f32 %v555, 1.0
        %v557 = vrcp.pop %v556
        %v558 = vmul.f32 %v556, %v557
        %v559 = vsub.f32 1.0, %v558
        %v560 = vmul.f32 %v557, %v559
        %v561 = vadd.f32 %v557, %v560
        %vm562 = vweird.f32 %v556
        %vm563 = vweird.f32 %v557
        %vm564 = vmor %vm562, %vm563
        %v565 = vsel %vm564, %v557, %v561
        %v566 = vand.u32 2147483647, %v556
        %vm567 = vcmp.eq.f32.partialorder %v566, 8.507059e+37
        %v568 = vand.u32 %v556, 2147483648
        %v569 = vor.u32 1.1754944e-38, %v568
        %v570 = vsel %vm567, %v569, %v565
        %v571 = vmul.f32 1.0, %v570
        %v572 = vtanh.pop %v492
        %v573 = vxor.u32 %v532, 2147483648
        %v574 = vmul.f32 %v573, 1.442695
        %v575 = vpow.pop %v574
        %v576 = vadd.f32 %v575, 1.0
        %v577 = vrcp.pop %v576
        %v578 = vmul.f32 %v576, %v577
        %v579 = vsub.f32 1.0, %v578
        %v580 = vmul.f32 %v577, %v579
        %v581 = vadd.f32 %v577, %v580
        %vm582 = vweird.f32 %v576
        %vm583 = vweird.f32 %v577
        %vm584 = vmor %vm582, %vm583
        %v585 = vsel %vm584, %v577, %v581
        %v586 = vand.u32 2147483647, %v576
        %vm587 = vcmp.eq.f32.partialorder %v586, 8.507059e+37
        %v588 = vand.u32 %v576, 2147483648
        %v589 = vor.u32 1.1754944e-38, %v588
        %v590 = vsel %vm587, %v589, %v585
        %v591 = vmul.f32 1.0, %v590
        %v592 = vld [vmem:[#allocation3] sm:$0xff]
        %v593 = vmul.f32 %v571, %v592
        %v594 = vmul.f32 %v552, %v572
        %v595 = vadd.f32 %v593, %v594
        %v596 = vtanh.pop %v595
        %v597 = vmul.f32 %v591, %v596
        %598 = vst [vmem:[#allocation3] sm:$0xff] %v595
        %599 = vst [vmem:[#allocation2] sm:$0xff] %v597
        %600 = vst [vmem:[%s221] sm:$0xff] %v597
        %s601 = scalar_lea.vmem %s188, 8 [#allocation5]
        %v602 = vld [vmem:[%s601] sm:$0xff]
        %603 = vst [vmem:[#allocation4] sm:$0xff] %v602
        %v604 = vld [vmem:[#allocation2] sm:$0xff]
        %605 = vst [vmem:[#allocation4 + $0x8] sm:$0xff] %v604
        %v606 = vld [vmem:[#allocation4] sm:$0xff]
        %v607 = vld [vmem:[#allocation4 + $0x8] sm:$0xff]
        %v608 = vld [vmem:[#allocation8] sm:$0xff]
        %v609 = vld [vmem:[#allocation8 + $0x8] sm:$0xff]
        %v610 = vld [vmem:[#allocation8 + $0x10] sm:$0xff]
        %v611 = vld [vmem:[#allocation8 + $0x18] sm:$0xff]
        %v612 = vld [vmem:[#allocation8 + $0x20] sm:$0xff]
        %v613 = vld [vmem:[#allocation8 + $0x28] sm:$0xff]
        %v614 = vld [vmem:[#allocation8 + $0x30] sm:$0xff]
        %v615 = vld [vmem:[#allocation8 + $0x38] sm:$0xff]
        %v616 = vld [vmem:[#allocation8 + $0x40] sm:$0xff]
        %v617 = vld [vmem:[#allocation8 + $0x48] sm:$0xff]
        %v618 = vld [vmem:[#allocation8 + $0x50] sm:$0xff]
        %v619 = vld [vmem:[#allocation8 + $0x58] sm:$0xff]
        %v620 = vld [vmem:[#allocation8 + $0x60] sm:$0xff]
        %v621 = vld [vmem:[#allocation8 + $0x68] sm:$0xff]
        %v622 = vld [vmem:[#allocation8 + $0x70] sm:$0xff]
        %v623 = vld [vmem:[#allocation8 + $0x78] sm:$0xff]
        %v624 = vld [vmem:[#allocation8 + $0x80] sm:$0xff]
        %v625 = vld [vmem:[#allocation8 + $0x88] sm:$0xff]
        %v626 = vld [vmem:[#allocation8 + $0x90] sm:$0xff]
        %v627 = vld [vmem:[#allocation8 + $0x98] sm:$0xff]
        %v628 = vld [vmem:[#allocation8 + $0xa0] sm:$0xff]
        %v629 = vld [vmem:[#allocation8 + $0xa8] sm:$0xff]
        %v630 = vld [vmem:[#allocation8 + $0xb0] sm:$0xff]
        %v631 = vld [vmem:[#allocation8 + $0xb8] sm:$0xff]
        %v632 = vld [vmem:[#allocation8 + $0xc0] sm:$0xff]
        %v633 = vld [vmem:[#allocation8 + $0xc8] sm:$0xff]
        %v634 = vld [vmem:[#allocation8 + $0xd0] sm:$0xff]
        %v635 = vld [vmem:[#allocation8 + $0xd8] sm:$0xff]
        %v636 = vld [vmem:[#allocation8 + $0xe0] sm:$0xff]
        %v637 = vld [vmem:[#allocation8 + $0xe8] sm:$0xff]
        %v638 = vld [vmem:[#allocation8 + $0xf0] sm:$0xff]
        %v639 = vld [vmem:[#allocation8 + $0xf8] sm:$0xff]
        %v640 = vld [vmem:[#allocation8 + $0x100] sm:$0xff]
        %v641 = vld [vmem:[#allocation8 + $0x108] sm:$0xff]
        %v642 = vld [vmem:[#allocation8 + $0x110] sm:$0xff]
        %v643 = vld [vmem:[#allocation8 + $0x118] sm:$0xff]
        %v644 = vld [vmem:[#allocation8 + $0x120] sm:$0xff]
        %v645 = vld [vmem:[#allocation8 + $0x128] sm:$0xff]
        %v646 = vld [vmem:[#allocation8 + $0x130] sm:$0xff]
        %v647 = vld [vmem:[#allocation8 + $0x138] sm:$0xff]
        %v648 = vld [vmem:[#allocation8 + $0x140] sm:$0xff]
        %v649 = vld [vmem:[#allocation8 + $0x148] sm:$0xff]
        %v650 = vld [vmem:[#allocation8 + $0x150] sm:$0xff]
        %v651 = vld [vmem:[#allocation8 + $0x158] sm:$0xff]
        %v652 = vld [vmem:[#allocation8 + $0x160] sm:$0xff]
        %v653 = vld [vmem:[#allocation8 + $0x168] sm:$0xff]
        %v654 = vld [vmem:[#allocation8 + $0x170] sm:$0xff]
        %v655 = vld [vmem:[#allocation8 + $0x178] sm:$0xff]
        %v656 = vld [vmem:[#allocation8 + $0x180] sm:$0xff]
        %v657 = vld [vmem:[#allocation8 + $0x188] sm:$0xff]
        %v658 = vld [vmem:[#allocation8 + $0x190] sm:$0xff]
        %v659 = vld [vmem:[#allocation8 + $0x198] sm:$0xff]
        %v660 = vld [vmem:[#allocation8 + $0x1a0] sm:$0xff]
        %v661 = vld [vmem:[#allocation8 + $0x1a8] sm:$0xff]
        %v662 = vld [vmem:[#allocation8 + $0x1b0] sm:$0xff]
        %v663 = vld [vmem:[#allocation8 + $0x1b8] sm:$0xff]
        %v664 = vld [vmem:[#allocation8 + $0x1c0] sm:$0xff]
        %v665 = vld [vmem:[#allocation8 + $0x1c8] sm:$0xff]
        %v666 = vld [vmem:[#allocation8 + $0x1d0] sm:$0xff]
        %v667 = vld [vmem:[#allocation8 + $0x1d8] sm:$0xff]
        %v668 = vld [vmem:[#allocation8 + $0x1e0] sm:$0xff]
        %v669 = vld [vmem:[#allocation8 + $0x1e8] sm:$0xff]
        %v670 = vld [vmem:[#allocation8 + $0x1f0] sm:$0xff]
        %v671 = vld [vmem:[#allocation8 + $0x1f8] sm:$0xff]
        %v672 = vld [vmem:[#allocation8 + $0x200] sm:$0xff]
        %v673 = vld [vmem:[#allocation8 + $0x208] sm:$0xff]
        %v674 = vld [vmem:[#allocation8 + $0x210] sm:$0xff]
        %v675 = vld [vmem:[#allocation8 + $0x218] sm:$0xff]
        %v676 = vld [vmem:[#allocation8 + $0x220] sm:$0xff]
        %v677 = vld [vmem:[#allocation8 + $0x228] sm:$0xff]
        %v678 = vld [vmem:[#allocation8 + $0x230] sm:$0xff]
        %v679 = vld [vmem:[#allocation8 + $0x238] sm:$0xff]
        %v680 = vld [vmem:[#allocation8 + $0x240] sm:$0xff]
        %v681 = vld [vmem:[#allocation8 + $0x248] sm:$0xff]
        %v682 = vld [vmem:[#allocation8 + $0x250] sm:$0xff]
        %v683 = vld [vmem:[#allocation8 + $0x258] sm:$0xff]
        %v684 = vld [vmem:[#allocation8 + $0x260] sm:$0xff]
        %v685 = vld [vmem:[#allocation8 + $0x268] sm:$0xff]
        %v686 = vld [vmem:[#allocation8 + $0x270] sm:$0xff]
        %v687 = vld [vmem:[#allocation8 + $0x278] sm:$0xff]
        %v688 = vld [vmem:[#allocation8 + $0x280] sm:$0xff]
        %v689 = vld [vmem:[#allocation8 + $0x288] sm:$0xff]
        %v690 = vld [vmem:[#allocation8 + $0x290] sm:$0xff]
        %v691 = vld [vmem:[#allocation8 + $0x298] sm:$0xff]
        %v692 = vld [vmem:[#allocation8 + $0x2a0] sm:$0xff]
        %v693 = vld [vmem:[#allocation8 + $0x2a8] sm:$0xff]
        %v694 = vld [vmem:[#allocation8 + $0x2b0] sm:$0xff]
        %v695 = vld [vmem:[#allocation8 + $0x2b8] sm:$0xff]
        %v696 = vld [vmem:[#allocation8 + $0x2c0] sm:$0xff]
        %v697 = vld [vmem:[#allocation8 + $0x2c8] sm:$0xff]
        %v698 = vld [vmem:[#allocation8 + $0x2d0] sm:$0xff]
        %v699 = vld [vmem:[#allocation8 + $0x2d8] sm:$0xff]
        %v700 = vld [vmem:[#allocation8 + $0x2e0] sm:$0xff]
        %v701 = vld [vmem:[#allocation8 + $0x2e8] sm:$0xff]
        %v702 = vld [vmem:[#allocation8 + $0x2f0] sm:$0xff]
        %v703 = vld [vmem:[#allocation8 + $0x2f8] sm:$0xff]
        %v704 = vld [vmem:[#allocation8 + $0x300] sm:$0xff]
        %v705 = vld [vmem:[#allocation8 + $0x308] sm:$0xff]
        %v706 = vld [vmem:[#allocation8 + $0x310] sm:$0xff]
        %v707 = vld [vmem:[#allocation8 + $0x318] sm:$0xff]
        %v708 = vld [vmem:[#allocation8 + $0x320] sm:$0xff]
        %v709 = vld [vmem:[#allocation8 + $0x328] sm:$0xff]
        %v710 = vld [vmem:[#allocation8 + $0x330] sm:$0xff]
        %v711 = vld [vmem:[#allocation8 + $0x338] sm:$0xff]
        %v712 = vld [vmem:[#allocation8 + $0x340] sm:$0xff]
        %v713 = vld [vmem:[#allocation8 + $0x348] sm:$0xff]
        %v714 = vld [vmem:[#allocation8 + $0x350] sm:$0xff]
        %v715 = vld [vmem:[#allocation8 + $0x358] sm:$0xff]
        %v716 = vld [vmem:[#allocation8 + $0x360] sm:$0xff]
        %v717 = vld [vmem:[#allocation8 + $0x368] sm:$0xff]
        %v718 = vld [vmem:[#allocation8 + $0x370] sm:$0xff]
        %v719 = vld [vmem:[#allocation8 + $0x378] sm:$0xff]
        %v720 = vld [vmem:[#allocation8 + $0x380] sm:$0xff]
        %v721 = vld [vmem:[#allocation8 + $0x388] sm:$0xff]
        %v722 = vld [vmem:[#allocation8 + $0x390] sm:$0xff]
        %v723 = vld [vmem:[#allocation8 + $0x398] sm:$0xff]
        %v724 = vld [vmem:[#allocation8 + $0x3a0] sm:$0xff]
        %v725 = vld [vmem:[#allocation8 + $0x3a8] sm:$0xff]
        %v726 = vld [vmem:[#allocation8 + $0x3b0] sm:$0xff]
        %v727 = vld [vmem:[#allocation8 + $0x3b8] sm:$0xff]
        %v728 = vld [vmem:[#allocation8 + $0x3c0] sm:$0xff]
        %v729 = vld [vmem:[#allocation8 + $0x3c8] sm:$0xff]
        %v730 = vld [vmem:[#allocation8 + $0x3d0] sm:$0xff]
        %v731 = vld [vmem:[#allocation8 + $0x3d8] sm:$0xff]
        %v732 = vld [vmem:[#allocation8 + $0x3e0] sm:$0xff]
        %v733 = vld [vmem:[#allocation8 + $0x3e8] sm:$0xff]
        %v734 = vld [vmem:[#allocation8 + $0x3f0] sm:$0xff]
        %v735 = vld [vmem:[#allocation8 + $0x3f8] sm:$0xff]
        %v736 = vld [vmem:[#allocation10] sm:$0xf]
        %v738 = vperm.slane %v736, 0
        %v739 = vperm.slane %v736, 1
        %v740 = vperm.slane %v736, 2
        %v741 = vperm.slane %v736, 3
        %746 = vmatpush.msra.mxu0 %v668
        %747 = vmatpush.msra.mxu0 %v664
        %748 = vmatpush.msra.mxu0 %v660
        %749 = vmatpush.msra.mxu0 %v656
        %750 = vmatpush.msra.mxu0 %v652
        %751 = vmatpush.msra.mxu0 %v648
        %752 = vmatpush.msra.mxu0 %v644
        %753 = vmatpush.msra.mxu0 %v640
        %754 = vmatpush.msra.mxu0 %v636
        %755 = vmatpush.msra.mxu0 %v632
        %756 = vmatpush.msra.mxu0 %v628
        %757 = vmatpush.msra.mxu0 %v624
        %758 = vmatpush.msra.mxu0 %v620
        %759 = vmatpush.msra.mxu0 %v616
        %760 = vmatpush.msra.mxu0 %v612
        %761 = vmatpush.msra.mxu0 %v608
        %762 = vmatmul.f32.gmra.mxu0 %v606
        %v763 = vpop.f32.mrf.mxu0
        %v764 = vadd.f32 %v738, %v763
        %765 = vdwg.mxu0
        %766 = vmatpush.msra.mxu0 %v732
        %767 = vmatpush.msra.mxu0 %v728
        %768 = vmatpush.msra.mxu0 %v724
        %769 = vmatpush.msra.mxu0 %v720
        %770 = vmatpush.msra.mxu0 %v716
        %771 = vmatpush.msra.mxu0 %v712
        %772 = vmatpush.msra.mxu0 %v708
        %773 = vmatpush.msra.mxu0 %v704
        %774 = vmatpush.msra.mxu0 %v700
        %775 = vmatpush.msra.mxu0 %v696
        %776 = vmatpush.msra.mxu0 %v692
        %777 = vmatpush.msra.mxu0 %v688
        %778 = vmatpush.msra.mxu0 %v684
        %779 = vmatpush.msra.mxu0 %v680
        %780 = vmatpush.msra.mxu0 %v676
        %781 = vmatpush.msra.mxu0 %v672
        %782 = vmatmul.f32.gmra.mxu0 %v607
        %v783 = vpop.f32.mrf.mxu0
        %v784 = vadd.f32 %v764, %v783
        %785 = vdwg.mxu0
        %786 = vmatpush.msra.mxu0 %v669
        %787 = vmatpush.msra.mxu0 %v665
        %788 = vmatpush.msra.mxu0 %v661
        %789 = vmatpush.msra.mxu0 %v657
        %790 = vmatpush.msra.mxu0 %v653
        %791 = vmatpush.msra.mxu0 %v649
        %792 = vmatpush.msra.mxu0 %v645
        %793 = vmatpush.msra.mxu0 %v641
        %794 = vmatpush.msra.mxu0 %v637
        %795 = vmatpush.msra.mxu0 %v633
        %796 = vmatpush.msra.mxu0 %v629
        %797 = vmatpush.msra.mxu0 %v625
        %798 = vmatpush.msra.mxu0 %v621
        %799 = vmatpush.msra.mxu0 %v617
        %800 = vmatpush.msra.mxu0 %v613
        %801 = vmatpush.msra.mxu0 %v609
        %802 = vmatmul.f32.gmra.mxu0 %v606
        %v803 = vpop.f32.mrf.mxu0
        %v804 = vadd.f32 %v739, %v803
        %805 = vdwg.mxu0
        %806 = vmatpush.msra.mxu0 %v733
        %807 = vmatpush.msra.mxu0 %v729
        %808 = vmatpush.msra.mxu0 %v725
        %809 = vmatpush.msra.mxu0 %v721
        %810 = vmatpush.msra.mxu0 %v717
        %811 = vmatpush.msra.mxu0 %v713
        %812 = vmatpush.msra.mxu0 %v709
        %813 = vmatpush.msra.mxu0 %v705
        %814 = vmatpush.msra.mxu0 %v701
        %815 = vmatpush.msra.mxu0 %v697
        %816 = vmatpush.msra.mxu0 %v693
        %817 = vmatpush.msra.mxu0 %v689
        %818 = vmatpush.msra.mxu0 %v685
        %819 = vmatpush.msra.mxu0 %v681
        %820 = vmatpush.msra.mxu0 %v677
        %821 = vmatpush.msra.mxu0 %v673
        %822 = vmatmul.f32.gmra.mxu0 %v607
        %v823 = vpop.f32.mrf.mxu0
        %v824 = vadd.f32 %v804, %v823
        %825 = vdwg.mxu0
        %826 = vmatpush.msra.mxu0 %v670
        %827 = vmatpush.msra.mxu0 %v666
        %828 = vmatpush.msra.mxu0 %v662
        %829 = vmatpush.msra.mxu0 %v658
        %830 = vmatpush.msra.mxu0 %v654
        %831 = vmatpush.msra.mxu0 %v650
        %832 = vmatpush.msra.mxu0 %v646
        %833 = vmatpush.msra.mxu0 %v642
        %834 = vmatpush.msra.mxu0 %v638
        %835 = vmatpush.msra.mxu0 %v634
        %836 = vmatpush.msra.mxu0 %v630
        %837 = vmatpush.msra.mxu0 %v626
        %838 = vmatpush.msra.mxu0 %v622
        %839 = vmatpush.msra.mxu0 %v618
        %840 = vmatpush.msra.mxu0 %v614
        %841 = vmatpush.msra.mxu0 %v610
        %842 = vmatmul.f32.gmra.mxu0 %v606
        %v843 = vpop.f32.mrf.mxu0
        %v844 = vadd.f32 %v740, %v843
        %845 = vdwg.mxu0
        %846 = vmatpush.msra.mxu0 %v734
        %847 = vmatpush.msra.mxu0 %v730
        %848 = vmatpush.msra.mxu0 %v726
        %849 = vmatpush.msra.mxu0 %v722
        %850 = vmatpush.msra.mxu0 %v718
        %851 = vmatpush.msra.mxu0 %v714
        %852 = vmatpush.msra.mxu0 %v710
        %853 = vmatpush.msra.mxu0 %v706
        %854 = vmatpush.msra.mxu0 %v702
        %855 = vmatpush.msra.mxu0 %v698
        %856 = vmatpush.msra.mxu0 %v694
        %857 = vmatpush.msra.mxu0 %v690
        %858 = vmatpush.msra.mxu0 %v686
        %859 = vmatpush.msra.mxu0 %v682
        %860 = vmatpush.msra.mxu0 %v678
        %861 = vmatpush.msra.mxu0 %v674
        %862 = vmatmul.f32.gmra.mxu0 %v607
        %v863 = vpop.f32.mrf.mxu0
        %v864 = vadd.f32 %v844, %v863
        %865 = vdwg.mxu0
        %866 = vmatpush.msra.mxu0 %v671
        %867 = vmatpush.msra.mxu0 %v667
        %868 = vmatpush.msra.mxu0 %v663
        %869 = vmatpush.msra.mxu0 %v659
        %870 = vmatpush.msra.mxu0 %v655
        %871 = vmatpush.msra.mxu0 %v651
        %872 = vmatpush.msra.mxu0 %v647
        %873 = vmatpush.msra.mxu0 %v643
        %874 = vmatpush.msra.mxu0 %v639
        %875 = vmatpush.msra.mxu0 %v635
        %876 = vmatpush.msra.mxu0 %v631
        %877 = vmatpush.msra.mxu0 %v627
        %878 = vmatpush.msra.mxu0 %v623
        %879 = vmatpush.msra.mxu0 %v619
        %880 = vmatpush.msra.mxu0 %v615
        %881 = vmatpush.msra.mxu0 %v611
        %882 = vmatmul.f32.gmra.mxu0 %v606
        %v883 = vpop.f32.mrf.mxu0
        %v884 = vadd.f32 %v741, %v883
        %885 = vdwg.mxu0
        %886 = vmatpush.msra.mxu0 %v735
        %887 = vmatpush.msra.mxu0 %v731
        %888 = vmatpush.msra.mxu0 %v727
        %889 = vmatpush.msra.mxu0 %v723
        %890 = vmatpush.msra.mxu0 %v719
        %891 = vmatpush.msra.mxu0 %v715
        %892 = vmatpush.msra.mxu0 %v711
        %893 = vmatpush.msra.mxu0 %v707
        %894 = vmatpush.msra.mxu0 %v703
        %895 = vmatpush.msra.mxu0 %v699
        %896 = vmatpush.msra.mxu0 %v695
        %897 = vmatpush.msra.mxu0 %v691
        %898 = vmatpush.msra.mxu0 %v687
        %899 = vmatpush.msra.mxu0 %v683
        %900 = vmatpush.msra.mxu0 %v679
        %901 = vmatpush.msra.mxu0 %v675
        %902 = vmatmul.f32.gmra.mxu0 %v607
        %v903 = vpop.f32.mrf.mxu0
        %v904 = vadd.f32 %v884, %v903
        %905 = vdwg.mxu0
        %v906 = vxor.u32 %v784, 2147483648
        %v907 = vmul.f32 %v906, 1.442695
        %v908 = vpow.pop %v907
        %v909 = vadd.f32 %v908, 1.0
        %v910 = vrcp.pop %v909
        %v911 = vmul.f32 %v909, %v910
        %v912 = vsub.f32 1.0, %v911
        %v913 = vmul.f32 %v910, %v912
        %v914 = vadd.f32 %v910, %v913
        %vm915 = vweird.f32 %v909
        %vm916 = vweird.f32 %v910
        %vm917 = vmor %vm915, %vm916
        %v918 = vsel %vm917, %v910, %v914
        %v919 = vand.u32 2147483647, %v909
        %vm920 = vcmp.eq.f32.partialorder %v919, 8.507059e+37
        %v921 = vand.u32 %v909, 2147483648
        %v922 = vor.u32 1.1754944e-38, %v921
        %v923 = vsel %vm920, %v922, %v918
        %v924 = vmul.f32 1.0, %v923
        %v925 = vxor.u32 %v824, 2147483648
        %v926 = vmul.f32 %v925, 1.442695
        %v927 = vpow.pop %v926
        %v928 = vadd.f32 %v927, 1.0
        %v929 = vrcp.pop %v928
        %v930 = vmul.f32 %v928, %v929
        %v931 = vsub.f32 1.0, %v930
        %v932 = vmul.f32 %v929, %v931
        %v933 = vadd.f32 %v929, %v932
        %vm934 = vweird.f32 %v928
        %vm935 = vweird.f32 %v929
        %vm936 = vmor %vm934, %vm935
        %v937 = vsel %vm936, %v929, %v933
        %v938 = vand.u32 2147483647, %v928
        %vm939 = vcmp.eq.f32.partialorder %v938, 8.507059e+37
        %v940 = vand.u32 %v928, 2147483648
        %v941 = vor.u32 1.1754944e-38, %v940
        %v942 = vsel %vm939, %v941, %v937
        %v943 = vmul.f32 1.0, %v942
        %v944 = vtanh.pop %v864
        %v945 = vxor.u32 %v904, 2147483648
        %v946 = vmul.f32 %v945, 1.442695
        %v947 = vpow.pop %v946
        %v948 = vadd.f32 %v947, 1.0
        %v949 = vrcp.pop %v948
        %v950 = vmul.f32 %v948, %v949
        %v951 = vsub.f32 1.0, %v950
        %v952 = vmul.f32 %v949, %v951
        %v953 = vadd.f32 %v949, %v952
        %vm954 = vweird.f32 %v948
        %vm955 = vweird.f32 %v949
        %vm956 = vmor %vm954, %vm955
        %v957 = vsel %vm956, %v949, %v953
        %v958 = vand.u32 2147483647, %v948
        %vm959 = vcmp.eq.f32.partialorder %v958, 8.507059e+37
        %v960 = vand.u32 %v948, 2147483648
        %v961 = vor.u32 1.1754944e-38, %v960
        %v962 = vsel %vm959, %v961, %v957
        %v963 = vmul.f32 1.0, %v962
        %v964 = vld [vmem:[#allocation3] sm:$0xff]
        %v965 = vmul.f32 %v943, %v964
        %v966 = vmul.f32 %v924, %v944
        %v967 = vadd.f32 %v965, %v966
        %v968 = vtanh.pop %v967
        %v969 = vmul.f32 %v963, %v968
        %970 = vst [vmem:[#allocation3] sm:$0xff] %v967
        %971 = vst [vmem:[#allocation2] sm:$0xff] %v969
        %s972 = scalar_lea.vmem %s221, 8 [#allocation11]
        %973 = vst [vmem:[%s972] sm:$0xff] %v969
        %s974 = scalar_lea.vmem %s188, 16 [#allocation5]
        %v975 = vld [vmem:[%s974] sm:$0xff]
        %976 = vst [vmem:[#allocation4] sm:$0xff] %v975
        %v977 = vld [vmem:[#allocation2] sm:$0xff]
        %978 = vst [vmem:[#allocation4 + $0x8] sm:$0xff] %v977
        %v979 = vld [vmem:[#allocation4] sm:$0xff]
        %v980 = vld [vmem:[#allocation4 + $0x8] sm:$0xff]
        %v981 = vld [vmem:[#allocation8] sm:$0xff]
        %v982 = vld [vmem:[#allocation8 + $0x8] sm:$0xff]
        %v983 = vld [vmem:[#allocation8 + $0x10] sm:$0xff]
        %v984 = vld [vmem:[#allocation8 + $0x18] sm:$0xff]
        %v985 = vld [vmem:[#allocation8 + $0x20] sm:$0xff]
        %v986 = vld [vmem:[#allocation8 + $0x28] sm:$0xff]
        %v987 = vld [vmem:[#allocation8 + $0x30] sm:$0xff]
        %v988 = vld [vmem:[#allocation8 + $0x38] sm:$0xff]
        %v989 = vld [vmem:[#allocation8 + $0x40] sm:$0xff]
        %v990 = vld [vmem:[#allocation8 + $0x48] sm:$0xff]
        %v991 = vld [vmem:[#allocation8 + $0x50] sm:$0xff]
        %v992 = vld [vmem:[#allocation8 + $0x58] sm:$0xff]
        %v993 = vld [vmem:[#allocation8 + $0x60] sm:$0xff]
        %v994 = vld [vmem:[#allocation8 + $0x68] sm:$0xff]
        %v995 = vld [vmem:[#allocation8 + $0x70] sm:$0xff]
        %v996 = vld [vmem:[#allocation8 + $0x78] sm:$0xff]
        %v997 = vld [vmem:[#allocation8 + $0x80] sm:$0xff]
        %v998 = vld [vmem:[#allocation8 + $0x88] sm:$0xff]
        %v999 = vld [vmem:[#allocation8 + $0x90] sm:$0xff]
        %v1000 = vld [vmem:[#allocation8 + $0x98] sm:$0xff]
        %v1001 = vld [vmem:[#allocation8 + $0xa0] sm:$0xff]
        %v1002 = vld [vmem:[#allocation8 + $0xa8] sm:$0xff]
        %v1003 = vld [vmem:[#allocation8 + $0xb0] sm:$0xff]
        %v1004 = vld [vmem:[#allocation8 + $0xb8] sm:$0xff]
        %v1005 = vld [vmem:[#allocation8 + $0xc0] sm:$0xff]
        %v1006 = vld [vmem:[#allocation8 + $0xc8] sm:$0xff]
        %v1007 = vld [vmem:[#allocation8 + $0xd0] sm:$0xff]
        %v1008 = vld [vmem:[#allocation8 + $0xd8] sm:$0xff]
        %v1009 = vld [vmem:[#allocation8 + $0xe0] sm:$0xff]
        %v1010 = vld [vmem:[#allocation8 + $0xe8] sm:$0xff]
        %v1011 = vld [vmem:[#allocation8 + $0xf0] sm:$0xff]
        %v1012 = vld [vmem:[#allocation8 + $0xf8] sm:$0xff]
        %v1013 = vld [vmem:[#allocation8 + $0x100] sm:$0xff]
        %v1014 = vld [vmem:[#allocation8 + $0x108] sm:$0xff]
        %v1015 = vld [vmem:[#allocation8 + $0x110] sm:$0xff]
        %v1016 = vld [vmem:[#allocation8 + $0x118] sm:$0xff]
        %v1017 = vld [vmem:[#allocation8 + $0x120] sm:$0xff]
        %v1018 = vld [vmem:[#allocation8 + $0x128] sm:$0xff]
        %v1019 = vld [vmem:[#allocation8 + $0x130] sm:$0xff]
        %v1020 = vld [vmem:[#allocation8 + $0x138] sm:$0xff]
        %v1021 = vld [vmem:[#allocation8 + $0x140] sm:$0xff]
        %v1022 = vld [vmem:[#allocation8 + $0x148] sm:$0xff]
        %v1023 = vld [vmem:[#allocation8 + $0x150] sm:$0xff]
        %v1024 = vld [vmem:[#allocation8 + $0x158] sm:$0xff]
        %v1025 = vld [vmem:[#allocation8 + $0x160] sm:$0xff]
        %v1026 = vld [vmem:[#allocation8 + $0x168] sm:$0xff]
        %v1027 = vld [vmem:[#allocation8 + $0x170] sm:$0xff]
        %v1028 = vld [vmem:[#allocation8 + $0x178] sm:$0xff]
        %v1029 = vld [vmem:[#allocation8 + $0x180] sm:$0xff]
        %v1030 = vld [vmem:[#allocation8 + $0x188] sm:$0xff]
        %v1031 = vld [vmem:[#allocation8 + $0x190] sm:$0xff]
        %v1032 = vld [vmem:[#allocation8 + $0x198] sm:$0xff]
        %v1033 = vld [vmem:[#allocation8 + $0x1a0] sm:$0xff]
        %v1034 = vld [vmem:[#allocation8 + $0x1a8] sm:$0xff]
        %v1035 = vld [vmem:[#allocation8 + $0x1b0] sm:$0xff]
        %v1036 = vld [vmem:[#allocation8 + $0x1b8] sm:$0xff]
        %v1037 = vld [vmem:[#allocation8 + $0x1c0] sm:$0xff]
        %v1038 = vld [vmem:[#allocation8 + $0x1c8] sm:$0xff]
        %v1039 = vld [vmem:[#allocation8 + $0x1d0] sm:$0xff]
        %v1040 = vld [vmem:[#allocation8 + $0x1d8] sm:$0xff]
        %v1041 = vld [vmem:[#allocation8 + $0x1e0] sm:$0xff]
        %v1042 = vld [vmem:[#allocation8 + $0x1e8] sm:$0xff]
        %v1043 = vld [vmem:[#allocation8 + $0x1f0] sm:$0xff]
        %v1044 = vld [vmem:[#allocation8 + $0x1f8] sm:$0xff]
        %v1045 = vld [vmem:[#allocation8 + $0x200] sm:$0xff]
        %v1046 = vld [vmem:[#allocation8 + $0x208] sm:$0xff]
        %v1047 = vld [vmem:[#allocation8 + $0x210] sm:$0xff]
        %v1048 = vld [vmem:[#allocation8 + $0x218] sm:$0xff]
        %v1049 = vld [vmem:[#allocation8 + $0x220] sm:$0xff]
        %v1050 = vld [vmem:[#allocation8 + $0x228] sm:$0xff]
        %v1051 = vld [vmem:[#allocation8 + $0x230] sm:$0xff]
        %v1052 = vld [vmem:[#allocation8 + $0x238] sm:$0xff]
        %v1053 = vld [vmem:[#allocation8 + $0x240] sm:$0xff]
        %v1054 = vld [vmem:[#allocation8 + $0x248] sm:$0xff]
        %v1055 = vld [vmem:[#allocation8 + $0x250] sm:$0xff]
        %v1056 = vld [vmem:[#allocation8 + $0x258] sm:$0xff]
        %v1057 = vld [vmem:[#allocation8 + $0x260] sm:$0xff]
        %v1058 = vld [vmem:[#allocation8 + $0x268] sm:$0xff]
        %v1059 = vld [vmem:[#allocation8 + $0x270] sm:$0xff]
        %v1060 = vld [vmem:[#allocation8 + $0x278] sm:$0xff]
        %v1061 = vld [vmem:[#allocation8 + $0x280] sm:$0xff]
        %v1062 = vld [vmem:[#allocation8 + $0x288] sm:$0xff]
        %v1063 = vld [vmem:[#allocation8 + $0x290] sm:$0xff]
        %v1064 = vld [vmem:[#allocation8 + $0x298] sm:$0xff]
        %v1065 = vld [vmem:[#allocation8 + $0x2a0] sm:$0xff]
        %v1066 = vld [vmem:[#allocation8 + $0x2a8] sm:$0xff]
        %v1067 = vld [vmem:[#allocation8 + $0x2b0] sm:$0xff]
        %v1068 = vld [vmem:[#allocation8 + $0x2b8] sm:$0xff]
        %v1069 = vld [vmem:[#allocation8 + $0x2c0] sm:$0xff]
        %v1070 = vld [vmem:[#allocation8 + $0x2c8] sm:$0xff]
        %v1071 = vld [vmem:[#allocation8 + $0x2d0] sm:$0xff]
        %v1072 = vld [vmem:[#allocation8 + $0x2d8] sm:$0xff]
        %v1073 = vld [vmem:[#allocation8 + $0x2e0] sm:$0xff]
        %v1074 = vld [vmem:[#allocation8 + $0x2e8] sm:$0xff]
        %v1075 = vld [vmem:[#allocation8 + $0x2f0] sm:$0xff]
        %v1076 = vld [vmem:[#allocation8 + $0x2f8] sm:$0xff]
        %v1077 = vld [vmem:[#allocation8 + $0x300] sm:$0xff]
        %v1078 = vld [vmem:[#allocation8 + $0x308] sm:$0xff]
        %v1079 = vld [vmem:[#allocation8 + $0x310] sm:$0xff]
        %v1080 = vld [vmem:[#allocation8 + $0x318] sm:$0xff]
        %v1081 = vld [vmem:[#allocation8 + $0x320] sm:$0xff]
        %v1082 = vld [vmem:[#allocation8 + $0x328] sm:$0xff]
        %v1083 = vld [vmem:[#allocation8 + $0x330] sm:$0xff]
        %v1084 = vld [vmem:[#allocation8 + $0x338] sm:$0xff]
        %v1085 = vld [vmem:[#allocation8 + $0x340] sm:$0xff]
        %v1086 = vld [vmem:[#allocation8 + $0x348] sm:$0xff]
        %v1087 = vld [vmem:[#allocation8 + $0x350] sm:$0xff]
        %v1088 = vld [vmem:[#allocation8 + $0x358] sm:$0xff]
        %v1089 = vld [vmem:[#allocation8 + $0x360] sm:$0xff]
        %v1090 = vld [vmem:[#allocation8 + $0x368] sm:$0xff]
        %v1091 = vld [vmem:[#allocation8 + $0x370] sm:$0xff]
        %v1092 = vld [vmem:[#allocation8 + $0x378] sm:$0xff]
        %v1093 = vld [vmem:[#allocation8 + $0x380] sm:$0xff]
        %v1094 = vld [vmem:[#allocation8 + $0x388] sm:$0xff]
        %v1095 = vld [vmem:[#allocation8 + $0x390] sm:$0xff]
        %v1096 = vld [vmem:[#allocation8 + $0x398] sm:$0xff]
        %v1097 = vld [vmem:[#allocation8 + $0x3a0] sm:$0xff]
        %v1098 = vld [vmem:[#allocation8 + $0x3a8] sm:$0xff]
        %v1099 = vld [vmem:[#allocation8 + $0x3b0] sm:$0xff]
        %v1100 = vld [vmem:[#allocation8 + $0x3b8] sm:$0xff]
        %v1101 = vld [vmem:[#allocation8 + $0x3c0] sm:$0xff]
        %v1102 = vld [vmem:[#allocation8 + $0x3c8] sm:$0xff]
        %v1103 = vld [vmem:[#allocation8 + $0x3d0] sm:$0xff]
        %v1104 = vld [vmem:[#allocation8 + $0x3d8] sm:$0xff]
        %v1105 = vld [vmem:[#allocation8 + $0x3e0] sm:$0xff]
        %v1106 = vld [vmem:[#allocation8 + $0x3e8] sm:$0xff]
        %v1107 = vld [vmem:[#allocation8 + $0x3f0] sm:$0xff]
        %v1108 = vld [vmem:[#allocation8 + $0x3f8] sm:$0xff]
        %v1109 = vld [vmem:[#allocation10] sm:$0xf]
        %v1111 = vperm.slane %v1109, 0
        %v1112 = vperm.slane %v1109, 1
        %v1113 = vperm.slane %v1109, 2
        %v1114 = vperm.slane %v1109, 3
        %1119 = vmatpush.msra.mxu0 %v1041
        %1120 = vmatpush.msra.mxu0 %v1037
        %1121 = vmatpush.msra.mxu0 %v1033
        %1122 = vmatpush.msra.mxu0 %v1029
        %1123 = vmatpush.msra.mxu0 %v1025
        %1124 = vmatpush.msra.mxu0 %v1021
        %1125 = vmatpush.msra.mxu0 %v1017
        %1126 = vmatpush.msra.mxu0 %v1013
        %1127 = vmatpush.msra.mxu0 %v1009
        %1128 = vmatpush.msra.mxu0 %v1005
        %1129 = vmatpush.msra.mxu0 %v1001
        %1130 = vmatpush.msra.mxu0 %v997
        %1131 = vmatpush.msra.mxu0 %v993
        %1132 = vmatpush.msra.mxu0 %v989
        %1133 = vmatpush.msra.mxu0 %v985
        %1134 = vmatpush.msra.mxu0 %v981
        %1135 = vmatmul.f32.gmra.mxu0 %v979
        %v1136 = vpop.f32.mrf.mxu0
        %v1137 = vadd.f32 %v1111, %v1136
        %1138 = vdwg.mxu0
        %1139 = vmatpush.msra.mxu0 %v1105
        %1140 = vmatpush.msra.mxu0 %v1101
        %1141 = vmatpush.msra.mxu0 %v1097
        %1142 = vmatpush.msra.mxu0 %v1093
        %1143 = vmatpush.msra.mxu0 %v1089
        %1144 = vmatpush.msra.mxu0 %v1085
        %1145 = vmatpush.msra.mxu0 %v1081
        %1146 = vmatpush.msra.mxu0 %v1077
        %1147 = vmatpush.msra.mxu0 %v1073
        %1148 = vmatpush.msra.mxu0 %v1069
        %1149 = vmatpush.msra.mxu0 %v1065
        %1150 = vmatpush.msra.mxu0 %v1061
        %1151 = vmatpush.msra.mxu0 %v1057
        %1152 = vmatpush.msra.mxu0 %v1053
        %1153 = vmatpush.msra.mxu0 %v1049
        %1154 = vmatpush.msra.mxu0 %v1045
        %1155 = vmatmul.f32.gmra.mxu0 %v980
        %v1156 = vpop.f32.mrf.mxu0
        %v1157 = vadd.f32 %v1137, %v1156
        %1158 = vdwg.mxu0
        %1159 = vmatpush.msra.mxu0 %v1042
        %1160 = vmatpush.msra.mxu0 %v1038
        %1161 = vmatpush.msra.mxu0 %v1034
        %1162 = vmatpush.msra.mxu0 %v1030
        %1163 = vmatpush.msra.mxu0 %v1026
        %1164 = vmatpush.msra.mxu0 %v1022
        %1165 = vmatpush.msra.mxu0 %v1018
        %1166 = vmatpush.msra.mxu0 %v1014
        %1167 = vmatpush.msra.mxu0 %v1010
        %1168 = vmatpush.msra.mxu0 %v1006
        %1169 = vmatpush.msra.mxu0 %v1002
        %1170 = vmatpush.msra.mxu0 %v998
        %1171 = vmatpush.msra.mxu0 %v994
        %1172 = vmatpush.msra.mxu0 %v990
        %1173 = vmatpush.msra.mxu0 %v986
        %1174 = vmatpush.msra.mxu0 %v982
        %1175 = vmatmul.f32.gmra.mxu0 %v979
        %v1176 = vpop.f32.mrf.mxu0
        %v1177 = vadd.f32 %v1112, %v1176
        %1178 = vdwg.mxu0
        %1179 = vmatpush.msra.mxu0 %v1106
        %1180 = vmatpush.msra.mxu0 %v1102
        %1181 = vmatpush.msra.mxu0 %v1098
        %1182 = vmatpush.msra.mxu0 %v1094
        %1183 = vmatpush.msra.mxu0 %v1090
        %1184 = vmatpush.msra.mxu0 %v1086
        %1185 = vmatpush.msra.mxu0 %v1082
        %1186 = vmatpush.msra.mxu0 %v1078
        %1187 = vmatpush.msra.mxu0 %v1074
        %1188 = vmatpush.msra.mxu0 %v1070
        %1189 = vmatpush.msra.mxu0 %v1066
        %1190 = vmatpush.msra.mxu0 %v1062
        %1191 = vmatpush.msra.mxu0 %v1058
        %1192 = vmatpush.msra.mxu0 %v1054
        %1193 = vmatpush.msra.mxu0 %v1050
        %1194 = vmatpush.msra.mxu0 %v1046
        %1195 = vmatmul.f32.gmra.mxu0 %v980
        %v1196 = vpop.f32.mrf.mxu0
        %v1197 = vadd.f32 %v1177, %v1196
        %1198 = vdwg.mxu0
        %1199 = vmatpush.msra.mxu0 %v1043
        %1200 = vmatpush.msra.mxu0 %v1039
        %1201 = vmatpush.msra.mxu0 %v1035
        %1202 = vmatpush.msra.mxu0 %v1031
        %1203 = vmatpush.msra.mxu0 %v1027
        %1204 = vmatpush.msra.mxu0 %v1023
        %1205 = vmatpush.msra.mxu0 %v1019
        %1206 = vmatpush.msra.mxu0 %v1015
        %1207 = vmatpush.msra.mxu0 %v1011
        %1208 = vmatpush.msra.mxu0 %v1007
        %1209 = vmatpush.msra.mxu0 %v1003
        %1210 = vmatpush.msra.mxu0 %v999
        %1211 = vmatpush.msra.mxu0 %v995
        %1212 = vmatpush.msra.mxu0 %v991
        %1213 = vmatpush.msra.mxu0 %v987
        %1214 = vmatpush.msra.mxu0 %v983
        %1215 = vmatmul.f32.gmra.mxu0 %v979
        %v1216 = vpop.f32.mrf.mxu0
        %v1217 = vadd.f32 %v1113, %v1216
        %1218 = vdwg.mxu0
        %1219 = vmatpush.msra.mxu0 %v1107
        %1220 = vmatpush.msra.mxu0 %v1103
        %1221 = vmatpush.msra.mxu0 %v1099
        %1222 = vmatpush.msra.mxu0 %v1095
        %1223 = vmatpush.msra.mxu0 %v1091
        %1224 = vmatpush.msra.mxu0 %v1087
        %1225 = vmatpush.msra.mxu0 %v1083
        %1226 = vmatpush.msra.mxu0 %v1079
        %1227 = vmatpush.msra.mxu0 %v1075
        %1228 = vmatpush.msra.mxu0 %v1071
        %1229 = vmatpush.msra.mxu0 %v1067
        %1230 = vmatpush.msra.mxu0 %v1063
        %1231 = vmatpush.msra.mxu0 %v1059
        %1232 = vmatpush.msra.mxu0 %v1055
        %1233 = vmatpush.msra.mxu0 %v1051
        %1234 = vmatpush.msra.mxu0 %v1047
        %1235 = vmatmul.f32.gmra.mxu0 %v980
        %v1236 = vpop.f32.mrf.mxu0
        %v1237 = vadd.f32 %v1217, %v1236
        %1238 = vdwg.mxu0
        %1239 = vmatpush.msra.mxu0 %v1044
        %1240 = vmatpush.msra.mxu0 %v1040
        %1241 = vmatpush.msra.mxu0 %v1036
        %1242 = vmatpush.msra.mxu0 %v1032
        %1243 = vmatpush.msra.mxu0 %v1028
        %1244 = vmatpush.msra.mxu0 %v1024
        %1245 = vmatpush.msra.mxu0 %v1020
        %1246 = vmatpush.msra.mxu0 %v1016
        %1247 = vmatpush.msra.mxu0 %v1012
        %1248 = vmatpush.msra.mxu0 %v1008
        %1249 = vmatpush.msra.mxu0 %v1004
        %1250 = vmatpush.msra.mxu0 %v1000
        %1251 = vmatpush.msra.mxu0 %v996
        %1252 = vmatpush.msra.mxu0 %v992
        %1253 = vmatpush.msra.mxu0 %v988
        %1254 = vmatpush.msra.mxu0 %v984
        %1255 = vmatmul.f32.gmra.mxu0 %v979
        %v1256 = vpop.f32.mrf.mxu0
        %v1257 = vadd.f32 %v1114, %v1256
        %1258 = vdwg.mxu0
        %1259 = vmatpush.msra.mxu0 %v1108
        %1260 = vmatpush.msra.mxu0 %v1104
        %1261 = vmatpush.msra.mxu0 %v1100
        %1262 = vmatpush.msra.mxu0 %v1096
        %1263 = vmatpush.msra.mxu0 %v1092
        %1264 = vmatpush.msra.mxu0 %v1088
        %1265 = vmatpush.msra.mxu0 %v1084
        %1266 = vmatpush.msra.mxu0 %v1080
        %1267 = vmatpush.msra.mxu0 %v1076
        %1268 = vmatpush.msra.mxu0 %v1072
        %1269 = vmatpush.msra.mxu0 %v1068
        %1270 = vmatpush.msra.mxu0 %v1064
        %1271 = vmatpush.msra.mxu0 %v1060
        %1272 = vmatpush.msra.mxu0 %v1056
        %1273 = vmatpush.msra.mxu0 %v1052
        %1274 = vmatpush.msra.mxu0 %v1048
        %1275 = vmatmul.f32.gmra.mxu0 %v980
        %v1276 = vpop.f32.mrf.mxu0
        %v1277 = vadd.f32 %v1257, %v1276
        %1278 = vdwg.mxu0
        %v1279 = vxor.u32 %v1157, 2147483648
        %v1280 = vmul.f32 %v1279, 1.442695
        %v1281 = vpow.pop %v1280
        %v1282 = vadd.f32 %v1281, 1.0
        %v1283 = vrcp.pop %v1282
        %v1284 = vmul.f32 %v1282, %v1283
        %v1285 = vsub.f32 1.0, %v1284
        %v1286 = vmul.f32 %v1283, %v1285
        %v1287 = vadd.f32 %v1283, %v1286
        %vm1288 = vweird.f32 %v1282
        %vm1289 = vweird.f32 %v1283
        %vm1290 = vmor %vm1288, %vm1289
        %v1291 = vsel %vm1290, %v1283, %v1287
        %v1292 = vand.u32 2147483647, %v1282
        %vm1293 = vcmp.eq.f32.partialorder %v1292, 8.507059e+37
        %v1294 = vand.u32 %v1282, 2147483648
        %v1295 = vor.u32 1.1754944e-38, %v1294
        %v1296 = vsel %vm1293, %v1295, %v1291
        %v1297 = vmul.f32 1.0, %v1296
        %v1298 = vxor.u32 %v1197, 2147483648
        %v1299 = vmul.f32 %v1298, 1.442695
        %v1300 = vpow.pop %v1299
        %v1301 = vadd.f32 %v1300, 1.0
        %v1302 = vrcp.pop %v1301
        %v1303 = vmul.f32 %v1301, %v1302
        %v1304 = vsub.f32 1.0, %v1303
        %v1305 = vmul.f32 %v1302, %v1304
        %v1306 = vadd.f32 %v1302, %v1305
        %vm1307 = vweird.f32 %v1301
        %vm1308 = vweird.f32 %v1302
        %vm1309 = vmor %vm1307, %vm1308
        %v1310 = vsel %vm1309, %v1302, %v1306
        %v1311 = vand.u32 2147483647, %v1301
        %vm1312 = vcmp.eq.f32.partialorder %v1311, 8.507059e+37
        %v1313 = vand.u32 %v1301, 2147483648
        %v1314 = vor.u32 1.1754944e-38, %v1313
        %v1315 = vsel %vm1312, %v1314, %v1310
        %v1316 = vmul.f32 1.0, %v1315
        %v1317 = vtanh.pop %v1237
        %v1318 = vxor.u32 %v1277, 2147483648
        %v1319 = vmul.f32 %v1318, 1.442695
        %v1320 = vpow.pop %v1319
        %v1321 = vadd.f32 %v1320, 1.0
        %v1322 = vrcp.pop %v1321
        %v1323 = vmul.f32 %v1321, %v1322
        %v1324 = vsub.f32 1.0, %v1323
        %v1325 = vmul.f32 %v1322, %v1324
        %v1326 = vadd.f32 %v1322, %v1325
        %vm1327 = vweird.f32 %v1321
        %vm1328 = vweird.f32 %v1322
        %vm1329 = vmor %vm1327, %vm1328
        %v1330 = vsel %vm1329, %v1322, %v1326
        %v1331 = vand.u32 2147483647, %v1321
        %vm1332 = vcmp.eq.f32.partialorder %v1331, 8.507059e+37
        %v1333 = vand.u32 %v1321, 2147483648
        %v1334 = vor.u32 1.1754944e-38, %v1333
        %v1335 = vsel %vm1332, %v1334, %v1330
        %v1336 = vmul.f32 1.0, %v1335
        %v1337 = vld [vmem:[#allocation3] sm:$0xff]
        %v1338 = vmul.f32 %v1316, %v1337
        %v1339 = vmul.f32 %v1297, %v1317
        %v1340 = vadd.f32 %v1338, %v1339
        %v1341 = vtanh.pop %v1340
        %v1342 = vmul.f32 %v1336, %v1341
        %1343 = vst [vmem:[#allocation3] sm:$0xff] %v1340
        %1344 = vst [vmem:[#allocation2] sm:$0xff] %v1342
        %s1345 = scalar_lea.vmem %s221, 16 [#allocation11]
        %1346 = vst [vmem:[%s1345] sm:$0xff] %v1342
        %s1347 = scalar_lea.vmem %s188, 24 [#allocation5]
        %v1348 = vld [vmem:[%s1347] sm:$0xff]
        %1349 = vst [vmem:[#allocation4] sm:$0xff] %v1348
        %v1350 = vld [vmem:[#allocation2] sm:$0xff]
        %1351 = vst [vmem:[#allocation4 + $0x8] sm:$0xff] %v1350
        %v1352 = vld [vmem:[#allocation4] sm:$0xff]
        %v1353 = vld [vmem:[#allocation4 + $0x8] sm:$0xff]
        %v1354 = vld [vmem:[#allocation8] sm:$0xff]
        %v1355 = vld [vmem:[#allocation8 + $0x8] sm:$0xff]
        %v1356 = vld [vmem:[#allocation8 + $0x10] sm:$0xff]
        %v1357 = vld [vmem:[#allocation8 + $0x18] sm:$0xff]
        %v1358 = vld [vmem:[#allocation8 + $0x20] sm:$0xff]
        %v1359 = vld [vmem:[#allocation8 + $0x28] sm:$0xff]
        %v1360 = vld [vmem:[#allocation8 + $0x30] sm:$0xff]
        %v1361 = vld [vmem:[#allocation8 + $0x38] sm:$0xff]
        %v1362 = vld [vmem:[#allocation8 + $0x40] sm:$0xff]
        %v1363 = vld [vmem:[#allocation8 + $0x48] sm:$0xff]
        %v1364 = vld [vmem:[#allocation8 + $0x50] sm:$0xff]
        %v1365 = vld [vmem:[#allocation8 + $0x58] sm:$0xff]
        %v1366 = vld [vmem:[#allocation8 + $0x60] sm:$0xff]
        %v1367 = vld [vmem:[#allocation8 + $0x68] sm:$0xff]
        %v1368 = vld [vmem:[#allocation8 + $0x70] sm:$0xff]
        %v1369 = vld [vmem:[#allocation8 + $0x78] sm:$0xff]
        %v1370 = vld [vmem:[#allocation8 + $0x80] sm:$0xff]
        %v1371 = vld [vmem:[#allocation8 + $0x88] sm:$0xff]
        %v1372 = vld [vmem:[#allocation8 + $0x90] sm:$0xff]
        %v1373 = vld [vmem:[#allocation8 + $0x98] sm:$0xff]
        %v1374 = vld [vmem:[#allocation8 + $0xa0] sm:$0xff]
        %v1375 = vld [vmem:[#allocation8 + $0xa8] sm:$0xff]
        %v1376 = vld [vmem:[#allocation8 + $0xb0] sm:$0xff]
        %v1377 = vld [vmem:[#allocation8 + $0xb8] sm:$0xff]
        %v1378 = vld [vmem:[#allocation8 + $0xc0] sm:$0xff]
        %v1379 = vld [vmem:[#allocation8 + $0xc8] sm:$0xff]
        %v1380 = vld [vmem:[#allocation8 + $0xd0] sm:$0xff]
        %v1381 = vld [vmem:[#allocation8 + $0xd8] sm:$0xff]
        %v1382 = vld [vmem:[#allocation8 + $0xe0] sm:$0xff]
        %v1383 = vld [vmem:[#allocation8 + $0xe8] sm:$0xff]
        %v1384 = vld [vmem:[#allocation8 + $0xf0] sm:$0xff]
        %v1385 = vld [vmem:[#allocation8 + $0xf8] sm:$0xff]
        %v1386 = vld [vmem:[#allocation8 + $0x100] sm:$0xff]
        %v1387 = vld [vmem:[#allocation8 + $0x108] sm:$0xff]
        %v1388 = vld [vmem:[#allocation8 + $0x110] sm:$0xff]
        %v1389 = vld [vmem:[#allocation8 + $0x118] sm:$0xff]
        %v1390 = vld [vmem:[#allocation8 + $0x120] sm:$0xff]
        %v1391 = vld [vmem:[#allocation8 + $0x128] sm:$0xff]
        %v1392 = vld [vmem:[#allocation8 + $0x130] sm:$0xff]
        %v1393 = vld [vmem:[#allocation8 + $0x138] sm:$0xff]
        %v1394 = vld [vmem:[#allocation8 + $0x140] sm:$0xff]
        %v1395 = vld [vmem:[#allocation8 + $0x148] sm:$0xff]
        %v1396 = vld [vmem:[#allocation8 + $0x150] sm:$0xff]
        %v1397 = vld [vmem:[#allocation8 + $0x158] sm:$0xff]
        %v1398 = vld [vmem:[#allocation8 + $0x160] sm:$0xff]
        %v1399 = vld [vmem:[#allocation8 + $0x168] sm:$0xff]
        %v1400 = vld [vmem:[#allocation8 + $0x170] sm:$0xff]
        %v1401 = vld [vmem:[#allocation8 + $0x178] sm:$0xff]
        %v1402 = vld [vmem:[#allocation8 + $0x180] sm:$0xff]
        %v1403 = vld [vmem:[#allocation8 + $0x188] sm:$0xff]
        %v1404 = vld [vmem:[#allocation8 + $0x190] sm:$0xff]
        %v1405 = vld [vmem:[#allocation8 + $0x198] sm:$0xff]
        %v1406 = vld [vmem:[#allocation8 + $0x1a0] sm:$0xff]
        %v1407 = vld [vmem:[#allocation8 + $0x1a8] sm:$0xff]
        %v1408 = vld [vmem:[#allocation8 + $0x1b0] sm:$0xff]
        %v1409 = vld [vmem:[#allocation8 + $0x1b8] sm:$0xff]
        %v1410 = vld [vmem:[#allocation8 + $0x1c0] sm:$0xff]
        %v1411 = vld [vmem:[#allocation8 + $0x1c8] sm:$0xff]
        %v1412 = vld [vmem:[#allocation8 + $0x1d0] sm:$0xff]
        %v1413 = vld [vmem:[#allocation8 + $0x1d8] sm:$0xff]
        %v1414 = vld [vmem:[#allocation8 + $0x1e0] sm:$0xff]
        %v1415 = vld [vmem:[#allocation8 + $0x1e8] sm:$0xff]
        %v1416 = vld [vmem:[#allocation8 + $0x1f0] sm:$0xff]
        %v1417 = vld [vmem:[#allocation8 + $0x1f8] sm:$0xff]
        %v1418 = vld [vmem:[#allocation8 + $0x200] sm:$0xff]
        %v1419 = vld [vmem:[#allocation8 + $0x208] sm:$0xff]
        %v1420 = vld [vmem:[#allocation8 + $0x210] sm:$0xff]
        %v1421 = vld [vmem:[#allocation8 + $0x218] sm:$0xff]
        %v1422 = vld [vmem:[#allocation8 + $0x220] sm:$0xff]
        %v1423 = vld [vmem:[#allocation8 + $0x228] sm:$0xff]
        %v1424 = vld [vmem:[#allocation8 + $0x230] sm:$0xff]
        %v1425 = vld [vmem:[#allocation8 + $0x238] sm:$0xff]
        %v1426 = vld [vmem:[#allocation8 + $0x240] sm:$0xff]
        %v1427 = vld [vmem:[#allocation8 + $0x248] sm:$0xff]
        %v1428 = vld [vmem:[#allocation8 + $0x250] sm:$0xff]
        %v1429 = vld [vmem:[#allocation8 + $0x258] sm:$0xff]
        %v1430 = vld [vmem:[#allocation8 + $0x260] sm:$0xff]
        %v1431 = vld [vmem:[#allocation8 + $0x268] sm:$0xff]
        %v1432 = vld [vmem:[#allocation8 + $0x270] sm:$0xff]
        %v1433 = vld [vmem:[#allocation8 + $0x278] sm:$0xff]
        %v1434 = vld [vmem:[#allocation8 + $0x280] sm:$0xff]
        %v1435 = vld [vmem:[#allocation8 + $0x288] sm:$0xff]
        %v1436 = vld [vmem:[#allocation8 + $0x290] sm:$0xff]
        %v1437 = vld [vmem:[#allocation8 + $0x298] sm:$0xff]
        %v1438 = vld [vmem:[#allocation8 + $0x2a0] sm:$0xff]
        %v1439 = vld [vmem:[#allocation8 + $0x2a8] sm:$0xff]
        %v1440 = vld [vmem:[#allocation8 + $0x2b0] sm:$0xff]
        %v1441 = vld [vmem:[#allocation8 + $0x2b8] sm:$0xff]
        %v1442 = vld [vmem:[#allocation8 + $0x2c0] sm:$0xff]
        %v1443 = vld [vmem:[#allocation8 + $0x2c8] sm:$0xff]
        %v1444 = vld [vmem:[#allocation8 + $0x2d0] sm:$0xff]
        %v1445 = vld [vmem:[#allocation8 + $0x2d8] sm:$0xff]
        %v1446 = vld [vmem:[#allocation8 + $0x2e0] sm:$0xff]
        %v1447 = vld [vmem:[#allocation8 + $0x2e8] sm:$0xff]
        %v1448 = vld [vmem:[#allocation8 + $0x2f0] sm:$0xff]
        %v1449 = vld [vmem:[#allocation8 + $0x2f8] sm:$0xff]
        %v1450 = vld [vmem:[#allocation8 + $0x300] sm:$0xff]
        %v1451 = vld [vmem:[#allocation8 + $0x308] sm:$0xff]
        %v1452 = vld [vmem:[#allocation8 + $0x310] sm:$0xff]
        %v1453 = vld [vmem:[#allocation8 + $0x318] sm:$0xff]
        %v1454 = vld [vmem:[#allocation8 + $0x320] sm:$0xff]
        %v1455 = vld [vmem:[#allocation8 + $0x328] sm:$0xff]
        %v1456 = vld [vmem:[#allocation8 + $0x330] sm:$0xff]
        %v1457 = vld [vmem:[#allocation8 + $0x338] sm:$0xff]
        %v1458 = vld [vmem:[#allocation8 + $0x340] sm:$0xff]
        %v1459 = vld [vmem:[#allocation8 + $0x348] sm:$0xff]
        %v1460 = vld [vmem:[#allocation8 + $0x350] sm:$0xff]
        %v1461 = vld [vmem:[#allocation8 + $0x358] sm:$0xff]
        %v1462 = vld [vmem:[#allocation8 + $0x360] sm:$0xff]
        %v1463 = vld [vmem:[#allocation8 + $0x368] sm:$0xff]
        %v1464 = vld [vmem:[#allocation8 + $0x370] sm:$0xff]
        %v1465 = vld [vmem:[#allocation8 + $0x378] sm:$0xff]
        %v1466 = vld [vmem:[#allocation8 + $0x380] sm:$0xff]
        %v1467 = vld [vmem:[#allocation8 + $0x388] sm:$0xff]
        %v1468 = vld [vmem:[#allocation8 + $0x390] sm:$0xff]
        %v1469 = vld [vmem:[#allocation8 + $0x398] sm:$0xff]
        %v1470 = vld [vmem:[#allocation8 + $0x3a0] sm:$0xff]
        %v1471 = vld [vmem:[#allocation8 + $0x3a8] sm:$0xff]
        %v1472 = vld [vmem:[#allocation8 + $0x3b0] sm:$0xff]
        %v1473 = vld [vmem:[#allocation8 + $0x3b8] sm:$0xff]
        %v1474 = vld [vmem:[#allocation8 + $0x3c0] sm:$0xff]
        %v1475 = vld [vmem:[#allocation8 + $0x3c8] sm:$0xff]
        %v1476 = vld [vmem:[#allocation8 + $0x3d0] sm:$0xff]
        %v1477 = vld [vmem:[#allocation8 + $0x3d8] sm:$0xff]
        %v1478 = vld [vmem:[#allocation8 + $0x3e0] sm:$0xff]
        %v1479 = vld [vmem:[#allocation8 + $0x3e8] sm:$0xff]
        %v1480 = vld [vmem:[#allocation8 + $0x3f0] sm:$0xff]
        %v1481 = vld [vmem:[#allocation8 + $0x3f8] sm:$0xff]
        %v1482 = vld [vmem:[#allocation10] sm:$0xf]
        %v1484 = vperm.slane %v1482, 0
        %v1485 = vperm.slane %v1482, 1
        %v1486 = vperm.slane %v1482, 2
        %v1487 = vperm.slane %v1482, 3
        %1492 = vmatpush.msra.mxu0 %v1414
        %1493 = vmatpush.msra.mxu0 %v1410
        %1494 = vmatpush.msra.mxu0 %v1406
        %1495 = vmatpush.msra.mxu0 %v1402
        %1496 = vmatpush.msra.mxu0 %v1398
        %1497 = vmatpush.msra.mxu0 %v1394
        %1498 = vmatpush.msra.mxu0 %v1390
        %1499 = vmatpush.msra.mxu0 %v1386
        %1500 = vmatpush.msra.mxu0 %v1382
        %1501 = vmatpush.msra.mxu0 %v1378
        %1502 = vmatpush.msra.mxu0 %v1374
        %1503 = vmatpush.msra.mxu0 %v1370
        %1504 = vmatpush.msra.mxu0 %v1366
        %1505 = vmatpush.msra.mxu0 %v1362
        %1506 = vmatpush.msra.mxu0 %v1358
        %1507 = vmatpush.msra.mxu0 %v1354
        %1508 = vmatmul.f32.gmra.mxu0 %v1352
        %v1509 = vpop.f32.mrf.mxu0
        %v1510 = vadd.f32 %v1484, %v1509
        %1511 = vdwg.mxu0
        %1512 = vmatpush.msra.mxu0 %v1478
        %1513 = vmatpush.msra.mxu0 %v1474
        %1514 = vmatpush.msra.mxu0 %v1470
        %1515 = vmatpush.msra.mxu0 %v1466
        %1516 = vmatpush.msra.mxu0 %v1462
        %1517 = vmatpush.msra.mxu0 %v1458
        %1518 = vmatpush.msra.mxu0 %v1454
        %1519 = vmatpush.msra.mxu0 %v1450
        %1520 = vmatpush.msra.mxu0 %v1446
        %1521 = vmatpush.msra.mxu0 %v1442
        %1522 = vmatpush.msra.mxu0 %v1438
        %1523 = vmatpush.msra.mxu0 %v1434
        %1524 = vmatpush.msra.mxu0 %v1430
        %1525 = vmatpush.msra.mxu0 %v1426
        %1526 = vmatpush.msra.mxu0 %v1422
        %1527 = vmatpush.msra.mxu0 %v1418
        %1528 = vmatmul.f32.gmra.mxu0 %v1353
        %v1529 = vpop.f32.mrf.mxu0
        %v1530 = vadd.f32 %v1510, %v1529
        %1531 = vdwg.mxu0
        %1532 = vmatpush.msra.mxu0 %v1415
        %1533 = vmatpush.msra.mxu0 %v1411
        %1534 = vmatpush.msra.mxu0 %v1407
        %1535 = vmatpush.msra.mxu0 %v1403
        %1536 = vmatpush.msra.mxu0 %v1399
        %1537 = vmatpush.msra.mxu0 %v1395
        %1538 = vmatpush.msra.mxu0 %v1391
        %1539 = vmatpush.msra.mxu0 %v1387
        %1540 = vmatpush.msra.mxu0 %v1383
        %1541 = vmatpush.msra.mxu0 %v1379
        %1542 = vmatpush.msra.mxu0 %v1375
        %1543 = vmatpush.msra.mxu0 %v1371
        %1544 = vmatpush.msra.mxu0 %v1367
        %1545 = vmatpush.msra.mxu0 %v1363
        %1546 = vmatpush.msra.mxu0 %v1359
        %1547 = vmatpush.msra.mxu0 %v1355
        %1548 = vmatmul.f32.gmra.mxu0 %v1352
        %v1549 = vpop.f32.mrf.mxu0
        %v1550 = vadd.f32 %v1485, %v1549
        %1551 = vdwg.mxu0
        %1552 = vmatpush.msra.mxu0 %v1479
        %1553 = vmatpush.msra.mxu0 %v1475
        %1554 = vmatpush.msra.mxu0 %v1471
        %1555 = vmatpush.msra.mxu0 %v1467
        %1556 = vmatpush.msra.mxu0 %v1463
        %1557 = vmatpush.msra.mxu0 %v1459
        %1558 = vmatpush.msra.mxu0 %v1455
        %1559 = vmatpush.msra.mxu0 %v1451
        %1560 = vmatpush.msra.mxu0 %v1447
        %1561 = vmatpush.msra.mxu0 %v1443
        %1562 = vmatpush.msra.mxu0 %v1439
        %1563 = vmatpush.msra.mxu0 %v1435
        %1564 = vmatpush.msra.mxu0 %v1431
        %1565 = vmatpush.msra.mxu0 %v1427
        %1566 = vmatpush.msra.mxu0 %v1423
        %1567 = vmatpush.msra.mxu0 %v1419
        %1568 = vmatmul.f32.gmra.mxu0 %v1353
        %v1569 = vpop.f32.mrf.mxu0
        %v1570 = vadd.f32 %v1550, %v1569
        %1571 = vdwg.mxu0
        %1572 = vmatpush.msra.mxu0 %v1416
        %1573 = vmatpush.msra.mxu0 %v1412
        %1574 = vmatpush.msra.mxu0 %v1408
        %1575 = vmatpush.msra.mxu0 %v1404
        %1576 = vmatpush.msra.mxu0 %v1400
        %1577 = vmatpush.msra.mxu0 %v1396
        %1578 = vmatpush.msra.mxu0 %v1392
        %1579 = vmatpush.msra.mxu0 %v1388
        %1580 = vmatpush.msra.mxu0 %v1384
        %1581 = vmatpush.msra.mxu0 %v1380
        %1582 = vmatpush.msra.mxu0 %v1376
        %1583 = vmatpush.msra.mxu0 %v1372
        %1584 = vmatpush.msra.mxu0 %v1368
        %1585 = vmatpush.msra.mxu0 %v1364
        %1586 = vmatpush.msra.mxu0 %v1360
        %1587 = vmatpush.msra.mxu0 %v1356
        %1588 = vmatmul.f32.gmra.mxu0 %v1352
        %v1589 = vpop.f32.mrf.mxu0
        %v1590 = vadd.f32 %v1486, %v1589
        %1591 = vdwg.mxu0
        %1592 = vmatpush.msra.mxu0 %v1480
        %1593 = vmatpush.msra.mxu0 %v1476
        %1594 = vmatpush.msra.mxu0 %v1472
        %1595 = vmatpush.msra.mxu0 %v1468
        %1596 = vmatpush.msra.mxu0 %v1464
        %1597 = vmatpush.msra.mxu0 %v1460
        %1598 = vmatpush.msra.mxu0 %v1456
        %1599 = vmatpush.msra.mxu0 %v1452
        %1600 = vmatpush.msra.mxu0 %v1448
        %1601 = vmatpush.msra.mxu0 %v1444
        %1602 = vmatpush.msra.mxu0 %v1440
        %1603 = vmatpush.msra.mxu0 %v1436
        %1604 = vmatpush.msra.mxu0 %v1432
        %1605 = vmatpush.msra.mxu0 %v1428
        %1606 = vmatpush.msra.mxu0 %v1424
        %1607 = vmatpush.msra.mxu0 %v1420
        %1608 = vmatmul.f32.gmra.mxu0 %v1353
        %v1609 = vpop.f32.mrf.mxu0
        %v1610 = vadd.f32 %v1590, %v1609
        %1611 = vdwg.mxu0
        %1612 = vmatpush.msra.mxu0 %v1417
        %1613 = vmatpush.msra.mxu0 %v1413
        %1614 = vmatpush.msra.mxu0 %v1409
        %1615 = vmatpush.msra.mxu0 %v1405
        %1616 = vmatpush.msra.mxu0 %v1401
        %1617 = vmatpush.msra.mxu0 %v1397
        %1618 = vmatpush.msra.mxu0 %v1393
        %1619 = vmatpush.msra.mxu0 %v1389
        %1620 = vmatpush.msra.mxu0 %v1385
        %1621 = vmatpush.msra.mxu0 %v1381
        %1622 = vmatpush.msra.mxu0 %v1377
        %1623 = vmatpush.msra.mxu0 %v1373
        %1624 = vmatpush.msra.mxu0 %v1369
        %1625 = vmatpush.msra.mxu0 %v1365
        %1626 = vmatpush.msra.mxu0 %v1361
        %1627 = vmatpush.msra.mxu0 %v1357
        %1628 = vmatmul.f32.gmra.mxu0 %v1352
        %v1629 = vpop.f32.mrf.mxu0
        %v1630 = vadd.f32 %v1487, %v1629
        %1631 = vdwg.mxu0
        %1632 = vmatpush.msra.mxu0 %v1481
        %1633 = vmatpush.msra.mxu0 %v1477
        %1634 = vmatpush.msra.mxu0 %v1473
        %1635 = vmatpush.msra.mxu0 %v1469
        %1636 = vmatpush.msra.mxu0 %v1465
        %1637 = vmatpush.msra.mxu0 %v1461
        %1638 = vmatpush.msra.mxu0 %v1457
        %1639 = vmatpush.msra.mxu0 %v1453
        %1640 = vmatpush.msra.mxu0 %v1449
        %1641 = vmatpush.msra.mxu0 %v1445
        %1642 = vmatpush.msra.mxu0 %v1441
        %1643 = vmatpush.msra.mxu0 %v1437
        %1644 = vmatpush.msra.mxu0 %v1433
        %1645 = vmatpush.msra.mxu0 %v1429
        %1646 = vmatpush.msra.mxu0 %v1425
        %1647 = vmatpush.msra.mxu0 %v1421
        %1648 = vmatmul.f32.gmra.mxu0 %v1353
        %v1649 = vpop.f32.mrf.mxu0
        %v1650 = vadd.f32 %v1630, %v1649
        %1651 = vdwg.mxu0
        %v1652 = vxor.u32 %v1530, 2147483648
        %v1653 = vmul.f32 %v1652, 1.442695
        %v1654 = vpow.pop %v1653
        %v1655 = vadd.f32 %v1654, 1.0
        %v1656 = vrcp.pop %v1655
        %v1657 = vmul.f32 %v1655, %v1656
        %v1658 = vsub.f32 1.0, %v1657
        %v1659 = vmul.f32 %v1656, %v1658
        %v1660 = vadd.f32 %v1656, %v1659
        %vm1661 = vweird.f32 %v1655
        %vm1662 = vweird.f32 %v1656
        %vm1663 = vmor %vm1661, %vm1662
        %v1664 = vsel %vm1663, %v1656, %v1660
        %v1665 = vand.u32 2147483647, %v1655
        %vm1666 = vcmp.eq.f32.partialorder %v1665, 8.507059e+37
        %v1667 = vand.u32 %v1655, 2147483648
        %v1668 = vor.u32 1.1754944e-38, %v1667
        %v1669 = vsel %vm1666, %v1668, %v1664
        %v1670 = vmul.f32 1.0, %v1669
        %v1671 = vxor.u32 %v1570, 2147483648
        %v1672 = vmul.f32 %v1671, 1.442695
        %v1673 = vpow.pop %v1672
        %v1674 = vadd.f32 %v1673, 1.0
        %v1675 = vrcp.pop %v1674
        %v1676 = vmul.f32 %v1674, %v1675
        %v1677 = vsub.f32 1.0, %v1676
        %v1678 = vmul.f32 %v1675, %v1677
        %v1679 = vadd.f32 %v1675, %v1678
        %vm1680 = vweird.f32 %v1674
        %vm1681 = vweird.f32 %v1675
        %vm1682 = vmor %vm1680, %vm1681
        %v1683 = vsel %vm1682, %v1675, %v1679
        %v1684 = vand.u32 2147483647, %v1674
        %vm1685 = vcmp.eq.f32.partialorder %v1684, 8.507059e+37
        %v1686 = vand.u32 %v1674, 2147483648
        %v1687 = vor.u32 1.1754944e-38, %v1686
        %v1688 = vsel %vm1685, %v1687, %v1683
        %v1689 = vmul.f32 1.0, %v1688
        %v1690 = vtanh.pop %v1610
        %v1691 = vxor.u32 %v1650, 2147483648
        %v1692 = vmul.f32 %v1691, 1.442695
        %v1693 = vpow.pop %v1692
        %v1694 = vadd.f32 %v1693, 1.0
        %v1695 = vrcp.pop %v1694
        %v1696 = vmul.f32 %v1694, %v1695
        %v1697 = vsub.f32 1.0, %v1696
        %v1698 = vmul.f32 %v1695, %v1697
        %v1699 = vadd.f32 %v1695, %v1698
        %vm1700 = vweird.f32 %v1694
        %vm1701 = vweird.f32 %v1695
        %vm1702 = vmor %vm1700, %vm1701
        %v1703 = vsel %vm1702, %v1695, %v1699
        %v1704 = vand.u32 2147483647, %v1694
        %vm1705 = vcmp.eq.f32.partialorder %v1704, 8.507059e+37
        %v1706 = vand.u32 %v1694, 2147483648
        %v1707 = vor.u32 1.1754944e-38, %v1706
        %v1708 = vsel %vm1705, %v1707, %v1703
        %v1709 = vmul.f32 1.0, %v1708
        %v1710 = vld [vmem:[#allocation3] sm:$0xff]
        %v1711 = vmul.f32 %v1689, %v1710
        %v1712 = vmul.f32 %v1670, %v1690
        %v1713 = vadd.f32 %v1711, %v1712
        %v1714 = vtanh.pop %v1713
        %v1715 = vmul.f32 %v1709, %v1714
        %1716 = vst [vmem:[#allocation3] sm:$0xff] %v1713
        %1717 = vst [vmem:[#allocation2] sm:$0xff] %v1715
        %s1718 = scalar_lea.vmem %s221, 24 [#allocation11]
        %1719 = vst [vmem:[%s1718] sm:$0xff] %v1715
        %s1720 = scalar_lea.vmem %s188, 32 [#allocation5]
        %v1721 = vld [vmem:[%s1720] sm:$0xff]
        %1722 = vst [vmem:[#allocation4] sm:$0xff] %v1721
        %v1723 = vld [vmem:[#allocation2] sm:$0xff]
        %1724 = vst [vmem:[#allocation4 + $0x8] sm:$0xff] %v1723
        %v1725 = vld [vmem:[#allocation4] sm:$0xff]
        %v1726 = vld [vmem:[#allocation4 + $0x8] sm:$0xff]
        %v1727 = vld [vmem:[#allocation8] sm:$0xff]
        %v1728 = vld [vmem:[#allocation8 + $0x8] sm:$0xff]
        %v1729 = vld [vmem:[#allocation8 + $0x10] sm:$0xff]
        %v1730 = vld [vmem:[#allocation8 + $0x18] sm:$0xff]
        %v1731 = vld [vmem:[#allocation8 + $0x20] sm:$0xff]
        %v1732 = vld [vmem:[#allocation8 + $0x28] sm:$0xff]
        %v1733 = vld [vmem:[#allocation8 + $0x30] sm:$0xff]
        %v1734 = vld [vmem:[#allocation8 + $0x38] sm:$0xff]
        %v1735 = vld [vmem:[#allocation8 + $0x40] sm:$0xff]
        %v1736 = vld [vmem:[#allocation8 + $0x48] sm:$0xff]
        %v1737 = vld [vmem:[#allocation8 + $0x50] sm:$0xff]
        %v1738 = vld [vmem:[#allocation8 + $0x58] sm:$0xff]
        %v1739 = vld [vmem:[#allocation8 + $0x60] sm:$0xff]
        %v1740 = vld [vmem:[#allocation8 + $0x68] sm:$0xff]
        %v1741 = vld [vmem:[#allocation8 + $0x70] sm:$0xff]
        %v1742 = vld [vmem:[#allocation8 + $0x78] sm:$0xff]
        %v1743 = vld [vmem:[#allocation8 + $0x80] sm:$0xff]
        %v1744 = vld [vmem:[#allocation8 + $0x88] sm:$0xff]
        %v1745 = vld [vmem:[#allocation8 + $0x90] sm:$0xff]
        %v1746 = vld [vmem:[#allocation8 + $0x98] sm:$0xff]
        %v1747 = vld [vmem:[#allocation8 + $0xa0] sm:$0xff]
        %v1748 = vld [vmem:[#allocation8 + $0xa8] sm:$0xff]
        %v1749 = vld [vmem:[#allocation8 + $0xb0] sm:$0xff]
        %v1750 = vld [vmem:[#allocation8 + $0xb8] sm:$0xff]
        %v1751 = vld [vmem:[#allocation8 + $0xc0] sm:$0xff]
        %v1752 = vld [vmem:[#allocation8 + $0xc8] sm:$0xff]
        %v1753 = vld [vmem:[#allocation8 + $0xd0] sm:$0xff]
        %v1754 = vld [vmem:[#allocation8 + $0xd8] sm:$0xff]
        %v1755 = vld [vmem:[#allocation8 + $0xe0] sm:$0xff]
        %v1756 = vld [vmem:[#allocation8 + $0xe8] sm:$0xff]
        %v1757 = vld [vmem:[#allocation8 + $0xf0] sm:$0xff]
        %v1758 = vld [vmem:[#allocation8 + $0xf8] sm:$0xff]
        %v1759 = vld [vmem:[#allocation8 + $0x100] sm:$0xff]
        %v1760 = vld [vmem:[#allocation8 + $0x108] sm:$0xff]
        %v1761 = vld [vmem:[#allocation8 + $0x110] sm:$0xff]
        %v1762 = vld [vmem:[#allocation8 + $0x118] sm:$0xff]
        %v1763 = vld [vmem:[#allocation8 + $0x120] sm:$0xff]
        %v1764 = vld [vmem:[#allocation8 + $0x128] sm:$0xff]
        %v1765 = vld [vmem:[#allocation8 + $0x130] sm:$0xff]
        %v1766 = vld [vmem:[#allocation8 + $0x138] sm:$0xff]
        %v1767 = vld [vmem:[#allocation8 + $0x140] sm:$0xff]
        %v1768 = vld [vmem:[#allocation8 + $0x148] sm:$0xff]
        %v1769 = vld [vmem:[#allocation8 + $0x150] sm:$0xff]
        %v1770 = vld [vmem:[#allocation8 + $0x158] sm:$0xff]
        %v1771 = vld [vmem:[#allocation8 + $0x160] sm:$0xff]
        %v1772 = vld [vmem:[#allocation8 + $0x168] sm:$0xff]
        %v1773 = vld [vmem:[#allocation8 + $0x170] sm:$0xff]
        %v1774 = vld [vmem:[#allocation8 + $0x178] sm:$0xff]
        %v1775 = vld [vmem:[#allocation8 + $0x180] sm:$0xff]
        %v1776 = vld [vmem:[#allocation8 + $0x188] sm:$0xff]
        %v1777 = vld [vmem:[#allocation8 + $0x190] sm:$0xff]
        %v1778 = vld [vmem:[#allocation8 + $0x198] sm:$0xff]
        %v1779 = vld [vmem:[#allocation8 + $0x1a0] sm:$0xff]
        %v1780 = vld [vmem:[#allocation8 + $0x1a8] sm:$0xff]
        %v1781 = vld [vmem:[#allocation8 + $0x1b0] sm:$0xff]
        %v1782 = vld [vmem:[#allocation8 + $0x1b8] sm:$0xff]
        %v1783 = vld [vmem:[#allocation8 + $0x1c0] sm:$0xff]
        %v1784 = vld [vmem:[#allocation8 + $0x1c8] sm:$0xff]
        %v1785 = vld [vmem:[#allocation8 + $0x1d0] sm:$0xff]
        %v1786 = vld [vmem:[#allocation8 + $0x1d8] sm:$0xff]
        %v1787 = vld [vmem:[#allocation8 + $0x1e0] sm:$0xff]
        %v1788 = vld [vmem:[#allocation8 + $0x1e8] sm:$0xff]
        %v1789 = vld [vmem:[#allocation8 + $0x1f0] sm:$0xff]
        %v1790 = vld [vmem:[#allocation8 + $0x1f8] sm:$0xff]
        %v1791 = vld [vmem:[#allocation8 + $0x200] sm:$0xff]
        %v1792 = vld [vmem:[#allocation8 + $0x208] sm:$0xff]
        %v1793 = vld [vmem:[#allocation8 + $0x210] sm:$0xff]
        %v1794 = vld [vmem:[#allocation8 + $0x218] sm:$0xff]
        %v1795 = vld [vmem:[#allocation8 + $0x220] sm:$0xff]
        %v1796 = vld [vmem:[#allocation8 + $0x228] sm:$0xff]
        %v1797 = vld [vmem:[#allocation8 + $0x230] sm:$0xff]
        %v1798 = vld [vmem:[#allocation8 + $0x238] sm:$0xff]
        %v1799 = vld [vmem:[#allocation8 + $0x240] sm:$0xff]
        %v1800 = vld [vmem:[#allocation8 + $0x248] sm:$0xff]
        %v1801 = vld [vmem:[#allocation8 + $0x250] sm:$0xff]
        %v1802 = vld [vmem:[#allocation8 + $0x258] sm:$0xff]
        %v1803 = vld [vmem:[#allocation8 + $0x260] sm:$0xff]
        %v1804 = vld [vmem:[#allocation8 + $0x268] sm:$0xff]
        %v1805 = vld [vmem:[#allocation8 + $0x270] sm:$0xff]
        %v1806 = vld [vmem:[#allocation8 + $0x278] sm:$0xff]
        %v1807 = vld [vmem:[#allocation8 + $0x280] sm:$0xff]
        %v1808 = vld [vmem:[#allocation8 + $0x288] sm:$0xff]
        %v1809 = vld [vmem:[#allocation8 + $0x290] sm:$0xff]
        %v1810 = vld [vmem:[#allocation8 + $0x298] sm:$0xff]
        %v1811 = vld [vmem:[#allocation8 + $0x2a0] sm:$0xff]
        %v1812 = vld [vmem:[#allocation8 + $0x2a8] sm:$0xff]
        %v1813 = vld [vmem:[#allocation8 + $0x2b0] sm:$0xff]
        %v1814 = vld [vmem:[#allocation8 + $0x2b8] sm:$0xff]
        %v1815 = vld [vmem:[#allocation8 + $0x2c0] sm:$0xff]
        %v1816 = vld [vmem:[#allocation8 + $0x2c8] sm:$0xff]
        %v1817 = vld [vmem:[#allocation8 + $0x2d0] sm:$0xff]
        %v1818 = vld [vmem:[#allocation8 + $0x2d8] sm:$0xff]
        %v1819 = vld [vmem:[#allocation8 + $0x2e0] sm:$0xff]
        %v1820 = vld [vmem:[#allocation8 + $0x2e8] sm:$0xff]
        %v1821 = vld [vmem:[#allocation8 + $0x2f0] sm:$0xff]
        %v1822 = vld [vmem:[#allocation8 + $0x2f8] sm:$0xff]
        %v1823 = vld [vmem:[#allocation8 + $0x300] sm:$0xff]
        %v1824 = vld [vmem:[#allocation8 + $0x308] sm:$0xff]
        %v1825 = vld [vmem:[#allocation8 + $0x310] sm:$0xff]
        %v1826 = vld [vmem:[#allocation8 + $0x318] sm:$0xff]
        %v1827 = vld [vmem:[#allocation8 + $0x320] sm:$0xff]
        %v1828 = vld [vmem:[#allocation8 + $0x328] sm:$0xff]
        %v1829 = vld [vmem:[#allocation8 + $0x330] sm:$0xff]
        %v1830 = vld [vmem:[#allocation8 + $0x338] sm:$0xff]
        %v1831 = vld [vmem:[#allocation8 + $0x340] sm:$0xff]
        %v1832 = vld [vmem:[#allocation8 + $0x348] sm:$0xff]
        %v1833 = vld [vmem:[#allocation8 + $0x350] sm:$0xff]
        %v1834 = vld [vmem:[#allocation8 + $0x358] sm:$0xff]
        %v1835 = vld [vmem:[#allocation8 + $0x360] sm:$0xff]
        %v1836 = vld [vmem:[#allocation8 + $0x368] sm:$0xff]
        %v1837 = vld [vmem:[#allocation8 + $0x370] sm:$0xff]
        %v1838 = vld [vmem:[#allocation8 + $0x378] sm:$0xff]
        %v1839 = vld [vmem:[#allocation8 + $0x380] sm:$0xff]
        %v1840 = vld [vmem:[#allocation8 + $0x388] sm:$0xff]
        %v1841 = vld [vmem:[#allocation8 + $0x390] sm:$0xff]
        %v1842 = vld [vmem:[#allocation8 + $0x398] sm:$0xff]
        %v1843 = vld [vmem:[#allocation8 + $0x3a0] sm:$0xff]
        %v1844 = vld [vmem:[#allocation8 + $0x3a8] sm:$0xff]
        %v1845 = vld [vmem:[#allocation8 + $0x3b0] sm:$0xff]
        %v1846 = vld [vmem:[#allocation8 + $0x3b8] sm:$0xff]
        %v1847 = vld [vmem:[#allocation8 + $0x3c0] sm:$0xff]
        %v1848 = vld [vmem:[#allocation8 + $0x3c8] sm:$0xff]
        %v1849 = vld [vmem:[#allocation8 + $0x3d0] sm:$0xff]
        %v1850 = vld [vmem:[#allocation8 + $0x3d8] sm:$0xff]
        %v1851 = vld [vmem:[#allocation8 + $0x3e0] sm:$0xff]
        %v1852 = vld [vmem:[#allocation8 + $0x3e8] sm:$0xff]
        %v1853 = vld [vmem:[#allocation8 + $0x3f0] sm:$0xff]
        %v1854 = vld [vmem:[#allocation8 + $0x3f8] sm:$0xff]
        %v1855 = vld [vmem:[#allocation10] sm:$0xf]
        %v1857 = vperm.slane %v1855, 0
        %v1858 = vperm.slane %v1855, 1
        %v1859 = vperm.slane %v1855, 2
        %v1860 = vperm.slane %v1855, 3
        %1865 = vmatpush.msra.mxu0 %v1787
        %1866 = vmatpush.msra.mxu0 %v1783
        %1867 = vmatpush.msra.mxu0 %v1779
        %1868 = vmatpush.msra.mxu0 %v1775
        %1869 = vmatpush.msra.mxu0 %v1771
        %1870 = vmatpush.msra.mxu0 %v1767
        %1871 = vmatpush.msra.mxu0 %v1763
        %1872 = vmatpush.msra.mxu0 %v1759
        %1873 = vmatpush.msra.mxu0 %v1755
        %1874 = vmatpush.msra.mxu0 %v1751
        %1875 = vmatpush.msra.mxu0 %v1747
        %1876 = vmatpush.msra.mxu0 %v1743
        %1877 = vmatpush.msra.mxu0 %v1739
        %1878 = vmatpush.msra.mxu0 %v1735
        %1879 = vmatpush.msra.mxu0 %v1731
        %1880 = vmatpush.msra.mxu0 %v1727
        %1881 = vmatmul.f32.gmra.mxu0 %v1725
        %v1882 = vpop.f32.mrf.mxu0
        %v1883 = vadd.f32 %v1857, %v1882
        %1884 = vdwg.mxu0
        %1885 = vmatpush.msra.mxu0 %v1851
        %1886 = vmatpush.msra.mxu0 %v1847
        %1887 = vmatpush.msra.mxu0 %v1843
        %1888 = vmatpush.msra.mxu0 %v1839
        %1889 = vmatpush.msra.mxu0 %v1835
        %1890 = vmatpush.msra.mxu0 %v1831
        %1891 = vmatpush.msra.mxu0 %v1827
        %1892 = vmatpush.msra.mxu0 %v1823
        %1893 = vmatpush.msra.mxu0 %v1819
        %1894 = vmatpush.msra.mxu0 %v1815
        %1895 = vmatpush.msra.mxu0 %v1811
        %1896 = vmatpush.msra.mxu0 %v1807
        %1897 = vmatpush.msra.mxu0 %v1803
        %1898 = vmatpush.msra.mxu0 %v1799
        %1899 = vmatpush.msra.mxu0 %v1795
        %1900 = vmatpush.msra.mxu0 %v1791
        %1901 = vmatmul.f32.gmra.mxu0 %v1726
        %v1902 = vpop.f32.mrf.mxu0
        %v1903 = vadd.f32 %v1883, %v1902
        %1904 = vdwg.mxu0
        %1905 = vmatpush.msra.mxu0 %v1788
        %1906 = vmatpush.msra.mxu0 %v1784
        %1907 = vmatpush.msra.mxu0 %v1780
        %1908 = vmatpush.msra.mxu0 %v1776
        %1909 = vmatpush.msra.mxu0 %v1772
        %1910 = vmatpush.msra.mxu0 %v1768
        %1911 = vmatpush.msra.mxu0 %v1764
        %1912 = vmatpush.msra.mxu0 %v1760
        %1913 = vmatpush.msra.mxu0 %v1756
        %1914 = vmatpush.msra.mxu0 %v1752
        %1915 = vmatpush.msra.mxu0 %v1748
        %1916 = vmatpush.msra.mxu0 %v1744
        %1917 = vmatpush.msra.mxu0 %v1740
        %1918 = vmatpush.msra.mxu0 %v1736
        %1919 = vmatpush.msra.mxu0 %v1732
        %1920 = vmatpush.msra.mxu0 %v1728
        %1921 = vmatmul.f32.gmra.mxu0 %v1725
        %v1922 = vpop.f32.mrf.mxu0
        %v1923 = vadd.f32 %v1858, %v1922
        %1924 = vdwg.mxu0
        %1925 = vmatpush.msra.mxu0 %v1852
        %1926 = vmatpush.msra.mxu0 %v1848
        %1927 = vmatpush.msra.mxu0 %v1844
        %1928 = vmatpush.msra.mxu0 %v1840
        %1929 = vmatpush.msra.mxu0 %v1836
        %1930 = vmatpush.msra.mxu0 %v1832
        %1931 = vmatpush.msra.mxu0 %v1828
        %1932 = vmatpush.msra.mxu0 %v1824
        %1933 = vmatpush.msra.mxu0 %v1820
        %1934 = vmatpush.msra.mxu0 %v1816
        %1935 = vmatpush.msra.mxu0 %v1812
        %1936 = vmatpush.msra.mxu0 %v1808
        %1937 = vmatpush.msra.mxu0 %v1804
        %1938 = vmatpush.msra.mxu0 %v1800
        %1939 = vmatpush.msra.mxu0 %v1796
        %1940 = vmatpush.msra.mxu0 %v1792
        %1941 = vmatmul.f32.gmra.mxu0 %v1726
        %v1942 = vpop.f32.mrf.mxu0
        %v1943 = vadd.f32 %v1923, %v1942
        %1944 = vdwg.mxu0
        %1945 = vmatpush.msra.mxu0 %v1789
        %1946 = vmatpush.msra.mxu0 %v1785
        %1947 = vmatpush.msra.mxu0 %v1781
        %1948 = vmatpush.msra.mxu0 %v1777
        %1949 = vmatpush.msra.mxu0 %v1773
        %1950 = vmatpush.msra.mxu0 %v1769
        %1951 = vmatpush.msra.mxu0 %v1765
        %1952 = vmatpush.msra.mxu0 %v1761
        %1953 = vmatpush.msra.mxu0 %v1757
        %1954 = vmatpush.msra.mxu0 %v1753
        %1955 = vmatpush.msra.mxu0 %v1749
        %1956 = vmatpush.msra.mxu0 %v1745
        %1957 = vmatpush.msra.mxu0 %v1741
        %1958 = vmatpush.msra.mxu0 %v1737
        %1959 = vmatpush.msra.mxu0 %v1733
        %1960 = vmatpush.msra.mxu0 %v1729
        %1961 = vmatmul.f32.gmra.mxu0 %v1725
        %v1962 = vpop.f32.mrf.mxu0
        %v1963 = vadd.f32 %v1859, %v1962
        %1964 = vdwg.mxu0
        %1965 = vmatpush.msra.mxu0 %v1853
        %1966 = vmatpush.msra.mxu0 %v1849
        %1967 = vmatpush.msra.mxu0 %v1845
        %1968 = vmatpush.msra.mxu0 %v1841
        %1969 = vmatpush.msra.mxu0 %v1837
        %1970 = vmatpush.msra.mxu0 %v1833
        %1971 = vmatpush.msra.mxu0 %v1829
        %1972 = vmatpush.msra.mxu0 %v1825
        %1973 = vmatpush.msra.mxu0 %v1821
        %1974 = vmatpush.msra.mxu0 %v1817
        %1975 = vmatpush.msra.mxu0 %v1813
        %1976 = vmatpush.msra.mxu0 %v1809
        %1977 = vmatpush.msra.mxu0 %v1805
        %1978 = vmatpush.msra.mxu0 %v1801
        %1979 = vmatpush.msra.mxu0 %v1797
        %1980 = vmatpush.msra.mxu0 %v1793
        %1981 = vmatmul.f32.gmra.mxu0 %v1726
        %v1982 = vpop.f32.mrf.mxu0
        %v1983 = vadd.f32 %v1963, %v1982
        %1984 = vdwg.mxu0
        %1985 = vmatpush.msra.mxu0 %v1790
        %1986 = vmatpush.msra.mxu0 %v1786
        %1987 = vmatpush.msra.mxu0 %v1782
        %1988 = vmatpush.msra.mxu0 %v1778
        %1989 = vmatpush.msra.mxu0 %v1774
        %1990 = vmatpush.msra.mxu0 %v1770
        %1991 = vmatpush.msra.mxu0 %v1766
        %1992 = vmatpush.msra.mxu0 %v1762
        %1993 = vmatpush.msra.mxu0 %v1758
        %1994 = vmatpush.msra.mxu0 %v1754
        %1995 = vmatpush.msra.mxu0 %v1750
        %1996 = vmatpush.msra.mxu0 %v1746
        %1997 = vmatpush.msra.mxu0 %v1742
        %1998 = vmatpush.msra.mxu0 %v1738
        %1999 = vmatpush.msra.mxu0 %v1734
        %2000 = vmatpush.msra.mxu0 %v1730
        %2001 = vmatmul.f32.gmra.mxu0 %v1725
        %v2002 = vpop.f32.mrf.mxu0
        %v2003 = vadd.f32 %v1860, %v2002
        %2004 = vdwg.mxu0
        %2005 = vmatpush.msra.mxu0 %v1854
        %2006 = vmatpush.msra.mxu0 %v1850
        %2007 = vmatpush.msra.mxu0 %v1846
        %2008 = vmatpush.msra.mxu0 %v1842
        %2009 = vmatpush.msra.mxu0 %v1838
        %2010 = vmatpush.msra.mxu0 %v1834
        %2011 = vmatpush.msra.mxu0 %v1830
        %2012 = vmatpush.msra.mxu0 %v1826
        %2013 = vmatpush.msra.mxu0 %v1822
        %2014 = vmatpush.msra.mxu0 %v1818
        %2015 = vmatpush.msra.mxu0 %v1814
        %2016 = vmatpush.msra.mxu0 %v1810
        %2017 = vmatpush.msra.mxu0 %v1806
        %2018 = vmatpush.msra.mxu0 %v1802
        %2019 = vmatpush.msra.mxu0 %v1798
        %2020 = vmatpush.msra.mxu0 %v1794
        %2021 = vmatmul.f32.gmra.mxu0 %v1726
        %v2022 = vpop.f32.mrf.mxu0
        %v2023 = vadd.f32 %v2003, %v2022
        %2024 = vdwg.mxu0
        %v2025 = vxor.u32 %v1903, 2147483648
        %v2026 = vmul.f32 %v2025, 1.442695
        %v2027 = vpow.pop %v2026
        %v2028 = vadd.f32 %v2027, 1.0
        %v2029 = vrcp.pop %v2028
        %v2030 = vmul.f32 %v2028, %v2029
        %v2031 = vsub.f32 1.0, %v2030
        %v2032 = vmul.f32 %v2029, %v2031
        %v2033 = vadd.f32 %v2029, %v2032
        %vm2034 = vweird.f32 %v2028
        %vm2035 = vweird.f32 %v2029
        %vm2036 = vmor %vm2034, %vm2035
        %v2037 = vsel %vm2036, %v2029, %v2033
        %v2038 = vand.u32 2147483647, %v2028
        %vm2039 = vcmp.eq.f32.partialorder %v2038, 8.507059e+37
        %v2040 = vand.u32 %v2028, 2147483648
        %v2041 = vor.u32 1.1754944e-38, %v2040
        %v2042 = vsel %vm2039, %v2041, %v2037
        %v2043 = vmul.f32 1.0, %v2042
        %v2044 = vxor.u32 %v1943, 2147483648
        %v2045 = vmul.f32 %v2044, 1.442695
        %v2046 = vpow.pop %v2045
        %v2047 = vadd.f32 %v2046, 1.0
        %v2048 = vrcp.pop %v2047
        %v2049 = vmul.f32 %v2047, %v2048
        %v2050 = vsub.f32 1.0, %v2049
        %v2051 = vmul.f32 %v2048, %v2050
        %v2052 = vadd.f32 %v2048, %v2051
        %vm2053 = vweird.f32 %v2047
        %vm2054 = vweird.f32 %v2048
        %vm2055 = vmor %vm2053, %vm2054
        %v2056 = vsel %vm2055, %v2048, %v2052
        %v2057 = vand.u32 2147483647, %v2047
        %vm2058 = vcmp.eq.f32.partialorder %v2057, 8.507059e+37
        %v2059 = vand.u32 %v2047, 2147483648
        %v2060 = vor.u32 1.1754944e-38, %v2059
        %v2061 = vsel %vm2058, %v2060, %v2056
        %v2062 = vmul.f32 1.0, %v2061
        %v2063 = vtanh.pop %v1983
        %v2064 = vxor.u32 %v2023, 2147483648
        %v2065 = vmul.f32 %v2064, 1.442695
        %v2066 = vpow.pop %v2065
        %v2067 = vadd.f32 %v2066, 1.0
        %v2068 = vrcp.pop %v2067
        %v2069 = vmul.f32 %v2067, %v2068
        %v2070 = vsub.f32 1.0, %v2069
        %v2071 = vmul.f32 %v2068, %v2070
        %v2072 = vadd.f32 %v2068, %v2071
        %vm2073 = vweird.f32 %v2067
        %vm2074 = vweird.f32 %v2068
        %vm2075 = vmor %vm2073, %vm2074
        %v2076 = vsel %vm2075, %v2068, %v2072
        %v2077 = vand.u32 2147483647, %v2067
        %vm2078 = vcmp.eq.f32.partialorder %v2077, 8.507059e+37
        %v2079 = vand.u32 %v2067, 2147483648
        %v2080 = vor.u32 1.1754944e-38, %v2079
        %v2081 = vsel %vm2078, %v2080, %v2076
        %v2082 = vmul.f32 1.0, %v2081
        %v2083 = vld [vmem:[#allocation3] sm:$0xff]
        %v2084 = vmul.f32 %v2062, %v2083
        %v2085 = vmul.f32 %v2043, %v2063
        %v2086 = vadd.f32 %v2084, %v2085
        %v2087 = vtanh.pop %v2086
        %v2088 = vmul.f32 %v2082, %v2087
        %2089 = vst [vmem:[#allocation3] sm:$0xff] %v2086
        %2090 = vst [vmem:[#allocation2] sm:$0xff] %v2088
        %s2091 = scalar_lea.vmem %s221, 32 [#allocation11]
        %2092 = vst [vmem:[%s2091] sm:$0xff] %v2088
        %s2093 = scalar_lea.vmem %s188, 40 [#allocation5]
        %v2094 = vld [vmem:[%s2093] sm:$0xff]
        %2095 = vst [vmem:[#allocation4] sm:$0xff] %v2094
        %v2096 = vld [vmem:[#allocation2] sm:$0xff]
        %2097 = vst [vmem:[#allocation4 + $0x8] sm:$0xff] %v2096
        %v2098 = vld [vmem:[#allocation4] sm:$0xff]
        %v2099 = vld [vmem:[#allocation4 + $0x8] sm:$0xff]
        %v2100 = vld [vmem:[#allocation8] sm:$0xff]
        %v2101 = vld [vmem:[#allocation8 + $0x8] sm:$0xff]
        %v2102 = vld [vmem:[#allocation8 + $0x10] sm:$0xff]
        %v2103 = vld [vmem:[#allocation8 + $0x18] sm:$0xff]
        %v2104 = vld [vmem:[#allocation8 + $0x20] sm:$0xff]
        %v2105 = vld [vmem:[#allocation8 + $0x28] sm:$0xff]
        %v2106 = vld [vmem:[#allocation8 + $0x30] sm:$0xff]
        %v2107 = vld [vmem:[#allocation8 + $0x38] sm:$0xff]
        %v2108 = vld [vmem:[#allocation8 + $0x40] sm:$0xff]
        %v2109 = vld [vmem:[#allocation8 + $0x48] sm:$0xff]
        %v2110 = vld [vmem:[#allocation8 + $0x50] sm:$0xff]
        %v2111 = vld [vmem:[#allocation8 + $0x58] sm:$0xff]
        %v2112 = vld [vmem:[#allocation8 + $0x60] sm:$0xff]
        %v2113 = vld [vmem:[#allocation8 + $0x68] sm:$0xff]
        %v2114 = vld [vmem:[#allocation8 + $0x70] sm:$0xff]
        %v2115 = vld [vmem:[#allocation8 + $0x78] sm:$0xff]
        %v2116 = vld [vmem:[#allocation8 + $0x80] sm:$0xff]
        %v2117 = vld [vmem:[#allocation8 + $0x88] sm:$0xff]
        %v2118 = vld [vmem:[#allocation8 + $0x90] sm:$0xff]
        %v2119 = vld [vmem:[#allocation8 + $0x98] sm:$0xff]
        %v2120 = vld [vmem:[#allocation8 + $0xa0] sm:$0xff]
        %v2121 = vld [vmem:[#allocation8 + $0xa8] sm:$0xff]
        %v2122 = vld [vmem:[#allocation8 + $0xb0] sm:$0xff]
        %v2123 = vld [vmem:[#allocation8 + $0xb8] sm:$0xff]
        %v2124 = vld [vmem:[#allocation8 + $0xc0] sm:$0xff]
        %v2125 = vld [vmem:[#allocation8 + $0xc8] sm:$0xff]
        %v2126 = vld [vmem:[#allocation8 + $0xd0] sm:$0xff]
        %v2127 = vld [vmem:[#allocation8 + $0xd8] sm:$0xff]
        %v2128 = vld [vmem:[#allocation8 + $0xe0] sm:$0xff]
        %v2129 = vld [vmem:[#allocation8 + $0xe8] sm:$0xff]
        %v2130 = vld [vmem:[#allocation8 + $0xf0] sm:$0xff]
        %v2131 = vld [vmem:[#allocation8 + $0xf8] sm:$0xff]
        %v2132 = vld [vmem:[#allocation8 + $0x100] sm:$0xff]
        %v2133 = vld [vmem:[#allocation8 + $0x108] sm:$0xff]
        %v2134 = vld [vmem:[#allocation8 + $0x110] sm:$0xff]
        %v2135 = vld [vmem:[#allocation8 + $0x118] sm:$0xff]
        %v2136 = vld [vmem:[#allocation8 + $0x120] sm:$0xff]
        %v2137 = vld [vmem:[#allocation8 + $0x128] sm:$0xff]
        %v2138 = vld [vmem:[#allocation8 + $0x130] sm:$0xff]
        %v2139 = vld [vmem:[#allocation8 + $0x138] sm:$0xff]
        %v2140 = vld [vmem:[#allocation8 + $0x140] sm:$0xff]
        %v2141 = vld [vmem:[#allocation8 + $0x148] sm:$0xff]
        %v2142 = vld [vmem:[#allocation8 + $0x150] sm:$0xff]
        %v2143 = vld [vmem:[#allocation8 + $0x158] sm:$0xff]
        %v2144 = vld [vmem:[#allocation8 + $0x160] sm:$0xff]
        %v2145 = vld [vmem:[#allocation8 + $0x168] sm:$0xff]
        %v2146 = vld [vmem:[#allocation8 + $0x170] sm:$0xff]
        %v2147 = vld [vmem:[#allocation8 + $0x178] sm:$0xff]
        %v2148 = vld [vmem:[#allocation8 + $0x180] sm:$0xff]
        %v2149 = vld [vmem:[#allocation8 + $0x188] sm:$0xff]
        %v2150 = vld [vmem:[#allocation8 + $0x190] sm:$0xff]
        %v2151 = vld [vmem:[#allocation8 + $0x198] sm:$0xff]
        %v2152 = vld [vmem:[#allocation8 + $0x1a0] sm:$0xff]
        %v2153 = vld [vmem:[#allocation8 + $0x1a8] sm:$0xff]
        %v2154 = vld [vmem:[#allocation8 + $0x1b0] sm:$0xff]
        %v2155 = vld [vmem:[#allocation8 + $0x1b8] sm:$0xff]
        %v2156 = vld [vmem:[#allocation8 + $0x1c0] sm:$0xff]
        %v2157 = vld [vmem:[#allocation8 + $0x1c8] sm:$0xff]
        %v2158 = vld [vmem:[#allocation8 + $0x1d0] sm:$0xff]
        %v2159 = vld [vmem:[#allocation8 + $0x1d8] sm:$0xff]
        %v2160 = vld [vmem:[#allocation8 + $0x1e0] sm:$0xff]
        %v2161 = vld [vmem:[#allocation8 + $0x1e8] sm:$0xff]
        %v2162 = vld [vmem:[#allocation8 + $0x1f0] sm:$0xff]
        %v2163 = vld [vmem:[#allocation8 + $0x1f8] sm:$0xff]
        %v2164 = vld [vmem:[#allocation8 + $0x200] sm:$0xff]
        %v2165 = vld [vmem:[#allocation8 + $0x208] sm:$0xff]
        %v2166 = vld [vmem:[#allocation8 + $0x210] sm:$0xff]
        %v2167 = vld [vmem:[#allocation8 + $0x218] sm:$0xff]
        %v2168 = vld [vmem:[#allocation8 + $0x220] sm:$0xff]
        %v2169 = vld [vmem:[#allocation8 + $0x228] sm:$0xff]
        %v2170 = vld [vmem:[#allocation8 + $0x230] sm:$0xff]
        %v2171 = vld [vmem:[#allocation8 + $0x238] sm:$0xff]
        %v2172 = vld [vmem:[#allocation8 + $0x240] sm:$0xff]
        %v2173 = vld [vmem:[#allocation8 + $0x248] sm:$0xff]
        %v2174 = vld [vmem:[#allocation8 + $0x250] sm:$0xff]
        %v2175 = vld [vmem:[#allocation8 + $0x258] sm:$0xff]
        %v2176 = vld [vmem:[#allocation8 + $0x260] sm:$0xff]
        %v2177 = vld [vmem:[#allocation8 + $0x268] sm:$0xff]
        %v2178 = vld [vmem:[#allocation8 + $0x270] sm:$0xff]
        %v2179 = vld [vmem:[#allocation8 + $0x278] sm:$0xff]
        %v2180 = vld [vmem:[#allocation8 + $0x280] sm:$0xff]
        %v2181 = vld [vmem:[#allocation8 + $0x288] sm:$0xff]
        %v2182 = vld [vmem:[#allocation8 + $0x290] sm:$0xff]
        %v2183 = vld [vmem:[#allocation8 + $0x298] sm:$0xff]
        %v2184 = vld [vmem:[#allocation8 + $0x2a0] sm:$0xff]
        %v2185 = vld [vmem:[#allocation8 + $0x2a8] sm:$0xff]
        %v2186 = vld [vmem:[#allocation8 + $0x2b0] sm:$0xff]
        %v2187 = vld [vmem:[#allocation8 + $0x2b8] sm:$0xff]
        %v2188 = vld [vmem:[#allocation8 + $0x2c0] sm:$0xff]
        %v2189 = vld [vmem:[#allocation8 + $0x2c8] sm:$0xff]
        %v2190 = vld [vmem:[#allocation8 + $0x2d0] sm:$0xff]
        %v2191 = vld [vmem:[#allocation8 + $0x2d8] sm:$0xff]
        %v2192 = vld [vmem:[#allocation8 + $0x2e0] sm:$0xff]
        %v2193 = vld [vmem:[#allocation8 + $0x2e8] sm:$0xff]
        %v2194 = vld [vmem:[#allocation8 + $0x2f0] sm:$0xff]
        %v2195 = vld [vmem:[#allocation8 + $0x2f8] sm:$0xff]
        %v2196 = vld [vmem:[#allocation8 + $0x300] sm:$0xff]
        %v2197 = vld [vmem:[#allocation8 + $0x308] sm:$0xff]
        %v2198 = vld [vmem:[#allocation8 + $0x310] sm:$0xff]
        %v2199 = vld [vmem:[#allocation8 + $0x318] sm:$0xff]
        %v2200 = vld [vmem:[#allocation8 + $0x320] sm:$0xff]
        %v2201 = vld [vmem:[#allocation8 + $0x328] sm:$0xff]
        %v2202 = vld [vmem:[#allocation8 + $0x330] sm:$0xff]
        %v2203 = vld [vmem:[#allocation8 + $0x338] sm:$0xff]
        %v2204 = vld [vmem:[#allocation8 + $0x340] sm:$0xff]
        %v2205 = vld [vmem:[#allocation8 + $0x348] sm:$0xff]
        %v2206 = vld [vmem:[#allocation8 + $0x350] sm:$0xff]
        %v2207 = vld [vmem:[#allocation8 + $0x358] sm:$0xff]
        %v2208 = vld [vmem:[#allocation8 + $0x360] sm:$0xff]
        %v2209 = vld [vmem:[#allocation8 + $0x368] sm:$0xff]
        %v2210 = vld [vmem:[#allocation8 + $0x370] sm:$0xff]
        %v2211 = vld [vmem:[#allocation8 + $0x378] sm:$0xff]
        %v2212 = vld [vmem:[#allocation8 + $0x380] sm:$0xff]
        %v2213 = vld [vmem:[#allocation8 + $0x388] sm:$0xff]
        %v2214 = vld [vmem:[#allocation8 + $0x390] sm:$0xff]
        %v2215 = vld [vmem:[#allocation8 + $0x398] sm:$0xff]
        %v2216 = vld [vmem:[#allocation8 + $0x3a0] sm:$0xff]
        %v2217 = vld [vmem:[#allocation8 + $0x3a8] sm:$0xff]
        %v2218 = vld [vmem:[#allocation8 + $0x3b0] sm:$0xff]
        %v2219 = vld [vmem:[#allocation8 + $0x3b8] sm:$0xff]
        %v2220 = vld [vmem:[#allocation8 + $0x3c0] sm:$0xff]
        %v2221 = vld [vmem:[#allocation8 + $0x3c8] sm:$0xff]
        %v2222 = vld [vmem:[#allocation8 + $0x3d0] sm:$0xff]
        %v2223 = vld [vmem:[#allocation8 + $0x3d8] sm:$0xff]
        %v2224 = vld [vmem:[#allocation8 + $0x3e0] sm:$0xff]
        %v2225 = vld [vmem:[#allocation8 + $0x3e8] sm:$0xff]
        %v2226 = vld [vmem:[#allocation8 + $0x3f0] sm:$0xff]
        %v2227 = vld [vmem:[#allocation8 + $0x3f8] sm:$0xff]
        %v2228 = vld [vmem:[#allocation10] sm:$0xf]
        %v2230 = vperm.slane %v2228, 0
        %v2231 = vperm.slane %v2228, 1
        %v2232 = vperm.slane %v2228, 2
        %v2233 = vperm.slane %v2228, 3
        %2238 = vmatpush.msra.mxu0 %v2160
        %2239 = vmatpush.msra.mxu0 %v2156
        %2240 = vmatpush.msra.mxu0 %v2152
        %2241 = vmatpush.msra.mxu0 %v2148
        %2242 = vmatpush.msra.mxu0 %v2144
        %2243 = vmatpush.msra.mxu0 %v2140
        %2244 = vmatpush.msra.mxu0 %v2136
        %2245 = vmatpush.msra.mxu0 %v2132
        %2246 = vmatpush.msra.mxu0 %v2128
        %2247 = vmatpush.msra.mxu0 %v2124
        %2248 = vmatpush.msra.mxu0 %v2120
        %2249 = vmatpush.msra.mxu0 %v2116
        %2250 = vmatpush.msra.mxu0 %v2112
        %2251 = vmatpush.msra.mxu0 %v2108
        %2252 = vmatpush.msra.mxu0 %v2104
        %2253 = vmatpush.msra.mxu0 %v2100
        %2254 = vmatmul.f32.gmra.mxu0 %v2098
        %v2255 = vpop.f32.mrf.mxu0
        %v2256 = vadd.f32 %v2230, %v2255
        %2257 = vdwg.mxu0
        %2258 = vmatpush.msra.mxu0 %v2224
        %2259 = vmatpush.msra.mxu0 %v2220
        %2260 = vmatpush.msra.mxu0 %v2216
        %2261 = vmatpush.msra.mxu0 %v2212
        %2262 = vmatpush.msra.mxu0 %v2208
        %2263 = vmatpush.msra.mxu0 %v2204
        %2264 = vmatpush.msra.mxu0 %v2200
        %2265 = vmatpush.msra.mxu0 %v2196
        %2266 = vmatpush.msra.mxu0 %v2192
        %2267 = vmatpush.msra.mxu0 %v2188
        %2268 = vmatpush.msra.mxu0 %v2184
        %2269 = vmatpush.msra.mxu0 %v2180
        %2270 = vmatpush.msra.mxu0 %v2176
        %2271 = vmatpush.msra.mxu0 %v2172
        %2272 = vmatpush.msra.mxu0 %v2168
        %2273 = vmatpush.msra.mxu0 %v2164
        %2274 = vmatmul.f32.gmra.mxu0 %v2099
        %v2275 = vpop.f32.mrf.mxu0
        %v2276 = vadd.f32 %v2256, %v2275
        %2277 = vdwg.mxu0
        %2278 = vmatpush.msra.mxu0 %v2161
        %2279 = vmatpush.msra.mxu0 %v2157
        %2280 = vmatpush.msra.mxu0 %v2153
        %2281 = vmatpush.msra.mxu0 %v2149
        %2282 = vmatpush.msra.mxu0 %v2145
        %2283 = vmatpush.msra.mxu0 %v2141
        %2284 = vmatpush.msra.mxu0 %v2137
        %2285 = vmatpush.msra.mxu0 %v2133
        %2286 = vmatpush.msra.mxu0 %v2129
        %2287 = vmatpush.msra.mxu0 %v2125
        %2288 = vmatpush.msra.mxu0 %v2121
        %2289 = vmatpush.msra.mxu0 %v2117
        %2290 = vmatpush.msra.mxu0 %v2113
        %2291 = vmatpush.msra.mxu0 %v2109
        %2292 = vmatpush.msra.mxu0 %v2105
        %2293 = vmatpush.msra.mxu0 %v2101
        %2294 = vmatmul.f32.gmra.mxu0 %v2098
        %v2295 = vpop.f32.mrf.mxu0
        %v2296 = vadd.f32 %v2231, %v2295
        %2297 = vdwg.mxu0
        %2298 = vmatpush.msra.mxu0 %v2225
        %2299 = vmatpush.msra.mxu0 %v2221
        %2300 = vmatpush.msra.mxu0 %v2217
        %2301 = vmatpush.msra.mxu0 %v2213
        %2302 = vmatpush.msra.mxu0 %v2209
        %2303 = vmatpush.msra.mxu0 %v2205
        %2304 = vmatpush.msra.mxu0 %v2201
        %2305 = vmatpush.msra.mxu0 %v2197
        %2306 = vmatpush.msra.mxu0 %v2193
        %2307 = vmatpush.msra.mxu0 %v2189
        %2308 = vmatpush.msra.mxu0 %v2185
        %2309 = vmatpush.msra.mxu0 %v2181
        %2310 = vmatpush.msra.mxu0 %v2177
        %2311 = vmatpush.msra.mxu0 %v2173
        %2312 = vmatpush.msra.mxu0 %v2169
        %2313 = vmatpush.msra.mxu0 %v2165
        %2314 = vmatmul.f32.gmra.mxu0 %v2099
        %v2315 = vpop.f32.mrf.mxu0
        %v2316 = vadd.f32 %v2296, %v2315
        %2317 = vdwg.mxu0
        %2318 = vmatpush.msra.mxu0 %v2162
        %2319 = vmatpush.msra.mxu0 %v2158
        %2320 = vmatpush.msra.mxu0 %v2154
        %2321 = vmatpush.msra.mxu0 %v2150
        %2322 = vmatpush.msra.mxu0 %v2146
        %2323 = vmatpush.msra.mxu0 %v2142
        %2324 = vmatpush.msra.mxu0 %v2138
        %2325 = vmatpush.msra.mxu0 %v2134
        %2326 = vmatpush.msra.mxu0 %v2130
        %2327 = vmatpush.msra.mxu0 %v2126
        %2328 = vmatpush.msra.mxu0 %v2122
        %2329 = vmatpush.msra.mxu0 %v2118
        %2330 = vmatpush.msra.mxu0 %v2114
        %2331 = vmatpush.msra.mxu0 %v2110
        %2332 = vmatpush.msra.mxu0 %v2106
        %2333 = vmatpush.msra.mxu0 %v2102
        %2334 = vmatmul.f32.gmra.mxu0 %v2098
        %v2335 = vpop.f32.mrf.mxu0
        %v2336 = vadd.f32 %v2232, %v2335
        %2337 = vdwg.mxu0
        %2338 = vmatpush.msra.mxu0 %v2226
        %2339 = vmatpush.msra.mxu0 %v2222
        %2340 = vmatpush.msra.mxu0 %v2218
        %2341 = vmatpush.msra.mxu0 %v2214
        %2342 = vmatpush.msra.mxu0 %v2210
        %2343 = vmatpush.msra.mxu0 %v2206
        %2344 = vmatpush.msra.mxu0 %v2202
        %2345 = vmatpush.msra.mxu0 %v2198
        %2346 = vmatpush.msra.mxu0 %v2194
        %2347 = vmatpush.msra.mxu0 %v2190
        %2348 = vmatpush.msra.mxu0 %v2186
        %2349 = vmatpush.msra.mxu0 %v2182
        %2350 = vmatpush.msra.mxu0 %v2178
        %2351 = vmatpush.msra.mxu0 %v2174
        %2352 = vmatpush.msra.mxu0 %v2170
        %2353 = vmatpush.msra.mxu0 %v2166
        %2354 = vmatmul.f32.gmra.mxu0 %v2099
        %v2355 = vpop.f32.mrf.mxu0
        %v2356 = vadd.f32 %v2336, %v2355
        %2357 = vdwg.mxu0
        %2358 = vmatpush.msra.mxu0 %v2163
        %2359 = vmatpush.msra.mxu0 %v2159
        %2360 = vmatpush.msra.mxu0 %v2155
        %2361 = vmatpush.msra.mxu0 %v2151
        %2362 = vmatpush.msra.mxu0 %v2147
        %2363 = vmatpush.msra.mxu0 %v2143
        %2364 = vmatpush.msra.mxu0 %v2139
        %2365 = vmatpush.msra.mxu0 %v2135
        %2366 = vmatpush.msra.mxu0 %v2131
        %2367 = vmatpush.msra.mxu0 %v2127
        %2368 = vmatpush.msra.mxu0 %v2123
        %2369 = vmatpush.msra.mxu0 %v2119
        %2370 = vmatpush.msra.mxu0 %v2115
        %2371 = vmatpush.msra.mxu0 %v2111
        %2372 = vmatpush.msra.mxu0 %v2107
        %2373 = vmatpush.msra.mxu0 %v2103
        %2374 = vmatmul.f32.gmra.mxu0 %v2098
        %v2375 = vpop.f32.mrf.mxu0
        %v2376 = vadd.f32 %v2233, %v2375
        %2377 = vdwg.mxu0
        %2378 = vmatpush.msra.mxu0 %v2227
        %2379 = vmatpush.msra.mxu0 %v2223
        %2380 = vmatpush.msra.mxu0 %v2219
        %2381 = vmatpush.msra.mxu0 %v2215
        %2382 = vmatpush.msra.mxu0 %v2211
        %2383 = vmatpush.msra.mxu0 %v2207
        %2384 = vmatpush.msra.mxu0 %v2203
        %2385 = vmatpush.msra.mxu0 %v2199
        %2386 = vmatpush.msra.mxu0 %v2195
        %2387 = vmatpush.msra.mxu0 %v2191
        %2388 = vmatpush.msra.mxu0 %v2187
        %2389 = vmatpush.msra.mxu0 %v2183
        %2390 = vmatpush.msra.mxu0 %v2179
        %2391 = vmatpush.msra.mxu0 %v2175
        %2392 = vmatpush.msra.mxu0 %v2171
        %2393 = vmatpush.msra.mxu0 %v2167
        %2394 = vmatmul.f32.gmra.mxu0 %v2099
        %v2395 = vpop.f32.mrf.mxu0
        %v2396 = vadd.f32 %v2376, %v2395
        %2397 = vdwg.mxu0
        %v2398 = vxor.u32 %v2276, 2147483648
        %v2399 = vmul.f32 %v2398, 1.442695
        %v2400 = vpow.pop %v2399
        %v2401 = vadd.f32 %v2400, 1.0
        %v2402 = vrcp.pop %v2401
        %v2403 = vmul.f32 %v2401, %v2402
        %v2404 = vsub.f32 1.0, %v2403
        %v2405 = vmul.f32 %v2402, %v2404
        %v2406 = vadd.f32 %v2402, %v2405
        %vm2407 = vweird.f32 %v2401
        %vm2408 = vweird.f32 %v2402
        %vm2409 = vmor %vm2407, %vm2408
        %v2410 = vsel %vm2409, %v2402, %v2406
        %v2411 = vand.u32 2147483647, %v2401
        %vm2412 = vcmp.eq.f32.partialorder %v2411, 8.507059e+37
        %v2413 = vand.u32 %v2401, 2147483648
        %v2414 = vor.u32 1.1754944e-38, %v2413
        %v2415 = vsel %vm2412, %v2414, %v2410
        %v2416 = vmul.f32 1.0, %v2415
        %v2417 = vxor.u32 %v2316, 2147483648
        %v2418 = vmul.f32 %v2417, 1.442695
        %v2419 = vpow.pop %v2418
        %v2420 = vadd.f32 %v2419, 1.0
        %v2421 = vrcp.pop %v2420
        %v2422 = vmul.f32 %v2420, %v2421
        %v2423 = vsub.f32 1.0, %v2422
        %v2424 = vmul.f32 %v2421, %v2423
        %v2425 = vadd.f32 %v2421, %v2424
        %vm2426 = vweird.f32 %v2420
        %vm2427 = vweird.f32 %v2421
        %vm2428 = vmor %vm2426, %vm2427
        %v2429 = vsel %vm2428, %v2421, %v2425
        %v2430 = vand.u32 2147483647, %v2420
        %vm2431 = vcmp.eq.f32.partialorder %v2430, 8.507059e+37
        %v2432 = vand.u32 %v2420, 2147483648
        %v2433 = vor.u32 1.1754944e-38, %v2432
        %v2434 = vsel %vm2431, %v2433, %v2429
        %v2435 = vmul.f32 1.0, %v2434
        %v2436 = vtanh.pop %v2356
        %v2437 = vxor.u32 %v2396, 2147483648
        %v2438 = vmul.f32 %v2437, 1.442695
        %v2439 = vpow.pop %v2438
        %v2440 = vadd.f32 %v2439, 1.0
        %v2441 = vrcp.pop %v2440
        %v2442 = vmul.f32 %v2440, %v2441
        %v2443 = vsub.f32 1.0, %v2442
        %v2444 = vmul.f32 %v2441, %v2443
        %v2445 = vadd.f32 %v2441, %v2444
        %vm2446 = vweird.f32 %v2440
        %vm2447 = vweird.f32 %v2441
        %vm2448 = vmor %vm2446, %vm2447
        %v2449 = vsel %vm2448, %v2441, %v2445
        %v2450 = vand.u32 2147483647, %v2440
        %vm2451 = vcmp.eq.f32.partialorder %v2450, 8.507059e+37
        %v2452 = vand.u32 %v2440, 2147483648
        %v2453 = vor.u32 1.1754944e-38, %v2452
        %v2454 = vsel %vm2451, %v2453, %v2449
        %v2455 = vmul.f32 1.0, %v2454
        %v2456 = vld [vmem:[#allocation3] sm:$0xff]
        %v2457 = vmul.f32 %v2435, %v2456
        %v2458 = vmul.f32 %v2416, %v2436
        %v2459 = vadd.f32 %v2457, %v2458
        %v2460 = vtanh.pop %v2459
        %v2461 = vmul.f32 %v2455, %v2460
        %2462 = vst [vmem:[#allocation3] sm:$0xff] %v2459
        %2463 = vst [vmem:[#allocation2] sm:$0xff] %v2461
        %s2464 = scalar_lea.vmem %s221, 40 [#allocation11]
        %2465 = vst [vmem:[%s2464] sm:$0xff] %v2461
        %s2466 = scalar_lea.vmem %s188, 48 [#allocation5]
        %v2467 = vld [vmem:[%s2466] sm:$0xff]
        %2468 = vst [vmem:[#allocation4] sm:$0xff] %v2467
        %v2469 = vld [vmem:[#allocation2] sm:$0xff]
        %2470 = vst [vmem:[#allocation4 + $0x8] sm:$0xff] %v2469
        %v2471 = vld [vmem:[#allocation4] sm:$0xff]
        %v2472 = vld [vmem:[#allocation4 + $0x8] sm:$0xff]
        %v2473 = vld [vmem:[#allocation8] sm:$0xff]
        %v2474 = vld [vmem:[#allocation8 + $0x8] sm:$0xff]
        %v2475 = vld [vmem:[#allocation8 + $0x10] sm:$0xff]
        %v2476 = vld [vmem:[#allocation8 + $0x18] sm:$0xff]
        %v2477 = vld [vmem:[#allocation8 + $0x20] sm:$0xff]
        %v2478 = vld [vmem:[#allocation8 + $0x28] sm:$0xff]
        %v2479 = vld [vmem:[#allocation8 + $0x30] sm:$0xff]
        %v2480 = vld [vmem:[#allocation8 + $0x38] sm:$0xff]
        %v2481 = vld [vmem:[#allocation8 + $0x40] sm:$0xff]
        %v2482 = vld [vmem:[#allocation8 + $0x48] sm:$0xff]
        %v2483 = vld [vmem:[#allocation8 + $0x50] sm:$0xff]
        %v2484 = vld [vmem:[#allocation8 + $0x58] sm:$0xff]
        %v2485 = vld [vmem:[#allocation8 + $0x60] sm:$0xff]
        %v2486 = vld [vmem:[#allocation8 + $0x68] sm:$0xff]
        %v2487 = vld [vmem:[#allocation8 + $0x70] sm:$0xff]
        %v2488 = vld [vmem:[#allocation8 + $0x78] sm:$0xff]
        %v2489 = vld [vmem:[#allocation8 + $0x80] sm:$0xff]
        %v2490 = vld [vmem:[#allocation8 + $0x88] sm:$0xff]
        %v2491 = vld [vmem:[#allocation8 + $0x90] sm:$0xff]
        %v2492 = vld [vmem:[#allocation8 + $0x98] sm:$0xff]
        %v2493 = vld [vmem:[#allocation8 + $0xa0] sm:$0xff]
        %v2494 = vld [vmem:[#allocation8 + $0xa8] sm:$0xff]
        %v2495 = vld [vmem:[#allocation8 + $0xb0] sm:$0xff]
        %v2496 = vld [vmem:[#allocation8 + $0xb8] sm:$0xff]
        %v2497 = vld [vmem:[#allocation8 + $0xc0] sm:$0xff]
        %v2498 = vld [vmem:[#allocation8 + $0xc8] sm:$0xff]
        %v2499 = vld [vmem:[#allocation8 + $0xd0] sm:$0xff]
        %v2500 = vld [vmem:[#allocation8 + $0xd8] sm:$0xff]
        %v2501 = vld [vmem:[#allocation8 + $0xe0] sm:$0xff]
        %v2502 = vld [vmem:[#allocation8 + $0xe8] sm:$0xff]
        %v2503 = vld [vmem:[#allocation8 + $0xf0] sm:$0xff]
        %v2504 = vld [vmem:[#allocation8 + $0xf8] sm:$0xff]
        %v2505 = vld [vmem:[#allocation8 + $0x100] sm:$0xff]
        %v2506 = vld [vmem:[#allocation8 + $0x108] sm:$0xff]
        %v2507 = vld [vmem:[#allocation8 + $0x110] sm:$0xff]
        %v2508 = vld [vmem:[#allocation8 + $0x118] sm:$0xff]
        %v2509 = vld [vmem:[#allocation8 + $0x120] sm:$0xff]
        %v2510 = vld [vmem:[#allocation8 + $0x128] sm:$0xff]
        %v2511 = vld [vmem:[#allocation8 + $0x130] sm:$0xff]
        %v2512 = vld [vmem:[#allocation8 + $0x138] sm:$0xff]
        %v2513 = vld [vmem:[#allocation8 + $0x140] sm:$0xff]
        %v2514 = vld [vmem:[#allocation8 + $0x148] sm:$0xff]
        %v2515 = vld [vmem:[#allocation8 + $0x150] sm:$0xff]
        %v2516 = vld [vmem:[#allocation8 + $0x158] sm:$0xff]
        %v2517 = vld [vmem:[#allocation8 + $0x160] sm:$0xff]
        %v2518 = vld [vmem:[#allocation8 + $0x168] sm:$0xff]
        %v2519 = vld [vmem:[#allocation8 + $0x170] sm:$0xff]
        %v2520 = vld [vmem:[#allocation8 + $0x178] sm:$0xff]
        %v2521 = vld [vmem:[#allocation8 + $0x180] sm:$0xff]
        %v2522 = vld [vmem:[#allocation8 + $0x188] sm:$0xff]
        %v2523 = vld [vmem:[#allocation8 + $0x190] sm:$0xff]
        %v2524 = vld [vmem:[#allocation8 + $0x198] sm:$0xff]
        %v2525 = vld [vmem:[#allocation8 + $0x1a0] sm:$0xff]
        %v2526 = vld [vmem:[#allocation8 + $0x1a8] sm:$0xff]
        %v2527 = vld [vmem:[#allocation8 + $0x1b0] sm:$0xff]
        %v2528 = vld [vmem:[#allocation8 + $0x1b8] sm:$0xff]
        %v2529 = vld [vmem:[#allocation8 + $0x1c0] sm:$0xff]
        %v2530 = vld [vmem:[#allocation8 + $0x1c8] sm:$0xff]
        %v2531 = vld [vmem:[#allocation8 + $0x1d0] sm:$0xff]
        %v2532 = vld [vmem:[#allocation8 + $0x1d8] sm:$0xff]
        %v2533 = vld [vmem:[#allocation8 + $0x1e0] sm:$0xff]
        %v2534 = vld [vmem:[#allocation8 + $0x1e8] sm:$0xff]
        %v2535 = vld [vmem:[#allocation8 + $0x1f0] sm:$0xff]
        %v2536 = vld [vmem:[#allocation8 + $0x1f8] sm:$0xff]
        %v2537 = vld [vmem:[#allocation8 + $0x200] sm:$0xff]
        %v2538 = vld [vmem:[#allocation8 + $0x208] sm:$0xff]
        %v2539 = vld [vmem:[#allocation8 + $0x210] sm:$0xff]
        %v2540 = vld [vmem:[#allocation8 + $0x218] sm:$0xff]
        %v2541 = vld [vmem:[#allocation8 + $0x220] sm:$0xff]
        %v2542 = vld [vmem:[#allocation8 + $0x228] sm:$0xff]
        %v2543 = vld [vmem:[#allocation8 + $0x230] sm:$0xff]
        %v2544 = vld [vmem:[#allocation8 + $0x238] sm:$0xff]
        %v2545 = vld [vmem:[#allocation8 + $0x240] sm:$0xff]
        %v2546 = vld [vmem:[#allocation8 + $0x248] sm:$0xff]
        %v2547 = vld [vmem:[#allocation8 + $0x250] sm:$0xff]
        %v2548 = vld [vmem:[#allocation8 + $0x258] sm:$0xff]
        %v2549 = vld [vmem:[#allocation8 + $0x260] sm:$0xff]
        %v2550 = vld [vmem:[#allocation8 + $0x268] sm:$0xff]
        %v2551 = vld [vmem:[#allocation8 + $0x270] sm:$0xff]
        %v2552 = vld [vmem:[#allocation8 + $0x278] sm:$0xff]
        %v2553 = vld [vmem:[#allocation8 + $0x280] sm:$0xff]
        %v2554 = vld [vmem:[#allocation8 + $0x288] sm:$0xff]
        %v2555 = vld [vmem:[#allocation8 + $0x290] sm:$0xff]
        %v2556 = vld [vmem:[#allocation8 + $0x298] sm:$0xff]
        %v2557 = vld [vmem:[#allocation8 + $0x2a0] sm:$0xff]
        %v2558 = vld [vmem:[#allocation8 + $0x2a8] sm:$0xff]
        %v2559 = vld [vmem:[#allocation8 + $0x2b0] sm:$0xff]
        %v2560 = vld [vmem:[#allocation8 + $0x2b8] sm:$0xff]
        %v2561 = vld [vmem:[#allocation8 + $0x2c0] sm:$0xff]
        %v2562 = vld [vmem:[#allocation8 + $0x2c8] sm:$0xff]
        %v2563 = vld [vmem:[#allocation8 + $0x2d0] sm:$0xff]
        %v2564 = vld [vmem:[#allocation8 + $0x2d8] sm:$0xff]
        %v2565 = vld [vmem:[#allocation8 + $0x2e0] sm:$0xff]
        %v2566 = vld [vmem:[#allocation8 + $0x2e8] sm:$0xff]
        %v2567 = vld [vmem:[#allocation8 + $0x2f0] sm:$0xff]
        %v2568 = vld [vmem:[#allocation8 + $0x2f8] sm:$0xff]
        %v2569 = vld [vmem:[#allocation8 + $0x300] sm:$0xff]
        %v2570 = vld [vmem:[#allocation8 + $0x308] sm:$0xff]
        %v2571 = vld [vmem:[#allocation8 + $0x310] sm:$0xff]
        %v2572 = vld [vmem:[#allocation8 + $0x318] sm:$0xff]
        %v2573 = vld [vmem:[#allocation8 + $0x320] sm:$0xff]
        %v2574 = vld [vmem:[#allocation8 + $0x328] sm:$0xff]
        %v2575 = vld [vmem:[#allocation8 + $0x330] sm:$0xff]
        %v2576 = vld [vmem:[#allocation8 + $0x338] sm:$0xff]
        %v2577 = vld [vmem:[#allocation8 + $0x340] sm:$0xff]
        %v2578 = vld [vmem:[#allocation8 + $0x348] sm:$0xff]
        %v2579 = vld [vmem:[#allocation8 + $0x350] sm:$0xff]
        %v2580 = vld [vmem:[#allocation8 + $0x358] sm:$0xff]
        %v2581 = vld [vmem:[#allocation8 + $0x360] sm:$0xff]
        %v2582 = vld [vmem:[#allocation8 + $0x368] sm:$0xff]
        %v2583 = vld [vmem:[#allocation8 + $0x370] sm:$0xff]
        %v2584 = vld [vmem:[#allocation8 + $0x378] sm:$0xff]
        %v2585 = vld [vmem:[#allocation8 + $0x380] sm:$0xff]
        %v2586 = vld [vmem:[#allocation8 + $0x388] sm:$0xff]
        %v2587 = vld [vmem:[#allocation8 + $0x390] sm:$0xff]
        %v2588 = vld [vmem:[#allocation8 + $0x398] sm:$0xff]
        %v2589 = vld [vmem:[#allocation8 + $0x3a0] sm:$0xff]
        %v2590 = vld [vmem:[#allocation8 + $0x3a8] sm:$0xff]
        %v2591 = vld [vmem:[#allocation8 + $0x3b0] sm:$0xff]
        %v2592 = vld [vmem:[#allocation8 + $0x3b8] sm:$0xff]
        %v2593 = vld [vmem:[#allocation8 + $0x3c0] sm:$0xff]
        %v2594 = vld [vmem:[#allocation8 + $0x3c8] sm:$0xff]
        %v2595 = vld [vmem:[#allocation8 + $0x3d0] sm:$0xff]
        %v2596 = vld [vmem:[#allocation8 + $0x3d8] sm:$0xff]
        %v2597 = vld [vmem:[#allocation8 + $0x3e0] sm:$0xff]
        %v2598 = vld [vmem:[#allocation8 + $0x3e8] sm:$0xff]
        %v2599 = vld [vmem:[#allocation8 + $0x3f0] sm:$0xff]
        %v2600 = vld [vmem:[#allocation8 + $0x3f8] sm:$0xff]
        %v2601 = vld [vmem:[#allocation10] sm:$0xf]
        %v2603 = vperm.slane %v2601, 0
        %v2604 = vperm.slane %v2601, 1
        %v2605 = vperm.slane %v2601, 2
        %v2606 = vperm.slane %v2601, 3
        %2611 = vmatpush.msra.mxu0 %v2533
        %2612 = vmatpush.msra.mxu0 %v2529
        %2613 = vmatpush.msra.mxu0 %v2525
        %2614 = vmatpush.msra.mxu0 %v2521
        %2615 = vmatpush.msra.mxu0 %v2517
        %2616 = vmatpush.msra.mxu0 %v2513
        %2617 = vmatpush.msra.mxu0 %v2509
        %2618 = vmatpush.msra.mxu0 %v2505
        %2619 = vmatpush.msra.mxu0 %v2501
        %2620 = vmatpush.msra.mxu0 %v2497
        %2621 = vmatpush.msra.mxu0 %v2493
        %2622 = vmatpush.msra.mxu0 %v2489
        %2623 = vmatpush.msra.mxu0 %v2485
        %2624 = vmatpush.msra.mxu0 %v2481
        %2625 = vmatpush.msra.mxu0 %v2477
        %2626 = vmatpush.msra.mxu0 %v2473
        %2627 = vmatmul.f32.gmra.mxu0 %v2471
        %v2628 = vpop.f32.mrf.mxu0
        %v2629 = vadd.f32 %v2603, %v2628
        %2630 = vdwg.mxu0
        %2631 = vmatpush.msra.mxu0 %v2597
        %2632 = vmatpush.msra.mxu0 %v2593
        %2633 = vmatpush.msra.mxu0 %v2589
        %2634 = vmatpush.msra.mxu0 %v2585
        %2635 = vmatpush.msra.mxu0 %v2581
        %2636 = vmatpush.msra.mxu0 %v2577
        %2637 = vmatpush.msra.mxu0 %v2573
        %2638 = vmatpush.msra.mxu0 %v2569
        %2639 = vmatpush.msra.mxu0 %v2565
        %2640 = vmatpush.msra.mxu0 %v2561
        %2641 = vmatpush.msra.mxu0 %v2557
        %2642 = vmatpush.msra.mxu0 %v2553
        %2643 = vmatpush.msra.mxu0 %v2549
        %2644 = vmatpush.msra.mxu0 %v2545
        %2645 = vmatpush.msra.mxu0 %v2541
        %2646 = vmatpush.msra.mxu0 %v2537
        %2647 = vmatmul.f32.gmra.mxu0 %v2472
        %v2648 = vpop.f32.mrf.mxu0
        %v2649 = vadd.f32 %v2629, %v2648
        %2650 = vdwg.mxu0
        %2651 = vmatpush.msra.mxu0 %v2534
        %2652 = vmatpush.msra.mxu0 %v2530
        %2653 = vmatpush.msra.mxu0 %v2526
        %2654 = vmatpush.msra.mxu0 %v2522
        %2655 = vmatpush.msra.mxu0 %v2518
        %2656 = vmatpush.msra.mxu0 %v2514
        %2657 = vmatpush.msra.mxu0 %v2510
        %2658 = vmatpush.msra.mxu0 %v2506
        %2659 = vmatpush.msra.mxu0 %v2502
        %2660 = vmatpush.msra.mxu0 %v2498
        %2661 = vmatpush.msra.mxu0 %v2494
        %2662 = vmatpush.msra.mxu0 %v2490
        %2663 = vmatpush.msra.mxu0 %v2486
        %2664 = vmatpush.msra.mxu0 %v2482
        %2665 = vmatpush.msra.mxu0 %v2478
        %2666 = vmatpush.msra.mxu0 %v2474
        %2667 = vmatmul.f32.gmra.mxu0 %v2471
        %v2668 = vpop.f32.mrf.mxu0
        %v2669 = vadd.f32 %v2604, %v2668
        %2670 = vdwg.mxu0
        %2671 = vmatpush.msra.mxu0 %v2598
        %2672 = vmatpush.msra.mxu0 %v2594
        %2673 = vmatpush.msra.mxu0 %v2590
        %2674 = vmatpush.msra.mxu0 %v2586
        %2675 = vmatpush.msra.mxu0 %v2582
        %2676 = vmatpush.msra.mxu0 %v2578
        %2677 = vmatpush.msra.mxu0 %v2574
        %2678 = vmatpush.msra.mxu0 %v2570
        %2679 = vmatpush.msra.mxu0 %v2566
        %2680 = vmatpush.msra.mxu0 %v2562
        %2681 = vmatpush.msra.mxu0 %v2558
        %2682 = vmatpush.msra.mxu0 %v2554
        %2683 = vmatpush.msra.mxu0 %v2550
        %2684 = vmatpush.msra.mxu0 %v2546
        %2685 = vmatpush.msra.mxu0 %v2542
        %2686 = vmatpush.msra.mxu0 %v2538
        %2687 = vmatmul.f32.gmra.mxu0 %v2472
        %v2688 = vpop.f32.mrf.mxu0
        %v2689 = vadd.f32 %v2669, %v2688
        %2690 = vdwg.mxu0
        %2691 = vmatpush.msra.mxu0 %v2535
        %2692 = vmatpush.msra.mxu0 %v2531
        %2693 = vmatpush.msra.mxu0 %v2527
        %2694 = vmatpush.msra.mxu0 %v2523
        %2695 = vmatpush.msra.mxu0 %v2519
        %2696 = vmatpush.msra.mxu0 %v2515
        %2697 = vmatpush.msra.mxu0 %v2511
        %2698 = vmatpush.msra.mxu0 %v2507
        %2699 = vmatpush.msra.mxu0 %v2503
        %2700 = vmatpush.msra.mxu0 %v2499
        %2701 = vmatpush.msra.mxu0 %v2495
        %2702 = vmatpush.msra.mxu0 %v2491
        %2703 = vmatpush.msra.mxu0 %v2487
        %2704 = vmatpush.msra.mxu0 %v2483
        %2705 = vmatpush.msra.mxu0 %v2479
        %2706 = vmatpush.msra.mxu0 %v2475
        %2707 = vmatmul.f32.gmra.mxu0 %v2471
        %v2708 = vpop.f32.mrf.mxu0
        %v2709 = vadd.f32 %v2605, %v2708
        %2710 = vdwg.mxu0
        %2711 = vmatpush.msra.mxu0 %v2599
        %2712 = vmatpush.msra.mxu0 %v2595
        %2713 = vmatpush.msra.mxu0 %v2591
        %2714 = vmatpush.msra.mxu0 %v2587
        %2715 = vmatpush.msra.mxu0 %v2583
        %2716 = vmatpush.msra.mxu0 %v2579
        %2717 = vmatpush.msra.mxu0 %v2575
        %2718 = vmatpush.msra.mxu0 %v2571
        %2719 = vmatpush.msra.mxu0 %v2567
        %2720 = vmatpush.msra.mxu0 %v2563
        %2721 = vmatpush.msra.mxu0 %v2559
        %2722 = vmatpush.msra.mxu0 %v2555
        %2723 = vmatpush.msra.mxu0 %v2551
        %2724 = vmatpush.msra.mxu0 %v2547
        %2725 = vmatpush.msra.mxu0 %v2543
        %2726 = vmatpush.msra.mxu0 %v2539
        %2727 = vmatmul.f32.gmra.mxu0 %v2472
        %v2728 = vpop.f32.mrf.mxu0
        %v2729 = vadd.f32 %v2709, %v2728
        %2730 = vdwg.mxu0
        %2731 = vmatpush.msra.mxu0 %v2536
        %2732 = vmatpush.msra.mxu0 %v2532
        %2733 = vmatpush.msra.mxu0 %v2528
        %2734 = vmatpush.msra.mxu0 %v2524
        %2735 = vmatpush.msra.mxu0 %v2520
        %2736 = vmatpush.msra.mxu0 %v2516
        %2737 = vmatpush.msra.mxu0 %v2512
        %2738 = vmatpush.msra.mxu0 %v2508
        %2739 = vmatpush.msra.mxu0 %v2504
        %2740 = vmatpush.msra.mxu0 %v2500
        %2741 = vmatpush.msra.mxu0 %v2496
        %2742 = vmatpush.msra.mxu0 %v2492
        %2743 = vmatpush.msra.mxu0 %v2488
        %2744 = vmatpush.msra.mxu0 %v2484
        %2745 = vmatpush.msra.mxu0 %v2480
        %2746 = vmatpush.msra.mxu0 %v2476
        %2747 = vmatmul.f32.gmra.mxu0 %v2471
        %v2748 = vpop.f32.mrf.mxu0
        %v2749 = vadd.f32 %v2606, %v2748
        %2750 = vdwg.mxu0
        %2751 = vmatpush.msra.mxu0 %v2600
        %2752 = vmatpush.msra.mxu0 %v2596
        %2753 = vmatpush.msra.mxu0 %v2592
        %2754 = vmatpush.msra.mxu0 %v2588
        %2755 = vmatpush.msra.mxu0 %v2584
        %2756 = vmatpush.msra.mxu0 %v2580
        %2757 = vmatpush.msra.mxu0 %v2576
        %2758 = vmatpush.msra.mxu0 %v2572
        %2759 = vmatpush.msra.mxu0 %v2568
        %2760 = vmatpush.msra.mxu0 %v2564
        %2761 = vmatpush.msra.mxu0 %v2560
        %2762 = vmatpush.msra.mxu0 %v2556
        %2763 = vmatpush.msra.mxu0 %v2552
        %2764 = vmatpush.msra.mxu0 %v2548
        %2765 = vmatpush.msra.mxu0 %v2544
        %2766 = vmatpush.msra.mxu0 %v2540
        %2767 = vmatmul.f32.gmra.mxu0 %v2472
        %v2768 = vpop.f32.mrf.mxu0
        %v2769 = vadd.f32 %v2749, %v2768
        %2770 = vdwg.mxu0
        %v2771 = vxor.u32 %v2649, 2147483648
        %v2772 = vmul.f32 %v2771, 1.442695
        %v2773 = vpow.pop %v2772
        %v2774 = vadd.f32 %v2773, 1.0
        %v2775 = vrcp.pop %v2774
        %v2776 = vmul.f32 %v2774, %v2775
        %v2777 = vsub.f32 1.0, %v2776
        %v2778 = vmul.f32 %v2775, %v2777
        %v2779 = vadd.f32 %v2775, %v2778
        %vm2780 = vweird.f32 %v2774
        %vm2781 = vweird.f32 %v2775
        %vm2782 = vmor %vm2780, %vm2781
        %v2783 = vsel %vm2782, %v2775, %v2779
        %v2784 = vand.u32 2147483647, %v2774
        %vm2785 = vcmp.eq.f32.partialorder %v2784, 8.507059e+37
        %v2786 = vand.u32 %v2774, 2147483648
        %v2787 = vor.u32 1.1754944e-38, %v2786
        %v2788 = vsel %vm2785, %v2787, %v2783
        %v2789 = vmul.f32 1.0, %v2788
        %v2790 = vxor.u32 %v2689, 2147483648
        %v2791 = vmul.f32 %v2790, 1.442695
        %v2792 = vpow.pop %v2791
        %v2793 = vadd.f32 %v2792, 1.0
        %v2794 = vrcp.pop %v2793
        %v2795 = vmul.f32 %v2793, %v2794
        %v2796 = vsub.f32 1.0, %v2795
        %v2797 = vmul.f32 %v2794, %v2796
        %v2798 = vadd.f32 %v2794, %v2797
        %vm2799 = vweird.f32 %v2793
        %vm2800 = vweird.f32 %v2794
        %vm2801 = vmor %vm2799, %vm2800
        %v2802 = vsel %vm2801, %v2794, %v2798
        %v2803 = vand.u32 2147483647, %v2793
        %vm2804 = vcmp.eq.f32.partialorder %v2803, 8.507059e+37
        %v2805 = vand.u32 %v2793, 2147483648
        %v2806 = vor.u32 1.1754944e-38, %v2805
        %v2807 = vsel %vm2804, %v2806, %v2802
        %v2808 = vmul.f32 1.0, %v2807
        %v2809 = vtanh.pop %v2729
        %v2810 = vxor.u32 %v2769, 2147483648
        %v2811 = vmul.f32 %v2810, 1.442695
        %v2812 = vpow.pop %v2811
        %v2813 = vadd.f32 %v2812, 1.0
        %v2814 = vrcp.pop %v2813
        %v2815 = vmul.f32 %v2813, %v2814
        %v2816 = vsub.f32 1.0, %v2815
        %v2817 = vmul.f32 %v2814, %v2816
        %v2818 = vadd.f32 %v2814, %v2817
        %vm2819 = vweird.f32 %v2813
        %vm2820 = vweird.f32 %v2814
        %vm2821 = vmor %vm2819, %vm2820
        %v2822 = vsel %vm2821, %v2814, %v2818
        %v2823 = vand.u32 2147483647, %v2813
        %vm2824 = vcmp.eq.f32.partialorder %v2823, 8.507059e+37
        %v2825 = vand.u32 %v2813, 2147483648
        %v2826 = vor.u32 1.1754944e-38, %v2825
        %v2827 = vsel %vm2824, %v2826, %v2822
        %v2828 = vmul.f32 1.0, %v2827
        %v2829 = vld [vmem:[#allocation3] sm:$0xff]
        %v2830 = vmul.f32 %v2808, %v2829
        %v2831 = vmul.f32 %v2789, %v2809
        %v2832 = vadd.f32 %v2830, %v2831
        %v2833 = vtanh.pop %v2832
        %v2834 = vmul.f32 %v2828, %v2833
        %2835 = vst [vmem:[#allocation3] sm:$0xff] %v2832
        %2836 = vst [vmem:[#allocation2] sm:$0xff] %v2834
        %s2837 = scalar_lea.vmem %s221, 48 [#allocation11]
        %2838 = vst [vmem:[%s2837] sm:$0xff] %v2834
        %s2839 = scalar_lea.vmem %s188, 56 [#allocation5]
        %v2840 = vld [vmem:[%s2839] sm:$0xff]
        %2841 = vst [vmem:[#allocation4] sm:$0xff] %v2840
        %v2842 = vld [vmem:[#allocation2] sm:$0xff]
        %2843 = vst [vmem:[#allocation4 + $0x8] sm:$0xff] %v2842
        %v2844 = vld [vmem:[#allocation4] sm:$0xff]
        %v2845 = vld [vmem:[#allocation4 + $0x8] sm:$0xff]
        %v2846 = vld [vmem:[#allocation8] sm:$0xff]
        %v2847 = vld [vmem:[#allocation8 + $0x8] sm:$0xff]
        %v2848 = vld [vmem:[#allocation8 + $0x10] sm:$0xff]
        %v2849 = vld [vmem:[#allocation8 + $0x18] sm:$0xff]
        %v2850 = vld [vmem:[#allocation8 + $0x20] sm:$0xff]
        %v2851 = vld [vmem:[#allocation8 + $0x28] sm:$0xff]
        %v2852 = vld [vmem:[#allocation8 + $0x30] sm:$0xff]
        %v2853 = vld [vmem:[#allocation8 + $0x38] sm:$0xff]
        %v2854 = vld [vmem:[#allocation8 + $0x40] sm:$0xff]
        %v2855 = vld [vmem:[#allocation8 + $0x48] sm:$0xff]
        %v2856 = vld [vmem:[#allocation8 + $0x50] sm:$0xff]
        %v2857 = vld [vmem:[#allocation8 + $0x58] sm:$0xff]
        %v2858 = vld [vmem:[#allocation8 + $0x60] sm:$0xff]
        %v2859 = vld [vmem:[#allocation8 + $0x68] sm:$0xff]
        %v2860 = vld [vmem:[#allocation8 + $0x70] sm:$0xff]
        %v2861 = vld [vmem:[#allocation8 + $0x78] sm:$0xff]
        %v2862 = vld [vmem:[#allocation8 + $0x80] sm:$0xff]
        %v2863 = vld [vmem:[#allocation8 + $0x88] sm:$0xff]
        %v2864 = vld [vmem:[#allocation8 + $0x90] sm:$0xff]
        %v2865 = vld [vmem:[#allocation8 + $0x98] sm:$0xff]
        %v2866 = vld [vmem:[#allocation8 + $0xa0] sm:$0xff]
        %v2867 = vld [vmem:[#allocation8 + $0xa8] sm:$0xff]
        %v2868 = vld [vmem:[#allocation8 + $0xb0] sm:$0xff]
        %v2869 = vld [vmem:[#allocation8 + $0xb8] sm:$0xff]
        %v2870 = vld [vmem:[#allocation8 + $0xc0] sm:$0xff]
        %v2871 = vld [vmem:[#allocation8 + $0xc8] sm:$0xff]
        %v2872 = vld [vmem:[#allocation8 + $0xd0] sm:$0xff]
        %v2873 = vld [vmem:[#allocation8 + $0xd8] sm:$0xff]
        %v2874 = vld [vmem:[#allocation8 + $0xe0] sm:$0xff]
        %v2875 = vld [vmem:[#allocation8 + $0xe8] sm:$0xff]
        %v2876 = vld [vmem:[#allocation8 + $0xf0] sm:$0xff]
        %v2877 = vld [vmem:[#allocation8 + $0xf8] sm:$0xff]
        %v2878 = vld [vmem:[#allocation8 + $0x100] sm:$0xff]
        %v2879 = vld [vmem:[#allocation8 + $0x108] sm:$0xff]
        %v2880 = vld [vmem:[#allocation8 + $0x110] sm:$0xff]
        %v2881 = vld [vmem:[#allocation8 + $0x118] sm:$0xff]
        %v2882 = vld [vmem:[#allocation8 + $0x120] sm:$0xff]
        %v2883 = vld [vmem:[#allocation8 + $0x128] sm:$0xff]
        %v2884 = vld [vmem:[#allocation8 + $0x130] sm:$0xff]
        %v2885 = vld [vmem:[#allocation8 + $0x138] sm:$0xff]
        %v2886 = vld [vmem:[#allocation8 + $0x140] sm:$0xff]
        %v2887 = vld [vmem:[#allocation8 + $0x148] sm:$0xff]
        %v2888 = vld [vmem:[#allocation8 + $0x150] sm:$0xff]
        %v2889 = vld [vmem:[#allocation8 + $0x158] sm:$0xff]
        %v2890 = vld [vmem:[#allocation8 + $0x160] sm:$0xff]
        %v2891 = vld [vmem:[#allocation8 + $0x168] sm:$0xff]
        %v2892 = vld [vmem:[#allocation8 + $0x170] sm:$0xff]
        %v2893 = vld [vmem:[#allocation8 + $0x178] sm:$0xff]
        %v2894 = vld [vmem:[#allocation8 + $0x180] sm:$0xff]
        %v2895 = vld [vmem:[#allocation8 + $0x188] sm:$0xff]
        %v2896 = vld [vmem:[#allocation8 + $0x190] sm:$0xff]
        %v2897 = vld [vmem:[#allocation8 + $0x198] sm:$0xff]
        %v2898 = vld [vmem:[#allocation8 + $0x1a0] sm:$0xff]
        %v2899 = vld [vmem:[#allocation8 + $0x1a8] sm:$0xff]
        %v2900 = vld [vmem:[#allocation8 + $0x1b0] sm:$0xff]
        %v2901 = vld [vmem:[#allocation8 + $0x1b8] sm:$0xff]
        %v2902 = vld [vmem:[#allocation8 + $0x1c0] sm:$0xff]
        %v2903 = vld [vmem:[#allocation8 + $0x1c8] sm:$0xff]
        %v2904 = vld [vmem:[#allocation8 + $0x1d0] sm:$0xff]
        %v2905 = vld [vmem:[#allocation8 + $0x1d8] sm:$0xff]
        %v2906 = vld [vmem:[#allocation8 + $0x1e0] sm:$0xff]
        %v2907 = vld [vmem:[#allocation8 + $0x1e8] sm:$0xff]
        %v2908 = vld [vmem:[#allocation8 + $0x1f0] sm:$0xff]
        %v2909 = vld [vmem:[#allocation8 + $0x1f8] sm:$0xff]
        %v2910 = vld [vmem:[#allocation8 + $0x200] sm:$0xff]
        %v2911 = vld [vmem:[#allocation8 + $0x208] sm:$0xff]
        %v2912 = vld [vmem:[#allocation8 + $0x210] sm:$0xff]
        %v2913 = vld [vmem:[#allocation8 + $0x218] sm:$0xff]
        %v2914 = vld [vmem:[#allocation8 + $0x220] sm:$0xff]
        %v2915 = vld [vmem:[#allocation8 + $0x228] sm:$0xff]
        %v2916 = vld [vmem:[#allocation8 + $0x230] sm:$0xff]
        %v2917 = vld [vmem:[#allocation8 + $0x238] sm:$0xff]
        %v2918 = vld [vmem:[#allocation8 + $0x240] sm:$0xff]
        %v2919 = vld [vmem:[#allocation8 + $0x248] sm:$0xff]
        %v2920 = vld [vmem:[#allocation8 + $0x250] sm:$0xff]
        %v2921 = vld [vmem:[#allocation8 + $0x258] sm:$0xff]
        %v2922 = vld [vmem:[#allocation8 + $0x260] sm:$0xff]
        %v2923 = vld [vmem:[#allocation8 + $0x268] sm:$0xff]
        %v2924 = vld [vmem:[#allocation8 + $0x270] sm:$0xff]
        %v2925 = vld [vmem:[#allocation8 + $0x278] sm:$0xff]
        %v2926 = vld [vmem:[#allocation8 + $0x280] sm:$0xff]
        %v2927 = vld [vmem:[#allocation8 + $0x288] sm:$0xff]
        %v2928 = vld [vmem:[#allocation8 + $0x290] sm:$0xff]
        %v2929 = vld [vmem:[#allocation8 + $0x298] sm:$0xff]
        %v2930 = vld [vmem:[#allocation8 + $0x2a0] sm:$0xff]
        %v2931 = vld [vmem:[#allocation8 + $0x2a8] sm:$0xff]
        %v2932 = vld [vmem:[#allocation8 + $0x2b0] sm:$0xff]
        %v2933 = vld [vmem:[#allocation8 + $0x2b8] sm:$0xff]
        %v2934 = vld [vmem:[#allocation8 + $0x2c0] sm:$0xff]
        %v2935 = vld [vmem:[#allocation8 + $0x2c8] sm:$0xff]
        %v2936 = vld [vmem:[#allocation8 + $0x2d0] sm:$0xff]
        %v2937 = vld [vmem:[#allocation8 + $0x2d8] sm:$0xff]
        %v2938 = vld [vmem:[#allocation8 + $0x2e0] sm:$0xff]
        %v2939 = vld [vmem:[#allocation8 + $0x2e8] sm:$0xff]
        %v2940 = vld [vmem:[#allocation8 + $0x2f0] sm:$0xff]
        %v2941 = vld [vmem:[#allocation8 + $0x2f8] sm:$0xff]
        %v2942 = vld [vmem:[#allocation8 + $0x300] sm:$0xff]
        %v2943 = vld [vmem:[#allocation8 + $0x308] sm:$0xff]
        %v2944 = vld [vmem:[#allocation8 + $0x310] sm:$0xff]
        %v2945 = vld [vmem:[#allocation8 + $0x318] sm:$0xff]
        %v2946 = vld [vmem:[#allocation8 + $0x320] sm:$0xff]
        %v2947 = vld [vmem:[#allocation8 + $0x328] sm:$0xff]
        %v2948 = vld [vmem:[#allocation8 + $0x330] sm:$0xff]
        %v2949 = vld [vmem:[#allocation8 + $0x338] sm:$0xff]
        %v2950 = vld [vmem:[#allocation8 + $0x340] sm:$0xff]
        %v2951 = vld [vmem:[#allocation8 + $0x348] sm:$0xff]
        %v2952 = vld [vmem:[#allocation8 + $0x350] sm:$0xff]
        %v2953 = vld [vmem:[#allocation8 + $0x358] sm:$0xff]
        %v2954 = vld [vmem:[#allocation8 + $0x360] sm:$0xff]
        %v2955 = vld [vmem:[#allocation8 + $0x368] sm:$0xff]
        %v2956 = vld [vmem:[#allocation8 + $0x370] sm:$0xff]
        %v2957 = vld [vmem:[#allocation8 + $0x378] sm:$0xff]
        %v2958 = vld [vmem:[#allocation8 + $0x380] sm:$0xff]
        %v2959 = vld [vmem:[#allocation8 + $0x388] sm:$0xff]
        %v2960 = vld [vmem:[#allocation8 + $0x390] sm:$0xff]
        %v2961 = vld [vmem:[#allocation8 + $0x398] sm:$0xff]
        %v2962 = vld [vmem:[#allocation8 + $0x3a0] sm:$0xff]
        %v2963 = vld [vmem:[#allocation8 + $0x3a8] sm:$0xff]
        %v2964 = vld [vmem:[#allocation8 + $0x3b0] sm:$0xff]
        %v2965 = vld [vmem:[#allocation8 + $0x3b8] sm:$0xff]
        %v2966 = vld [vmem:[#allocation8 + $0x3c0] sm:$0xff]
        %v2967 = vld [vmem:[#allocation8 + $0x3c8] sm:$0xff]
        %v2968 = vld [vmem:[#allocation8 + $0x3d0] sm:$0xff]
        %v2969 = vld [vmem:[#allocation8 + $0x3d8] sm:$0xff]
        %v2970 = vld [vmem:[#allocation8 + $0x3e0] sm:$0xff]
        %v2971 = vld [vmem:[#allocation8 + $0x3e8] sm:$0xff]
        %v2972 = vld [vmem:[#allocation8 + $0x3f0] sm:$0xff]
        %v2973 = vld [vmem:[#allocation8 + $0x3f8] sm:$0xff]
        %v2974 = vld [vmem:[#allocation10] sm:$0xf]
        %v2976 = vperm.slane %v2974, 0
        %v2977 = vperm.slane %v2974, 1
        %v2978 = vperm.slane %v2974, 2
        %v2979 = vperm.slane %v2974, 3
        %2984 = vmatpush.msra.mxu0 %v2906
        %2985 = vmatpush.msra.mxu0 %v2902
        %2986 = vmatpush.msra.mxu0 %v2898
        %2987 = vmatpush.msra.mxu0 %v2894
        %2988 = vmatpush.msra.mxu0 %v2890
        %2989 = vmatpush.msra.mxu0 %v2886
        %2990 = vmatpush.msra.mxu0 %v2882
        %2991 = vmatpush.msra.mxu0 %v2878
        %2992 = vmatpush.msra.mxu0 %v2874
        %2993 = vmatpush.msra.mxu0 %v2870
        %2994 = vmatpush.msra.mxu0 %v2866
        %2995 = vmatpush.msra.mxu0 %v2862
        %2996 = vmatpush.msra.mxu0 %v2858
        %2997 = vmatpush.msra.mxu0 %v2854
        %2998 = vmatpush.msra.mxu0 %v2850
        %2999 = vmatpush.msra.mxu0 %v2846
        %3000 = vmatmul.f32.gmra.mxu0 %v2844
        %v3001 = vpop.f32.mrf.mxu0
        %v3002 = vadd.f32 %v2976, %v3001
        %3003 = vdwg.mxu0
        %3004 = vmatpush.msra.mxu0 %v2970
        %3005 = vmatpush.msra.mxu0 %v2966
        %3006 = vmatpush.msra.mxu0 %v2962
        %3007 = vmatpush.msra.mxu0 %v2958
        %3008 = vmatpush.msra.mxu0 %v2954
        %3009 = vmatpush.msra.mxu0 %v2950
        %3010 = vmatpush.msra.mxu0 %v2946
        %3011 = vmatpush.msra.mxu0 %v2942
        %3012 = vmatpush.msra.mxu0 %v2938
        %3013 = vmatpush.msra.mxu0 %v2934
        %3014 = vmatpush.msra.mxu0 %v2930
        %3015 = vmatpush.msra.mxu0 %v2926
        %3016 = vmatpush.msra.mxu0 %v2922
        %3017 = vmatpush.msra.mxu0 %v2918
        %3018 = vmatpush.msra.mxu0 %v2914
        %3019 = vmatpush.msra.mxu0 %v2910
        %3020 = vmatmul.f32.gmra.mxu0 %v2845
        %v3021 = vpop.f32.mrf.mxu0
        %v3022 = vadd.f32 %v3002, %v3021
        %3023 = vdwg.mxu0
        %3024 = vmatpush.msra.mxu0 %v2907
        %3025 = vmatpush.msra.mxu0 %v2903
        %3026 = vmatpush.msra.mxu0 %v2899
        %3027 = vmatpush.msra.mxu0 %v2895
        %3028 = vmatpush.msra.mxu0 %v2891
        %3029 = vmatpush.msra.mxu0 %v2887
        %3030 = vmatpush.msra.mxu0 %v2883
        %3031 = vmatpush.msra.mxu0 %v2879
        %3032 = vmatpush.msra.mxu0 %v2875
        %3033 = vmatpush.msra.mxu0 %v2871
        %3034 = vmatpush.msra.mxu0 %v2867
        %3035 = vmatpush.msra.mxu0 %v2863
        %3036 = vmatpush.msra.mxu0 %v2859
        %3037 = vmatpush.msra.mxu0 %v2855
        %3038 = vmatpush.msra.mxu0 %v2851
        %3039 = vmatpush.msra.mxu0 %v2847
        %3040 = vmatmul.f32.gmra.mxu0 %v2844
        %v3041 = vpop.f32.mrf.mxu0
        %v3042 = vadd.f32 %v2977, %v3041
        %3043 = vdwg.mxu0
        %3044 = vmatpush.msra.mxu0 %v2971
        %3045 = vmatpush.msra.mxu0 %v2967
        %3046 = vmatpush.msra.mxu0 %v2963
        %3047 = vmatpush.msra.mxu0 %v2959
        %3048 = vmatpush.msra.mxu0 %v2955
        %3049 = vmatpush.msra.mxu0 %v2951
        %3050 = vmatpush.msra.mxu0 %v2947
        %3051 = vmatpush.msra.mxu0 %v2943
        %3052 = vmatpush.msra.mxu0 %v2939
        %3053 = vmatpush.msra.mxu0 %v2935
        %3054 = vmatpush.msra.mxu0 %v2931
        %3055 = vmatpush.msra.mxu0 %v2927
        %3056 = vmatpush.msra.mxu0 %v2923
        %3057 = vmatpush.msra.mxu0 %v2919
        %3058 = vmatpush.msra.mxu0 %v2915
        %3059 = vmatpush.msra.mxu0 %v2911
        %3060 = vmatmul.f32.gmra.mxu0 %v2845
        %v3061 = vpop.f32.mrf.mxu0
        %v3062 = vadd.f32 %v3042, %v3061
        %3063 = vdwg.mxu0
        %3064 = vmatpush.msra.mxu0 %v2908
        %3065 = vmatpush.msra.mxu0 %v2904
        %3066 = vmatpush.msra.mxu0 %v2900
        %3067 = vmatpush.msra.mxu0 %v2896
        %3068 = vmatpush.msra.mxu0 %v2892
        %3069 = vmatpush.msra.mxu0 %v2888
        %3070 = vmatpush.msra.mxu0 %v2884
        %3071 = vmatpush.msra.mxu0 %v2880
        %3072 = vmatpush.msra.mxu0 %v2876
        %3073 = vmatpush.msra.mxu0 %v2872
        %3074 = vmatpush.msra.mxu0 %v2868
        %3075 = vmatpush.msra.mxu0 %v2864
        %3076 = vmatpush.msra.mxu0 %v2860
        %3077 = vmatpush.msra.mxu0 %v2856
        %3078 = vmatpush.msra.mxu0 %v2852
        %3079 = vmatpush.msra.mxu0 %v2848
        %3080 = vmatmul.f32.gmra.mxu0 %v2844
        %v3081 = vpop.f32.mrf.mxu0
        %v3082 = vadd.f32 %v2978, %v3081
        %3083 = vdwg.mxu0
        %3084 = vmatpush.msra.mxu0 %v2972
        %3085 = vmatpush.msra.mxu0 %v2968
        %3086 = vmatpush.msra.mxu0 %v2964
        %3087 = vmatpush.msra.mxu0 %v2960
        %3088 = vmatpush.msra.mxu0 %v2956
        %3089 = vmatpush.msra.mxu0 %v2952
        %3090 = vmatpush.msra.mxu0 %v2948
        %3091 = vmatpush.msra.mxu0 %v2944
        %3092 = vmatpush.msra.mxu0 %v2940
        %3093 = vmatpush.msra.mxu0 %v2936
        %3094 = vmatpush.msra.mxu0 %v2932
        %3095 = vmatpush.msra.mxu0 %v2928
        %3096 = vmatpush.msra.mxu0 %v2924
        %3097 = vmatpush.msra.mxu0 %v2920
        %3098 = vmatpush.msra.mxu0 %v2916
        %3099 = vmatpush.msra.mxu0 %v2912
        %3100 = vmatmul.f32.gmra.mxu0 %v2845
        %v3101 = vpop.f32.mrf.mxu0
        %v3102 = vadd.f32 %v3082, %v3101
        %3103 = vdwg.mxu0
        %3104 = vmatpush.msra.mxu0 %v2909
        %3105 = vmatpush.msra.mxu0 %v2905
        %3106 = vmatpush.msra.mxu0 %v2901
        %3107 = vmatpush.msra.mxu0 %v2897
        %3108 = vmatpush.msra.mxu0 %v2893
        %3109 = vmatpush.msra.mxu0 %v2889
        %3110 = vmatpush.msra.mxu0 %v2885
        %3111 = vmatpush.msra.mxu0 %v2881
        %3112 = vmatpush.msra.mxu0 %v2877
        %3113 = vmatpush.msra.mxu0 %v2873
        %3114 = vmatpush.msra.mxu0 %v2869
        %3115 = vmatpush.msra.mxu0 %v2865
        %3116 = vmatpush.msra.mxu0 %v2861
        %3117 = vmatpush.msra.mxu0 %v2857
        %3118 = vmatpush.msra.mxu0 %v2853
        %3119 = vmatpush.msra.mxu0 %v2849
        %3120 = vmatmul.f32.gmra.mxu0 %v2844
        %v3121 = vpop.f32.mrf.mxu0
        %v3122 = vadd.f32 %v2979, %v3121
        %3123 = vdwg.mxu0
        %3124 = vmatpush.msra.mxu0 %v2973
        %3125 = vmatpush.msra.mxu0 %v2969
        %3126 = vmatpush.msra.mxu0 %v2965
        %3127 = vmatpush.msra.mxu0 %v2961
        %3128 = vmatpush.msra.mxu0 %v2957
        %3129 = vmatpush.msra.mxu0 %v2953
        %3130 = vmatpush.msra.mxu0 %v2949
        %3131 = vmatpush.msra.mxu0 %v2945
        %3132 = vmatpush.msra.mxu0 %v2941
        %3133 = vmatpush.msra.mxu0 %v2937
        %3134 = vmatpush.msra.mxu0 %v2933
        %3135 = vmatpush.msra.mxu0 %v2929
        %3136 = vmatpush.msra.mxu0 %v2925
        %3137 = vmatpush.msra.mxu0 %v2921
        %3138 = vmatpush.msra.mxu0 %v2917
        %3139 = vmatpush.msra.mxu0 %v2913
        %3140 = vmatmul.f32.gmra.mxu0 %v2845
        %v3141 = vpop.f32.mrf.mxu0
        %v3142 = vadd.f32 %v3122, %v3141
        %3143 = vdwg.mxu0
        %v3144 = vxor.u32 %v3022, 2147483648
        %v3145 = vmul.f32 %v3144, 1.442695
        %v3146 = vpow.pop %v3145
        %v3147 = vadd.f32 %v3146, 1.0
        %v3148 = vrcp.pop %v3147
        %v3149 = vmul.f32 %v3147, %v3148
        %v3150 = vsub.f32 1.0, %v3149
        %v3151 = vmul.f32 %v3148, %v3150
        %v3152 = vadd.f32 %v3148, %v3151
        %vm3153 = vweird.f32 %v3147
        %vm3154 = vweird.f32 %v3148
        %vm3155 = vmor %vm3153, %vm3154
        %v3156 = vsel %vm3155, %v3148, %v3152
        %v3157 = vand.u32 2147483647, %v3147
        %vm3158 = vcmp.eq.f32.partialorder %v3157, 8.507059e+37
        %v3159 = vand.u32 %v3147, 2147483648
        %v3160 = vor.u32 1.1754944e-38, %v3159
        %v3161 = vsel %vm3158, %v3160, %v3156
        %v3162 = vmul.f32 1.0, %v3161
        %v3163 = vxor.u32 %v3062, 2147483648
        %v3164 = vmul.f32 %v3163, 1.442695
        %v3165 = vpow.pop %v3164
        %v3166 = vadd.f32 %v3165, 1.0
        %v3167 = vrcp.pop %v3166
        %v3168 = vmul.f32 %v3166, %v3167
        %v3169 = vsub.f32 1.0, %v3168
        %v3170 = vmul.f32 %v3167, %v3169
        %v3171 = vadd.f32 %v3167, %v3170
        %vm3172 = vweird.f32 %v3166
        %vm3173 = vweird.f32 %v3167
        %vm3174 = vmor %vm3172, %vm3173
        %v3175 = vsel %vm3174, %v3167, %v3171
        %v3176 = vand.u32 2147483647, %v3166
        %vm3177 = vcmp.eq.f32.partialorder %v3176, 8.507059e+37
        %v3178 = vand.u32 %v3166, 2147483648
        %v3179 = vor.u32 1.1754944e-38, %v3178
        %v3180 = vsel %vm3177, %v3179, %v3175
        %v3181 = vmul.f32 1.0, %v3180
        %v3182 = vtanh.pop %v3102
        %v3183 = vxor.u32 %v3142, 2147483648
        %v3184 = vmul.f32 %v3183, 1.442695
        %v3185 = vpow.pop %v3184
        %v3186 = vadd.f32 %v3185, 1.0
        %v3187 = vrcp.pop %v3186
        %v3188 = vmul.f32 %v3186, %v3187
        %v3189 = vsub.f32 1.0, %v3188
        %v3190 = vmul.f32 %v3187, %v3189
        %v3191 = vadd.f32 %v3187, %v3190
        %vm3192 = vweird.f32 %v3186
        %vm3193 = vweird.f32 %v3187
        %vm3194 = vmor %vm3192, %vm3193
        %v3195 = vsel %vm3194, %v3187, %v3191
        %v3196 = vand.u32 2147483647, %v3186
        %vm3197 = vcmp.eq.f32.partialorder %v3196, 8.507059e+37
        %v3198 = vand.u32 %v3186, 2147483648
        %v3199 = vor.u32 1.1754944e-38, %v3198
        %v3200 = vsel %vm3197, %v3199, %v3195
        %v3201 = vmul.f32 1.0, %v3200
        %v3202 = vld [vmem:[#allocation3] sm:$0xff]
        %v3203 = vmul.f32 %v3181, %v3202
        %v3204 = vmul.f32 %v3162, %v3182
        %v3205 = vadd.f32 %v3203, %v3204
        %v3206 = vtanh.pop %v3205
        %v3207 = vmul.f32 %v3201, %v3206
        %3208 = vst [vmem:[#allocation3] sm:$0xff] %v3205
        %3209 = vst [vmem:[#allocation2] sm:$0xff] %v3207
        %s3210 = scalar_lea.vmem %s221, 56 [#allocation11]
        %3211 = vst [vmem:[%s3210] sm:$0xff] %v3207
        %s3212 = sand.u32 %s97, 1
        %s3213 = scalar_lea.sflag [#allocation7], %s3212
        %s3214 = sand.u32 %s97, 1
        %s3215 = smul.addr %s3214, 64
        %s3216 = scalar_lea.vmem [#allocation11], %s3215
        // Predicated region
        $region49: #{tpu_custom_call.1} parent=31 // pred_check
          %p3217 = pneg %p107
        $region50: #{tpu_custom_call.1} parent=31 // pred_check_branch
          %3219 = sbr.rel (%p3217) target = $region52
        $region51: #{tpu_custom_call.1} parent=31 // pred_region
          %s3220 = smul.u32 8, %s21
          %3222 = vsyncadd %s3213, 0
          %s3223 = smul.addr %s3220, 8
          %s3224 = scalar_lea.hbm %s3, %s3223
          %s3225 = sshll.u32 %s3216, 4
          %s3226 = int_to_ptr.vmem [resolvable:$true] %s3225
          %s3227 = sshll.u32 %s3224, 4
          %s3228 = int_to_ptr.hbm [resolvable:$true] %s3227
          %3233 = dma.vmem_to_hbm [thread:$0]  %s3226, 1024, %s3228, %s3213, 128, 128, 8
        $region52: #{tpu_custom_call.1} parent=31 // pred_fallthru
          _
      $region32: #{tpu_custom_call.1} parent=5 // pred_fallthru
        _
      %p3234 = scmp.le.s32.totalorder 2, %s16
      // Predicated region
      $region53: #{tpu_custom_call.1} parent=5 // pred_check
        %p3235 = pneg %p3234
      $region54: #{tpu_custom_call.1} parent=5 // pred_check_branch
        %3237 = sbr.rel (%p3235) target = $region56
      $region55: #{tpu_custom_call.1} parent=5 // pred_region
        %s3238 = ssub.s32 %s16, 2
        // Predicated region
        $region57: #{tpu_custom_call.1} parent=55 // pred_check
          %p3239 = pneg %p113
        $region58: #{tpu_custom_call.1} parent=55 // pred_check_branch
          %3241 = sbr.rel (%p3239) target = $region60
        $region59: #{tpu_custom_call.1} parent=55 // pred_region
          %s3242 = sand.u32 %s98, 1
          %s3243 = scalar_lea.sflag [#allocation7], %s3242
          %s3244 = sand.u32 %s98, 1
          %s3245 = smul.addr %s3244, 64
          %s3246 = scalar_lea.vmem [#allocation11], %s3245
          %3248 = dma.done %s3243, 1024
        $region60: #{tpu_custom_call.1} parent=55 // pred_fallthru
          _
      $region56: #{tpu_custom_call.1} parent=5 // pred_fallthru
        _
    $region6: #{tpu_custom_call.1} parent=1 // loop_footer
      %s20 = sadd.s32 1, %s16
    $region7: #{tpu_custom_call.1} parent=1 // loop_footer_branch
      %15 = sbr.rel target = $region3
    $region8: #{tpu_custom_call.1} parent=1 // loop_exit
      _
    %3249 = vsyncpa [#allocation6], 1
    %s3250 = scalar_lea.sflag [#allocation6], 1
    %3251 = vsyncpa %s3250, 1
    %3252 = vsyncpa [#allocation9], 1
    %3253 = vsyncpa [#allocation7], 1
    %s3254 = scalar_lea.sflag [#allocation7], 1
    %3255 = vsyncpa %s3254, 1

</llo_original>
